<compile_context>
chip_gen: v6e
topology: v6e:2x2x1
jax: 0.10.0
libtpu: 0.0.40
codegen_flags: <defaults>
</compile_context>

<pallas_src>
import functools

import jax
import jax.numpy as jnp
from jax.experimental import pallas as pl
from jax.experimental.pallas import tpu as pltpu

# ---------------- config (synthetic stand-in, lane-dense dims) ----------------
NUM_CLASSES = 20                   # module default
NC_PAD = 128                       # classifier out-channels padded to one full 128-lane vreg
EMBED_DIMS = (128, 128, 256, 256)  # synthetic encoder.embed_dims, multiples of 128
STRIDES = (4, 2, 2, 2)             # module default stride -> feature_strides [4,8,16,32]
IN_CHANS = 3

# VMEM budget used to size row tiles: double-buffered bf16 (input + output)
# activation tiles stay under this, so total per-call VMEM (plus the resident
# weight, <= 1 MiB) stays far below the v5e 16 MiB scoped default.
ACT_BUDGET_BYTES = 4 << 20
ROW_TILE_HARD_CAP = 4096           # keep some grid depth for megacore sharding


def _pick_row_tile(m, k, n, budget_bytes=ACT_BUDGET_BYTES, hard_cap=ROW_TILE_HARD_CAP):
    """Largest row tile dividing m with a legal sublane dim (mult of 8 or == m),
    sized so double-buffered bf16 (m_tile*k input + m_tile*n output) fits budget."""
    cap = min(hard_cap, max(8, budget_bytes // (4 * (k + n))))   # 2 bufs * 2 B/elem
    if m <= cap:
        return m
    for t in range(cap, 0, -1):
        if m % t == 0 and t % 8 == 0:
            return t
    return m


def _pick_seq_tile(s, b, c, budget_bytes=ACT_BUDGET_BYTES, hard_cap=2048):
    """Row tile along S for the (B, S, C) pooling pass (double-buffered bf16)."""
    cap = min(hard_cap, max(8, budget_bytes // (4 * b * c)))
    if s <= cap:
        return s
    for t in range(cap, 0, -1):
        if s % t == 0 and t % 8 == 0:
            return t
    return s


# ------------------------------ Pallas kernels --------------------------------
def _matmul_act_kernel(x_ref, w_ref, o_ref, *, act):
    """(TM, K) @ (K, N) tile with optional fused activation (patch-embed / CAM)."""
    acc = jnp.dot(x_ref[...], w_ref[...], preferred_element_type=jnp.float32)
    if act == "gelu":
        # TODO(synk): PyTorch nn.GELU defaults to exact erf; tanh approximation is
        # used here (synthetic stand-in encoder, no checkpoint to match).
        acc = jax.nn.gelu(acc)
    elif act == "relu":
        acc = jnp.maximum(acc, 0.0)
    o_ref[...] = acc.astype(o_ref.dtype)


def matmul_act(x, w, act="none", out_dtype=jnp.bfloat16):
    """Row-tiled matmul: grid over M ("parallel"), weight VMEM-resident."""
    M, K = x.shape
    K2, N = w.shape
    assert K == K2
    tm = _pick_row_tile(M, K, N)
    return pl.pallas_call(
        functools.partial(_matmul_act_kernel, act=act),
        out_shape=jax.ShapeDtypeStruct((M, N), out_dtype),
        grid=(M // tm,),
        in_specs=[pl.BlockSpec((tm, K), lambda i: (i, 0)),
                  pl.BlockSpec((K, N), lambda i: (0, 0))],   # same block every step -> resident
        out_specs=pl.BlockSpec((tm, N), lambda i: (i, 0)),   # lane-dense (N is a multiple of 128)
        compiler_params=pltpu.CompilerParams(dimension_semantics=("parallel",)),
    )(x, w)


def _cls_head_kernel(feat_ref, w_ref, o_ref, pooled, *, batch):
    """Fused AdaptiveMaxPool2d(1) + 1x1-conv classifier (bias=False).

    feat_ref: (B, TS, C) tile of the last-stage feature map (S tiled, "arbitrary")
    w_ref:    (C, NC_PAD) classifier weight (zero-padded, lane-dense, VMEM-resident)
    o_ref:    (B, NC_PAD) resident output block
    pooled:   VMEM (B, C) f32 running-max scratch
    """
    s = pl.program_id(0)

    @pl.when(s == 0)
    def _():
        pooled[...] = jnp.full(pooled.shape, -jnp.inf, dtype=pooled.dtype)

    tile = feat_ref[...].astype(jnp.float32)                     # (B, TS, C)
    # static unroll over the (small) batch: per-b sublane-axis max (XLU slot, VALU-free)
    rows = [jnp.max(tile[b], axis=0, keepdims=True) for b in range(batch)]
    pooled[...] = jnp.maximum(pooled[...], jnp.concatenate(rows, axis=0))

    @pl.when(s == pl.num_programs(0) - 1)
    def _():
        # single B-row matmul on full 128 MXU columns, lane-dense store
        o_ref[...] = jnp.dot(pooled[...].astype(w_ref.dtype), w_ref[...],
                             preferred_element_type=jnp.float32)


def cls_head(feat, w_cls_pad, num_classes):
    B, S, C = feat.shape
    C2, NCp = w_cls_pad.shape
    assert C == C2
    ts = _pick_seq_tile(S, B, C)
    out = pl.pallas_call(
        functools.partial(_cls_head_kernel, batch=B),
        out_shape=jax.ShapeDtypeStruct((B, NCp), jnp.float32),
        grid=(S // ts,),
        in_specs=[pl.BlockSpec((B, ts, C), lambda s: (0, s, 0)),
                  pl.BlockSpec((C, NCp), lambda s: (0, 0))],
        out_specs=pl.BlockSpec((B, NCp), lambda s: (0, 0)),       # resident accumulator block
        scratch_shapes=[pltpu.VMEM((B, C), jnp.float32)],
        compiler_params=pltpu.CompilerParams(dimension_semantics=("arbitrary",)),
    )(feat, w_cls_pad)
    return out[:, :num_classes]                                   # cls.view(-1, num_classes)


# ------------------------------- plain-JAX glue --------------------------------
def patchify_nhwc(x_nhwc, p):
    """Non-overlapping space-to-depth, channels-last: (B,H,W,C) -> (B, S, p*p*C)."""
    B, H, W, C = x_nhwc.shape
    Hs, Ws = H // p, W // p
    x = x_nhwc.reshape(B, Hs, p, Ws, p, C).transpose(0, 1, 3, 2, 4, 5)
    return x.reshape(B, Hs * Ws, p * p * C), Hs, Ws


def encoder_forward(x_nchw, params):
    """Synthetic MiT stand-in: per-stage strided patch-embed (Pallas matmul) + GELU.

    # TODO(synk): real mix_transformer attention/MLP blocks are external modules
    # (source not provided); not reproduced here.
    """
    B = x_nchw.shape[0]
    cur = jnp.transpose(x_nchw, (0, 2, 3, 1)).astype(jnp.bfloat16)   # one NCHW->NHWC, then stay channels-last
    feats = []
    for w_pe, stride, dim in zip(params["patch_embed"], STRIDES, EMBED_DIMS):
        patches, Hs, Ws = patchify_nhwc(cur, stride)                 # (B, S, p*p*Cin)
        M = B * Hs * Ws
        y = matmul_act(patches.reshape(M, -1), w_pe, act="gelu")     # Pallas hot path, bf16 out
        cur = y.reshape(B, Hs, Ws, dim)                              # channels-last, no transpose
        feats.append((y.reshape(B, Hs * Ws, dim), Hs, Ws))
    return feats


def mitcls_seg_forward(x, params, cam_only=False, require_seg=False):
    """Mirrors Mitcls_seg.forward (pooling='gmp')."""
    feats = encoder_forward(x, params)
    feat4, H4, W4 = feats[-1]                    # _x[-1]: (B, S4, C4) channels-last bf16
    w_cls_pad = params["classifier_pad"]         # (C4, NC_PAD) bf16, zero-padded columns

    if cam_only:
        B = feat4.shape[0]
        cam = matmul_act(feat4.reshape(B * H4 * W4, -1), w_cls_pad,
                         act="none", out_dtype=jnp.float32)          # lane-dense (B*S4, 128)
        cam = cam.reshape(B, H4, W4, NC_PAD)[..., :NUM_CLASSES]
        # NHWC->NCHW kept only to match the PyTorch return layout (extra HBM pass).
        return cam.transpose(0, 3, 1, 2)

    cls = cls_head(feat4, w_cls_pad, NUM_CLASSES)                    # pooling -> classifier -> view
    outputs = [cls, []]
    if require_seg:
        # TODO(synk): SegFormerHead decoder + F.interpolate(bilinear) not implemented
        # (decoder source is external to this module).
        pass
    return outputs


def init_params(keys):
    patch_ws = []
    prev = IN_CHANS
    for i, (s, d) in enumerate(zip(STRIDES, EMBED_DIMS)):
        fan_in = prev * s * s
        w = jax.random.normal(keys[i], (fan_in, d), jnp.float32) / jnp.sqrt(fan_in)
        patch_ws.append(w.astype(jnp.bfloat16))
        prev = d
    # classifier: nn.Conv2d(C4, num_classes, 1, bias=False) stored as (C4, NC), padded to 128 lanes
    w_cls = 0.02 * jax.random.normal(keys[4], (EMBED_DIMS[-1], NUM_CLASSES), jnp.float32)
    w_cls_bf16 = w_cls.astype(jnp.bfloat16)
    w_cls_pad = jnp.zeros((EMBED_DIMS[-1], NC_PAD), jnp.bfloat16).at[:, :NUM_CLASSES].set(w_cls_bf16)
    return {"patch_embed": patch_ws,
            "classifier_pad": w_cls_pad,
            "classifier_ref": w_cls_bf16.astype(jnp.float32)}   # for the plain-JAX check


# ------------------------------------ main -------------------------------------
if __name__ == "__main__":
    key = jax.random.PRNGKey(0)
    keys = jax.random.split(key, 6)
    params = init_params(keys)

    # input: NCHW, spatial must be a multiple of 32 (total stride)
    x = jax.random.normal(keys[5], (2, IN_CHANS, 64, 64), jnp.float32)

    fwd = jax.jit(mitcls_seg_forward, static_argnames=("cam_only", "require_seg"))

    # default forward path (cam_only=False, require_seg=False)
    cls_out, _ = fwd(x, params)
    cls_out = jax.block_until_ready(cls_out)
    assert cls_out.shape == (2, NUM_CLASSES)

    # cam_only path
    cam = jax.block_until_ready(fwd(x, params, cam_only=True))
    assert cam.shape == (2, NUM_CLASSES, 2, 2)

    # correctness checks vs plain JAX (same bf16-cast weights, f32 math)
    feat4, H4, W4 = encoder_forward(x, params)[-1]
    w_ref = params["classifier_ref"]
    ref_cls = jnp.max(feat4.astype(jnp.float32), axis=1) @ w_ref
    assert jnp.allclose(cls_out, ref_cls, rtol=1e-2, atol=1e-2)

    ref_cam = jnp.einsum("bsc,cn->bsn", feat4.astype(jnp.float32), w_ref)
    ref_cam = ref_cam.reshape(2, H4, W4, NUM_CLASSES).transpose(0, 3, 1, 2)
    assert jnp.allclose(cam, ref_cam, rtol=1e-2, atol=1e-2)

    print("KERNEL_OK")
</pallas_src>

<mosaic_0001>
module attributes {stable_mosaic.version = 11 : i64} {
  func.func @_matmul_act_kernel(%arg0: i32, %arg1: memref<512x48xbf16, #tpu.memory_space<vmem>>, %arg2: memref<48x128xbf16, #tpu.memory_space<vmem>>, %arg3: memref<512x128xbf16, #tpu.memory_space<vmem>>) attributes {dimension_semantics = [#tpu.dimension_semantics<parallel>], iteration_bounds = array<i64: 1>, scalar_prefetch = 0 : i64, scratch_operands = 0 : i64, tpu.core_type = #tpu.core_type<tc>, window_params = [{transform_indices = @transform_0, window_bounds = array<i64: 512, 48>}, {pipeline_mode = #tpu.pipeline_mode<synchronous>, transform_indices = @transform_1, window_bounds = array<i64: 48, 128>}, {transform_indices = @transform_2, window_bounds = array<i64: 512, 128>}]} {
    %c0 = arith.constant 0 : index
    %c0_0 = arith.constant 0 : index
    %0 = vector.load %arg1[%c0, %c0_0] : memref<512x48xbf16, #tpu.memory_space<vmem>>, vector<512x48xbf16>
    %c0_1 = arith.constant 0 : index
    %c0_2 = arith.constant 0 : index
    %1 = vector.load %arg2[%c0_1, %c0_2] : memref<48x128xbf16, #tpu.memory_space<vmem>>, vector<48x128xbf16>
    %cst = arith.constant dense<0.000000e+00> : vector<512x128xf32>
    %2 = tpu.matmul %0, %1, %cst {dimension_numbers = #tpu.dot_dimension_numbers<[1], [0], [0], [1], [0, 0, 1, 1], [], []>} : vector<512x48xbf16>, vector<48x128xbf16>, vector<512x128xf32> -> vector<512x128xf32>
    %3 = arith.mulf %2, %2 : vector<512x128xf32>
    %4 = arith.mulf %2, %3 : vector<512x128xf32>
    %cst_3 = arith.constant 4.471500e-02 : f32
    %5 = vector.broadcast %cst_3 : f32 to vector<512x128xf32>
    %6 = arith.mulf %5, %4 : vector<512x128xf32>
    %7 = arith.addf %2, %6 : vector<512x128xf32>
    %cst_4 = arith.constant 0.797884583 : f32
    %8 = vector.broadcast %cst_4 : f32 to vector<512x128xf32>
    %9 = arith.mulf %8, %7 : vector<512x128xf32>
    %10 = math.tanh %9 : vector<512x128xf32>
    %cst_5 = arith.constant 1.000000e+00 : f32
    %11 = vector.broadcast %cst_5 : f32 to vector<512x128xf32>
    %12 = arith.addf %11, %10 : vector<512x128xf32>
    %cst_6 = arith.constant 5.000000e-01 : f32
    %13 = vector.broadcast %cst_6 : f32 to vector<512x128xf32>
    %14 = arith.mulf %13, %12 : vector<512x128xf32>
    %15 = arith.mulf %2, %14 : vector<512x128xf32>
    %16 = arith.truncf %15 : vector<512x128xf32> to vector<512x128xbf16>
    %c0_7 = arith.constant 0 : index
    %c0_8 = arith.constant 0 : index
    %17 = vector.load %arg3[%c0_7, %c0_8] : memref<512x128xbf16, #tpu.memory_space<vmem>>, vector<512x128xbf16>
    tpu.vector_store %arg3[%c0_7, %c0_8], %16 {strides = array<i32>} : memref<512x128xbf16, #tpu.memory_space<vmem>>, vector<512x128xbf16>,
    return
  }
  func.func @transform_0(%arg0: i32) -> (i32, i32) {
    %c0_i32 = arith.constant 0 : i32
    %c0_i32_0 = arith.constant 0 : i32
    return %arg0, %c0_i32 : i32, i32
  }
  func.func @transform_1(%arg0: i32) -> (i32, i32) {
    %c0_i32 = arith.constant 0 : i32
    %c0_i32_0 = arith.constant 0 : i32
    %c0_i32_1 = arith.constant 0 : i32
    return %c0_i32, %c0_i32_0 : i32, i32
  }
  func.func @transform_2(%arg0: i32) -> (i32, i32) {
    %c0_i32 = arith.constant 0 : i32
    %c0_i32_0 = arith.constant 0 : i32
    return %arg0, %c0_i32 : i32, i32
  }
}

module attributes {stable_mosaic.version = 11 : i64} {
  func.func @_matmul_act_kernel(%arg0: i32, %arg1: memref<128x512xbf16, #tpu.memory_space<vmem>>, %arg2: memref<512x128xbf16, #tpu.memory_space<vmem>>, %arg3: memref<128x128xbf16, #tpu.memory_space<vmem>>) attributes {dimension_semantics = [#tpu.dimension_semantics<parallel>], iteration_bounds = array<i64: 1>, scalar_prefetch = 0 : i64, scratch_operands = 0 : i64, tpu.core_type = #tpu.core_type<tc>, window_params = [{transform_indices = @transform_0, window_bounds = array<i64: 128, 512>}, {pipeline_mode = #tpu.pipeline_mode<synchronous>, transform_indices = @transform_1, window_bounds = array<i64: 512, 128>}, {transform_indices = @transform_2, window_bounds = array<i64: 128, 128>}]} {
    %c0 = arith.constant 0 : index
    %c0_0 = arith.constant 0 : index
    %0 = vector.load %arg1[%c0, %c0_0] : memref<128x512xbf16, #tpu.memory_space<vmem>>, vector<128x512xbf16>
    %c0_1 = arith.constant 0 : index
    %c0_2 = arith.constant 0 : index
    %1 = vector.load %arg2[%c0_1, %c0_2] : memref<512x128xbf16, #tpu.memory_space<vmem>>, vector<512x128xbf16>
    %cst = arith.constant dense<0.000000e+00> : vector<128x128xf32>
    %2 = tpu.matmul %0, %1, %cst {dimension_numbers = #tpu.dot_dimension_numbers<[1], [0], [0], [1], [0, 0, 1, 1], [], []>} : vector<128x512xbf16>, vector<512x128xbf16>, vector<128x128xf32> -> vector<128x128xf32>
    %3 = arith.mulf %2, %2 : vector<128x128xf32>
    %4 = arith.mulf %2, %3 : vector<128x128xf32>
    %cst_3 = arith.constant 4.471500e-02 : f32
    %5 = vector.broadcast %cst_3 : f32 to vector<128x128xf32>
    %6 = arith.mulf %5, %4 : vector<128x128xf32>
    %7 = arith.addf %2, %6 : vector<128x128xf32>
    %cst_4 = arith.constant 0.797884583 : f32
    %8 = vector.broadcast %cst_4 : f32 to vector<128x128xf32>
    %9 = arith.mulf %8, %7 : vector<128x128xf32>
    %10 = math.tanh %9 : vector<128x128xf32>
    %cst_5 = arith.constant 1.000000e+00 : f32
    %11 = vector.broadcast %cst_5 : f32 to vector<128x128xf32>
    %12 = arith.addf %11, %10 : vector<128x128xf32>
    %cst_6 = arith.constant 5.000000e-01 : f32
    %13 = vector.broadcast %cst_6 : f32 to vector<128x128xf32>
    %14 = arith.mulf %13, %12 : vector<128x128xf32>
    %15 = arith.mulf %2, %14 : vector<128x128xf32>
    %16 = arith.truncf %15 : vector<128x128xf32> to vector<128x128xbf16>
    %c0_7 = arith.constant 0 : index
    %c0_8 = arith.constant 0 : index
    %17 = vector.load %arg3[%c0_7, %c0_8] : memref<128x128xbf16, #tpu.memory_space<vmem>>, vector<128x128xbf16>
    tpu.vector_store %arg3[%c0_7, %c0_8], %16 {strides = array<i32>} : memref<128x128xbf16, #tpu.memory_space<vmem>>, vector<128x128xbf16>,
    return
  }
  func.func @transform_0(%arg0: i32) -> (i32, i32) {
    %c0_i32 = arith.constant 0 : i32
    %c0_i32_0 = arith.constant 0 : i32
    return %arg0, %c0_i32 : i32, i32
  }
  func.func @transform_1(%arg0: i32) -> (i32, i32) {
    %c0_i32 = arith.constant 0 : i32
    %c0_i32_0 = arith.constant 0 : i32
    %c0_i32_1 = arith.constant 0 : i32
    return %c0_i32, %c0_i32_0 : i32, i32
  }
  func.func @transform_2(%arg0: i32) -> (i32, i32) {
    %c0_i32 = arith.constant 0 : i32
    %c0_i32_0 = arith.constant 0 : i32
    return %arg0, %c0_i32 : i32, i32
  }
}

module attributes {stable_mosaic.version = 11 : i64} {
  func.func @_matmul_act_kernel(%arg0: i32, %arg1: memref<32x512xbf16, #tpu.memory_space<vmem>>, %arg2: memref<512x256xbf16, #tpu.memory_space<vmem>>, %arg3: memref<32x256xbf16, #tpu.memory_space<vmem>>) attributes {dimension_semantics = [#tpu.dimension_semantics<parallel>], iteration_bounds = array<i64: 1>, scalar_prefetch = 0 : i64, scratch_operands = 0 : i64, tpu.core_type = #tpu.core_type<tc>, window_params = [{transform_indices = @transform_0, window_bounds = array<i64: 32, 512>}, {pipeline_mode = #tpu.pipeline_mode<synchronous>, transform_indices = @transform_1, window_bounds = array<i64: 512, 256>}, {transform_indices = @transform_2, window_bounds = array<i64: 32, 256>}]} {
    %c0 = arith.constant 0 : index
    %c0_0 = arith.constant 0 : index
    %0 = vector.load %arg1[%c0, %c0_0] : memref<32x512xbf16, #tpu.memory_space<vmem>>, vector<32x512xbf16>
    %c0_1 = arith.constant 0 : index
    %c0_2 = arith.constant 0 : index
    %1 = vector.load %arg2[%c0_1, %c0_2] : memref<512x256xbf16, #tpu.memory_space<vmem>>, vector<512x256xbf16>
    %cst = arith.constant dense<0.000000e+00> : vector<32x256xf32>
    %2 = tpu.matmul %0, %1, %cst {dimension_numbers = #tpu.dot_dimension_numbers<[1], [0], [0], [1], [0, 0, 1, 1], [], []>} : vector<32x512xbf16>, vector<512x256xbf16>, vector<32x256xf32> -> vector<32x256xf32>
    %3 = arith.mulf %2, %2 : vector<32x256xf32>
    %4 = arith.mulf %2, %3 : vector<32x256xf32>
    %cst_3 = arith.constant 4.471500e-02 : f32
    %5 = vector.broadcast %cst_3 : f32 to vector<32x256xf32>
    %6 = arith.mulf %5, %4 : vector<32x256xf32>
    %7 = arith.addf %2, %6 : vector<32x256xf32>
    %cst_4 = arith.constant 0.797884583 : f32
    %8 = vector.broadcast %cst_4 : f32 to vector<32x256xf32>
    %9 = arith.mulf %8, %7 : vector<32x256xf32>
    %10 = math.tanh %9 : vector<32x256xf32>
    %cst_5 = arith.constant 1.000000e+00 : f32
    %11 = vector.broadcast %cst_5 : f32 to vector<32x256xf32>
    %12 = arith.addf %11, %10 : vector<32x256xf32>
    %cst_6 = arith.constant 5.000000e-01 : f32
    %13 = vector.broadcast %cst_6 : f32 to vector<32x256xf32>
    %14 = arith.mulf %13, %12 : vector<32x256xf32>
    %15 = arith.mulf %2, %14 : vector<32x256xf32>
    %16 = arith.truncf %15 : vector<32x256xf32> to vector<32x256xbf16>
    %c0_7 = arith.constant 0 : index
    %c0_8 = arith.constant 0 : index
    %17 = vector.load %arg3[%c0_7, %c0_8] : memref<32x256xbf16, #tpu.memory_space<vmem>>, vector<32x256xbf16>
    tpu.vector_store %arg3[%c0_7, %c0_8], %16 {strides = array<i32>} : memref<32x256xbf16, #tpu.memory_space<vmem>>, vector<32x256xbf16>,
    return
  }
  func.func @transform_0(%arg0: i32) -> (i32, i32) {
    %c0_i32 = arith.constant 0 : i32
    %c0_i32_0 = arith.constant 0 : i32
    return %arg0, %c0_i32 : i32, i32
  }
  func.func @transform_1(%arg0: i32) -> (i32, i32) {
    %c0_i32 = arith.constant 0 : i32
    %c0_i32_0 = arith.constant 0 : i32
    %c0_i32_1 = arith.constant 0 : i32
    return %c0_i32, %c0_i32_0 : i32, i32
  }
  func.func @transform_2(%arg0: i32) -> (i32, i32) {
    %c0_i32 = arith.constant 0 : i32
    %c0_i32_0 = arith.constant 0 : i32
    return %arg0, %c0_i32 : i32, i32
  }
}

module attributes {stable_mosaic.version = 11 : i64} {
  func.func @_matmul_act_kernel(%arg0: i32, %arg1: memref<8x1024xbf16, #tpu.memory_space<vmem>>, %arg2: memref<1024x256xbf16, #tpu.memory_space<vmem>>, %arg3: memref<8x256xbf16, #tpu.memory_space<vmem>>) attributes {dimension_semantics = [#tpu.dimension_semantics<parallel>], iteration_bounds = array<i64: 1>, scalar_prefetch = 0 : i64, scratch_operands = 0 : i64, tpu.core_type = #tpu.core_type<tc>, window_params = [{transform_indices = @transform_0, window_bounds = array<i64: 8, 1024>}, {pipeline_mode = #tpu.pipeline_mode<synchronous>, transform_indices = @transform_1, window_bounds = array<i64: 1024, 256>}, {transform_indices = @transform_2, window_bounds = array<i64: 8, 256>}]} {
    %c0 = arith.constant 0 : index
    %c0_0 = arith.constant 0 : index
    %0 = vector.load %arg1[%c0, %c0_0] : memref<8x1024xbf16, #tpu.memory_space<vmem>>, vector<8x1024xbf16>
    %c0_1 = arith.constant 0 : index
    %c0_2 = arith.constant 0 : index
    %1 = vector.load %arg2[%c0_1, %c0_2] : memref<1024x256xbf16, #tpu.memory_space<vmem>>, vector<1024x256xbf16>
    %cst = arith.constant dense<0.000000e+00> : vector<8x256xf32>
    %2 = tpu.matmul %0, %1, %cst {dimension_numbers = #tpu.dot_dimension_numbers<[1], [0], [0], [1], [0, 0, 1, 1], [], []>} : vector<8x1024xbf16>, vector<1024x256xbf16>, vector<8x256xf32> -> vector<8x256xf32>
    %3 = arith.mulf %2, %2 : vector<8x256xf32>
    %4 = arith.mulf %2, %3 : vector<8x256xf32>
    %cst_3 = arith.constant 4.471500e-02 : f32
    %5 = vector.broadcast %cst_3 : f32 to vector<8x256xf32>
    %6 = arith.mulf %5, %4 : vector<8x256xf32>
    %7 = arith.addf %2, %6 : vector<8x256xf32>
    %cst_4 = arith.constant 0.797884583 : f32
    %8 = vector.broadcast %cst_4 : f32 to vector<8x256xf32>
    %9 = arith.mulf %8, %7 : vector<8x256xf32>
    %10 = math.tanh %9 : vector<8x256xf32>
    %cst_5 = arith.constant 1.000000e+00 : f32
    %11 = vector.broadcast %cst_5 : f32 to vector<8x256xf32>
    %12 = arith.addf %11, %10 : vector<8x256xf32>
    %cst_6 = arith.constant 5.000000e-01 : f32
    %13 = vector.broadcast %cst_6 : f32 to vector<8x256xf32>
    %14 = arith.mulf %13, %12 : vector<8x256xf32>
    %15 = arith.mulf %2, %14 : vector<8x256xf32>
    %16 = arith.truncf %15 : vector<8x256xf32> to vector<8x256xbf16>
    %c0_7 = arith.constant 0 : index
    %c0_8 = arith.constant 0 : index
    %17 = vector.load %arg3[%c0_7, %c0_8] : memref<8x256xbf16, #tpu.memory_space<vmem>>, vector<8x256xbf16>
    tpu.vector_store %arg3[%c0_7, %c0_8], %16 {strides = array<i32>} : memref<8x256xbf16, #tpu.memory_space<vmem>>, vector<8x256xbf16>,
    return
  }
  func.func @transform_0(%arg0: i32) -> (i32, i32) {
    %c0_i32 = arith.constant 0 : i32
    %c0_i32_0 = arith.constant 0 : i32
    return %arg0, %c0_i32 : i32, i32
  }
  func.func @transform_1(%arg0: i32) -> (i32, i32) {
    %c0_i32 = arith.constant 0 : i32
    %c0_i32_0 = arith.constant 0 : i32
    %c0_i32_1 = arith.constant 0 : i32
    return %c0_i32, %c0_i32_0 : i32, i32
  }
  func.func @transform_2(%arg0: i32) -> (i32, i32) {
    %c0_i32 = arith.constant 0 : i32
    %c0_i32_0 = arith.constant 0 : i32
    return %arg0, %c0_i32 : i32, i32
  }
}

module attributes {stable_mosaic.version = 11 : i64} {
  func.func @_cls_head_kernel(%arg0: i32, %arg1: memref<2x4x256xbf16, #tpu.memory_space<vmem>>, %arg2: memref<256x128xbf16, #tpu.memory_space<vmem>>, %arg3: memref<2x128xf32, #tpu.memory_space<vmem>>, %arg4: memref<2x256xf32, #tpu.memory_space<vmem>>) attributes {dimension_semantics = [#tpu.dimension_semantics<arbitrary>], iteration_bounds = array<i64: 1>, scalar_prefetch = 0 : i64, scratch_operands = 1 : i64, tpu.core_type = #tpu.core_type<tc>, window_params = [{transform_indices = @transform_0, window_bounds = array<i64: 2, 4, 256>}, {pipeline_mode = #tpu.pipeline_mode<synchronous>, transform_indices = @transform_1, window_bounds = array<i64: 256, 128>}, {pipeline_mode = #tpu.pipeline_mode<synchronous>, transform_indices = @transform_2, window_bounds = array<i64: 2, 128>}]} {
    %c0_i32 = arith.constant 0 : i32
    %0 = arith.cmpi eq, %arg0, %c0_i32 : i32
    %1 = arith.extui %0 : i1 to i32
    %c0_i32_0 = arith.constant 0 : i32
    %2 = arith.cmpi ne, %1, %c0_i32_0 : i32
    scf.if %2 {
      %cst_10 = arith.constant 0xFF800000 : f32
      %20 = vector.broadcast %cst_10 : f32 to vector<2x256xf32>
      %c0_11 = arith.constant 0 : index
      %c0_12 = arith.constant 0 : index
      %21 = vector.load %arg4[%c0_11, %c0_12] : memref<2x256xf32, #tpu.memory_space<vmem>>, vector<2x256xf32>
      tpu.vector_store %arg4[%c0_11, %c0_12], %20 {strides = array<i32>} : memref<2x256xf32, #tpu.memory_space<vmem>>, vector<2x256xf32>,
    } else {
    }
    %c0 = arith.constant 0 : index
    %c0_1 = arith.constant 0 : index
    %c0_2 = arith.constant 0 : index
    %3 = vector.load %arg1[%c0, %c0_1, %c0_2] : memref<2x4x256xbf16, #tpu.memory_space<vmem>>, vector<2x4x256xbf16>
    %4 = arith.extf %3 : vector<2x4x256xbf16> to vector<2x4x256xf32>
    %5 = vector.extract_strided_slice %4 {offsets = [0, 0, 0], sizes = [1, 4, 256], strides = [1, 1, 1]} : vector<2x4x256xf32> to vector<1x4x256xf32>
    %6 = vector.shape_cast %5 : vector<1x4x256xf32> to vector<4x256xf32>
    %cst = arith.constant dense<0xFF800000> : vector<256xf32>
    %7 = vector.multi_reduction <maximumf>, %6, %cst [0] : vector<4x256xf32> to vector<256xf32>
    %8 = vector.shape_cast %7 : vector<256xf32> to vector<1x256xf32>
    %9 = vector.extract_strided_slice %4 {offsets = [1, 0, 0], sizes = [1, 4, 256], strides = [1, 1, 1]} : vector<2x4x256xf32> to vector<1x4x256xf32>
    %10 = vector.shape_cast %9 : vector<1x4x256xf32> to vector<4x256xf32>
    %cst_3 = arith.constant dense<0xFF800000> : vector<256xf32>
    %11 = vector.multi_reduction <maximumf>, %10, %cst_3 [0] : vector<4x256xf32> to vector<256xf32>
    %12 = vector.shape_cast %11 : vector<256xf32> to vector<1x256xf32>
    %c0_4 = arith.constant 0 : index
    %c0_5 = arith.constant 0 : index
    %13 = vector.load %arg4[%c0_4, %c0_5] : memref<2x256xf32, #tpu.memory_space<vmem>>, vector<2x256xf32>
    %14 = tpu.concatenate %8, %12 in 0 : vector<1x256xf32>, vector<1x256xf32> -> vector<2x256xf32>
    %15 = arith.maximumf %13, %14 : vector<2x256xf32>
    %c0_6 = arith.constant 0 : index
    %c0_7 = arith.constant 0 : index
    %16 = vector.load %arg4[%c0_6, %c0_7] : memref<2x256xf32, #tpu.memory_space<vmem>>, vector<2x256xf32>
    tpu.vector_store %arg4[%c0_6, %c0_7], %15 {strides = array<i32>} : memref<2x256xf32, #tpu.memory_space<vmem>>, vector<2x256xf32>,
    %c0_i32_8 = arith.constant 0 : i32
    %17 = arith.cmpi eq, %arg0, %c0_i32_8 : i32
    %18 = arith.extui %17 : i1 to i32
    %c0_i32_9 = arith.constant 0 : i32
    %19 = arith.cmpi ne, %18, %c0_i32_9 : i32
    scf.if %19 {
      %c0_10 = arith.constant 0 : index
      %c0_11 = arith.constant 0 : index
      %20 = vector.load %arg4[%c0_10, %c0_11] : memref<2x256xf32, #tpu.memory_space<vmem>>, vector<2x256xf32>
      %21 = arith.truncf %20 : vector<2x256xf32> to vector<2x256xbf16>
      %c0_12 = arith.constant 0 : index
      %c0_13 = arith.constant 0 : index
      %22 = vector.load %arg2[%c0_12, %c0_13] : memref<256x128xbf16, #tpu.memory_space<vmem>>, vector<256x128xbf16>
      %cst_14 = arith.constant dense<0.000000e+00> : vector<2x128xf32>
      %23 = tpu.matmul %21, %22, %cst_14 {dimension_numbers = #tpu.dot_dimension_numbers<[1], [0], [0], [1], [0, 0, 1, 1], [], []>} : vector<2x256xbf16>, vector<256x128xbf16>, vector<2x128xf32> -> vector<2x128xf32>
      %c0_15 = arith.constant 0 : index
      %c0_16 = arith.constant 0 : index
      %24 = vector.load %arg3[%c0_15, %c0_16] : memref<2x128xf32, #tpu.memory_space<vmem>>, vector<2x128xf32>
      tpu.vector_store %arg3[%c0_15, %c0_16], %23 {strides = array<i32>} : memref<2x128xf32, #tpu.memory_space<vmem>>, vector<2x128xf32>,
    } else {
    }
    return
  }
  func.func @transform_0(%arg0: i32) -> (i32, i32, i32) {
    %c0_i32 = arith.constant 0 : i32
    %c0_i32_0 = arith.constant 0 : i32
    %c0_i32_1 = arith.constant 0 : i32
    return %c0_i32, %arg0, %c0_i32_0 : i32, i32, i32
  }
  func.func @transform_1(%arg0: i32) -> (i32, i32) {
    %c0_i32 = arith.constant 0 : i32
    %c0_i32_0 = arith.constant 0 : i32
    %c0_i32_1 = arith.constant 0 : i32
    return %c0_i32, %c0_i32_0 : i32, i32
  }
  func.func @transform_2(%arg0: i32) -> (i32, i32) {
    %c0_i32 = arith.constant 0 : i32
    %c0_i32_0 = arith.constant 0 : i32
    %c0_i32_1 = arith.constant 0 : i32
    return %c0_i32, %c0_i32_0 : i32, i32
  }
}

</mosaic_0001>

<llo_original>
// kernel: mitcls_seg_forward.5
$region0: #{mitcls_seg_forward.5}
  #allocation0 [shape = 'u32[]', space=smem, size = 0x4, offset = 0x4, fixed_abs, tag = 'smem constant byte address 0x4 - core index']
  #allocation1 [shape = 'u32[144,128]{1,0:T(1,128)}', space=vmem, size = 0x12000, scoped, tag = 'internal scratch']
  %s0 = inlined_call_operand.vmem [shape: bf16[512,48], index: 0, kind: input, shape index: {}]
  %s1 = inlined_call_operand.vmem [shape: bf16[48,128], index: 1, kind: input, shape index: {}]
  %s2 = inlined_call_operand.vmem [shape: bf16[512,128], index: 2, kind: output, shape index: {}]
  %s3 = sld [smem:[#allocation0]]
  $region18: #{mitcls_seg_forward.5} parent=0
    _
  %s5 = ssub.s32 1, %s3
  %s6 = scalar_select 0, %s5, %s3
  // Predicated region
  $region2: #{mitcls_seg_forward.5} parent=0 // pred_check
    _
  $region3: #{mitcls_seg_forward.5} parent=0 // pred_check_branch
    %8 = sbr.rel (0) target = $region5
  $region4: #{mitcls_seg_forward.5} parent=0 // pred_region
    _
  $region5: #{mitcls_seg_forward.5} parent=0 // pred_fallthru
    _
  // Predicated region
  $region6: #{mitcls_seg_forward.5} parent=0 // pred_check
    _
  $region7: #{mitcls_seg_forward.5} parent=0 // pred_check_branch
    %10 = sbr.rel (0) target = $region9
  $region8: #{mitcls_seg_forward.5} parent=0 // pred_region
    _
  $region9: #{mitcls_seg_forward.5} parent=0 // pred_fallthru
    _
  %v12 = vld [vmem:[%s0] sm:$0xf]
  %v13 = vld [vmem:[%s0 + $0x4] sm:$0xf]
  %v14 = vld [vmem:[%s0 + $0x8] sm:$0xf]
  %v15 = vld [vmem:[%s0 + $0xc] sm:$0xf]
  %v16 = vld [vmem:[%s0 + $0x10] sm:$0xf]
  %v17 = vld [vmem:[%s0 + $0x14] sm:$0xf]
  %v18 = vld [vmem:[%s0 + $0x18] sm:$0xf]
  %v19 = vld [vmem:[%s0 + $0x1c] sm:$0xf]
  %v20 = vld [vmem:[%s0 + $0x20] sm:$0xf]
  %v21 = vld [vmem:[%s0 + $0x24] sm:$0xf]
  %v22 = vld [vmem:[%s0 + $0x28] sm:$0xf]
  %v23 = vld [vmem:[%s0 + $0x2c] sm:$0xf]
  %v24 = vld [vmem:[%s0 + $0x30] sm:$0xf]
  %v25 = vld [vmem:[%s0 + $0x34] sm:$0xf]
  %v26 = vld [vmem:[%s0 + $0x38] sm:$0xf]
  %v27 = vld [vmem:[%s0 + $0x3c] sm:$0xf]
  %v28 = vld [vmem:[%s0 + $0x40] sm:$0xf]
  %v29 = vld [vmem:[%s0 + $0x44] sm:$0xf]
  %v30 = vld [vmem:[%s0 + $0x48] sm:$0xf]
  %v31 = vld [vmem:[%s0 + $0x4c] sm:$0xf]
  %v32 = vld [vmem:[%s0 + $0x50] sm:$0xf]
  %v33 = vld [vmem:[%s0 + $0x54] sm:$0xf]
  %v34 = vld [vmem:[%s0 + $0x58] sm:$0xf]
  %v35 = vld [vmem:[%s0 + $0x5c] sm:$0xf]
  %v36 = vld [vmem:[%s0 + $0x60] sm:$0xf]
  %v37 = vld [vmem:[%s0 + $0x64] sm:$0xf]
  %v38 = vld [vmem:[%s0 + $0x68] sm:$0xf]
  %v39 = vld [vmem:[%s0 + $0x6c] sm:$0xf]
  %v40 = vld [vmem:[%s0 + $0x70] sm:$0xf]
  %v41 = vld [vmem:[%s0 + $0x74] sm:$0xf]
  %v42 = vld [vmem:[%s0 + $0x78] sm:$0xf]
  %v43 = vld [vmem:[%s0 + $0x7c] sm:$0xf]
  %v44 = vld [vmem:[%s0 + $0x80] sm:$0xf]
  %v45 = vld [vmem:[%s0 + $0x84] sm:$0xf]
  %v46 = vld [vmem:[%s0 + $0x88] sm:$0xf]
  %v47 = vld [vmem:[%s0 + $0x8c] sm:$0xf]
  %v48 = vld [vmem:[%s0 + $0x90] sm:$0xf]
  %v49 = vld [vmem:[%s0 + $0x94] sm:$0xf]
  %v50 = vld [vmem:[%s0 + $0x98] sm:$0xf]
  %v51 = vld [vmem:[%s0 + $0x9c] sm:$0xf]
  %v52 = vld [vmem:[%s0 + $0xa0] sm:$0xf]
  %v53 = vld [vmem:[%s0 + $0xa4] sm:$0xf]
  %v54 = vld [vmem:[%s0 + $0xa8] sm:$0xf]
  %v55 = vld [vmem:[%s0 + $0xac] sm:$0xf]
  %v56 = vld [vmem:[%s0 + $0xb0] sm:$0xf]
  %v57 = vld [vmem:[%s0 + $0xb4] sm:$0xf]
  %v58 = vld [vmem:[%s0 + $0xb8] sm:$0xf]
  %v59 = vld [vmem:[%s0 + $0xbc] sm:$0xf]
  %v60 = vld [vmem:[%s0 + $0xc0] sm:$0xf]
  %v61 = vld [vmem:[%s0 + $0xc4] sm:$0xf]
  %v62 = vld [vmem:[%s0 + $0xc8] sm:$0xf]
  %v63 = vld [vmem:[%s0 + $0xcc] sm:$0xf]
  %v64 = vld [vmem:[%s0 + $0xd0] sm:$0xf]
  %v65 = vld [vmem:[%s0 + $0xd4] sm:$0xf]
  %v66 = vld [vmem:[%s0 + $0xd8] sm:$0xf]
  %v67 = vld [vmem:[%s0 + $0xdc] sm:$0xf]
  %v68 = vld [vmem:[%s0 + $0xe0] sm:$0xf]
  %v69 = vld [vmem:[%s0 + $0xe4] sm:$0xf]
  %v70 = vld [vmem:[%s0 + $0xe8] sm:$0xf]
  %v71 = vld [vmem:[%s0 + $0xec] sm:$0xf]
  %v72 = vld [vmem:[%s0 + $0xf0] sm:$0xf]
  %v73 = vld [vmem:[%s0 + $0xf4] sm:$0xf]
  %v74 = vld [vmem:[%s0 + $0xf8] sm:$0xf]
  %v75 = vld [vmem:[%s0 + $0xfc] sm:$0xf]
  %v76 = vld [vmem:[%s1] sm:$0xf]
  %v77 = vld [vmem:[%s1 + $0x4] sm:$0xf]
  %v78 = vld [vmem:[%s1 + $0x8] sm:$0xf]
  %v79 = vld [vmem:[%s1 + $0xc] sm:$0xf]
  %v80 = vld [vmem:[%s1 + $0x10] sm:$0xf]
  %v81 = vld [vmem:[%s1 + $0x14] sm:$0xf]
  %v146 = vunpack.c.l.b16 %v12
  %v147 = vunpack.c.l.b16 %v13
  %v148 = vunpack.c.l.b16 %v14
  %v149 = vunpack.c.l.b16 %v15
  %v150 = vunpack.c.l.b16 %v16
  %v151 = vunpack.c.l.b16 %v17
  %v152 = vunpack.c.l.b16 %v18
  %v153 = vunpack.c.l.b16 %v19
  %v154 = vunpack.c.l.b16 %v20
  %v155 = vunpack.c.l.b16 %v21
  %v156 = vunpack.c.l.b16 %v22
  %v157 = vunpack.c.l.b16 %v23
  %v158 = vunpack.c.l.b16 %v24
  %v159 = vunpack.c.l.b16 %v25
  %v160 = vunpack.c.l.b16 %v26
  %v161 = vunpack.c.l.b16 %v27
  %v162 = vunpack.c.l.b16 %v28
  %v163 = vunpack.c.l.b16 %v29
  %v164 = vunpack.c.l.b16 %v30
  %v165 = vunpack.c.l.b16 %v31
  %v166 = vunpack.c.l.b16 %v32
  %v167 = vunpack.c.l.b16 %v33
  %v168 = vunpack.c.l.b16 %v34
  %v169 = vunpack.c.l.b16 %v35
  %v170 = vunpack.c.l.b16 %v36
  %v171 = vunpack.c.l.b16 %v37
  %v172 = vunpack.c.l.b16 %v38
  %v173 = vunpack.c.l.b16 %v39
  %v174 = vunpack.c.l.b16 %v40
  %v175 = vunpack.c.l.b16 %v41
  %v176 = vunpack.c.l.b16 %v42
  %v177 = vunpack.c.l.b16 %v43
  %v178 = vunpack.c.l.b16 %v44
  %v179 = vunpack.c.l.b16 %v45
  %v180 = vunpack.c.l.b16 %v46
  %v181 = vunpack.c.l.b16 %v47
  %v182 = vunpack.c.l.b16 %v48
  %v183 = vunpack.c.l.b16 %v49
  %v184 = vunpack.c.l.b16 %v50
  %v185 = vunpack.c.l.b16 %v51
  %v186 = vunpack.c.l.b16 %v52
  %v187 = vunpack.c.l.b16 %v53
  %v188 = vunpack.c.l.b16 %v54
  %v189 = vunpack.c.l.b16 %v55
  %v190 = vunpack.c.l.b16 %v56
  %v191 = vunpack.c.l.b16 %v57
  %v192 = vunpack.c.l.b16 %v58
  %v193 = vunpack.c.l.b16 %v59
  %v194 = vunpack.c.l.b16 %v60
  %v195 = vunpack.c.l.b16 %v61
  %v196 = vunpack.c.l.b16 %v62
  %v197 = vunpack.c.l.b16 %v63
  %v198 = vunpack.c.l.b16 %v64
  %v199 = vunpack.c.l.b16 %v65
  %v200 = vunpack.c.l.b16 %v66
  %v201 = vunpack.c.l.b16 %v67
  %v202 = vunpack.c.l.b16 %v68
  %v203 = vunpack.c.l.b16 %v69
  %v204 = vunpack.c.l.b16 %v70
  %v205 = vunpack.c.l.b16 %v71
  %v206 = vunpack.c.l.b16 %v72
  %v207 = vunpack.c.l.b16 %v73
  %v208 = vunpack.c.l.b16 %v74
  %v209 = vunpack.c.l.b16 %v75
  %v210 = vpack.c.b16 %v147, %v146
  %v211 = vpack.c.b16 %v149, %v148
  %v212 = vpack.c.b16 %v151, %v150
  %v213 = vpack.c.b16 %v153, %v152
  %v214 = vpack.c.b16 %v155, %v154
  %v215 = vpack.c.b16 %v157, %v156
  %v216 = vpack.c.b16 %v159, %v158
  %v217 = vpack.c.b16 %v161, %v160
  %v218 = vpack.c.b16 %v163, %v162
  %v219 = vpack.c.b16 %v165, %v164
  %v220 = vpack.c.b16 %v167, %v166
  %v221 = vpack.c.b16 %v169, %v168
  %v222 = vpack.c.b16 %v171, %v170
  %v223 = vpack.c.b16 %v173, %v172
  %v224 = vpack.c.b16 %v175, %v174
  %v225 = vpack.c.b16 %v177, %v176
  %v226 = vpack.c.b16 %v179, %v178
  %v227 = vpack.c.b16 %v181, %v180
  %v228 = vpack.c.b16 %v183, %v182
  %v229 = vpack.c.b16 %v185, %v184
  %v230 = vpack.c.b16 %v187, %v186
  %v231 = vpack.c.b16 %v189, %v188
  %v232 = vpack.c.b16 %v191, %v190
  %v233 = vpack.c.b16 %v193, %v192
  %v234 = vpack.c.b16 %v195, %v194
  %v235 = vpack.c.b16 %v197, %v196
  %v236 = vpack.c.b16 %v199, %v198
  %v237 = vpack.c.b16 %v201, %v200
  %v238 = vpack.c.b16 %v203, %v202
  %v239 = vpack.c.b16 %v205, %v204
  %v240 = vpack.c.b16 %v207, %v206
  %v241 = vpack.c.b16 %v209, %v208
  %v248 = vunpack.c.l.b16 %v76
  %v249 = vunpack.c.l.b16 %v77
  %v250 = vunpack.c.l.b16 %v78
  %v251 = vunpack.c.l.b16 %v79
  %v252 = vunpack.c.l.b16 %v80
  %v253 = vunpack.c.l.b16 %v81
  %v254 = vpack.c.b16 %v249, %v248
  %v255 = vpack.c.b16 %v251, %v250
  %v256 = vpack.c.b16 %v253, %v252
  %vm260 = vcmask 392192
  %v262 = vsel %vm260, %v210, 0
  %v265 = vsel %vm260, %v211, 0
  %v268 = vsel %vm260, %v212, 0
  %v271 = vsel %vm260, %v213, 0
  %v274 = vsel %vm260, %v214, 0
  %v277 = vsel %vm260, %v215, 0
  %v280 = vsel %vm260, %v216, 0
  %v283 = vsel %vm260, %v217, 0
  %v286 = vsel %vm260, %v218, 0
  %v289 = vsel %vm260, %v219, 0
  %v292 = vsel %vm260, %v220, 0
  %v295 = vsel %vm260, %v221, 0
  %v298 = vsel %vm260, %v222, 0
  %v301 = vsel %vm260, %v223, 0
  %v304 = vsel %vm260, %v224, 0
  %v307 = vsel %vm260, %v225, 0
  %v310 = vsel %vm260, %v226, 0
  %v313 = vsel %vm260, %v227, 0
  %v316 = vsel %vm260, %v228, 0
  %v319 = vsel %vm260, %v229, 0
  %v322 = vsel %vm260, %v230, 0
  %v325 = vsel %vm260, %v231, 0
  %v328 = vsel %vm260, %v232, 0
  %v331 = vsel %vm260, %v233, 0
  %v334 = vsel %vm260, %v234, 0
  %v337 = vsel %vm260, %v235, 0
  %v340 = vsel %vm260, %v236, 0
  %v343 = vsel %vm260, %v237, 0
  %v346 = vsel %vm260, %v238, 0
  %v349 = vsel %vm260, %v239, 0
  %v352 = vsel %vm260, %v240, 0
  %v355 = vsel %vm260, %v241, 0
  %357 = vmatprep.subr.bf16.mxu0 0
  %358 = vmatpush1.bf16.msra.mxu0 0
  %359 = vmatprep.subr.bf16.mxu0 0
  %360 = vmatpush1.bf16.msra.mxu0 0
  %361 = vmatprep.subr.bf16.mxu0 0
  %362 = vmatpush1.bf16.msra.mxu0 0
  %363 = vmatprep.subr.bf16.mxu0 0
  %364 = vmatpush1.bf16.msra.mxu0 0
  %365 = vmatprep.subr.bf16.mxu0 0
  %366 = vmatpush1.bf16.msra.mxu0 0
  %367 = vmatprep.subr.bf16.mxu0 0
  %368 = vmatpush1.bf16.msra.mxu0 %v256
  %369 = vmatprep.subr.bf16.mxu0 0
  %370 = vmatpush1.bf16.msra.mxu0 %v255
  %371 = vmatprep.subr.bf16.mxu0 0
  %372 = vmatpush1.bf16.msra.mxu0 %v254
  %373 = vmatprep.subr.bf16.mxu0 0
  %374 = vmatpush2.bf16.msra.mxu0 0
  %375 = vmatprep.subr.bf16.mxu0 0
  %376 = vmatpush2.bf16.msra.mxu0 0
  %377 = vmatprep.subr.bf16.mxu0 0
  %378 = vmatpush2.bf16.msra.mxu0 0
  %379 = vmatprep.subr.bf16.mxu0 0
  %380 = vmatpush2.bf16.msra.mxu0 0
  %381 = vmatprep.subr.bf16.mxu0 0
  %382 = vmatpush2.bf16.msra.mxu0 0
  %383 = vmatprep.subr.bf16.mxu0 0
  %384 = vmatpush2.bf16.msra.mxu0 0
  %385 = vmatprep.subr.bf16.mxu0 0
  %386 = vmatpush2.bf16.msra.mxu0 0
  %387 = vmatprep.subr.bf16.mxu0 0
  %388 = vmatpush2.bf16.msra.mxu0 0
  %389 = vmatprep.mubr.bf16.mxu0 0
  %390 = vmatmul.mubr.bf16.gmra.mxu0 %v262
  %v391 = vpop.f32.mrf.mxu0
  %v392 = vadd.f32 0.0, %v391
  %v393 = vpop.f32.mrf.mxu0
  %v394 = vpop.f32.mrf.mxu0
  %v395 = vadd.f32 0.0, %v394
  %v396 = vpop.f32.mrf.mxu0
  %397 = vmatprep.mubr.bf16.mxu0 0
  %398 = vmatmul.mubr.bf16.gmra.mxu0 %v265
  %v399 = vpop.f32.mrf.mxu0
  %v400 = vadd.f32 0.0, %v399
  %v401 = vpop.f32.mrf.mxu0
  %v402 = vpop.f32.mrf.mxu0
  %v403 = vadd.f32 0.0, %v402
  %v404 = vpop.f32.mrf.mxu0
  %405 = vmatprep.mubr.bf16.mxu0 0
  %406 = vmatmul.mubr.bf16.gmra.mxu0 %v268
  %v407 = vpop.f32.mrf.mxu0
  %v408 = vadd.f32 0.0, %v407
  %v409 = vpop.f32.mrf.mxu0
  %v410 = vpop.f32.mrf.mxu0
  %v411 = vadd.f32 0.0, %v410
  %v412 = vpop.f32.mrf.mxu0
  %413 = vmatprep.mubr.bf16.mxu0 0
  %414 = vmatmul.mubr.bf16.gmra.mxu0 %v271
  %v415 = vpop.f32.mrf.mxu0
  %v416 = vadd.f32 0.0, %v415
  %v417 = vpop.f32.mrf.mxu0
  %v418 = vpop.f32.mrf.mxu0
  %v419 = vadd.f32 0.0, %v418
  %v420 = vpop.f32.mrf.mxu0
  %421 = vmatprep.mubr.bf16.mxu0 0
  %422 = vmatmul.mubr.bf16.gmra.mxu0 %v274
  %v423 = vpop.f32.mrf.mxu0
  %v424 = vadd.f32 0.0, %v423
  %v425 = vpop.f32.mrf.mxu0
  %v426 = vpop.f32.mrf.mxu0
  %v427 = vadd.f32 0.0, %v426
  %v428 = vpop.f32.mrf.mxu0
  %429 = vmatprep.mubr.bf16.mxu0 0
  %430 = vmatmul.mubr.bf16.gmra.mxu0 %v277
  %v431 = vpop.f32.mrf.mxu0
  %v432 = vadd.f32 0.0, %v431
  %v433 = vpop.f32.mrf.mxu0
  %v434 = vpop.f32.mrf.mxu0
  %v435 = vadd.f32 0.0, %v434
  %v436 = vpop.f32.mrf.mxu0
  %437 = vmatprep.mubr.bf16.mxu0 0
  %438 = vmatmul.mubr.bf16.gmra.mxu0 %v280
  %v439 = vpop.f32.mrf.mxu0
  %v440 = vadd.f32 0.0, %v439
  %v441 = vpop.f32.mrf.mxu0
  %v442 = vpop.f32.mrf.mxu0
  %v443 = vadd.f32 0.0, %v442
  %v444 = vpop.f32.mrf.mxu0
  %445 = vmatprep.mubr.bf16.mxu0 0
  %446 = vmatmul.mubr.bf16.gmra.mxu0 %v283
  %v447 = vpop.f32.mrf.mxu0
  %v448 = vadd.f32 0.0, %v447
  %v449 = vpop.f32.mrf.mxu0
  %v450 = vpop.f32.mrf.mxu0
  %v451 = vadd.f32 0.0, %v450
  %v452 = vpop.f32.mrf.mxu0
  %453 = vmatprep.mubr.bf16.mxu0 0
  %454 = vmatmul.mubr.bf16.gmra.mxu0 %v286
  %v455 = vpop.f32.mrf.mxu0
  %v456 = vadd.f32 0.0, %v455
  %v457 = vpop.f32.mrf.mxu0
  %v458 = vpop.f32.mrf.mxu0
  %v459 = vadd.f32 0.0, %v458
  %v460 = vpop.f32.mrf.mxu0
  %461 = vmatprep.mubr.bf16.mxu0 0
  %462 = vmatmul.mubr.bf16.gmra.mxu0 %v289
  %v463 = vpop.f32.mrf.mxu0
  %v464 = vadd.f32 0.0, %v463
  %v465 = vpop.f32.mrf.mxu0
  %v466 = vpop.f32.mrf.mxu0
  %v467 = vadd.f32 0.0, %v466
  %v468 = vpop.f32.mrf.mxu0
  %469 = vmatprep.mubr.bf16.mxu0 0
  %470 = vmatmul.mubr.bf16.gmra.mxu0 %v292
  %v471 = vpop.f32.mrf.mxu0
  %v472 = vadd.f32 0.0, %v471
  %v473 = vpop.f32.mrf.mxu0
  %v474 = vpop.f32.mrf.mxu0
  %v475 = vadd.f32 0.0, %v474
  %v476 = vpop.f32.mrf.mxu0
  %477 = vmatprep.mubr.bf16.mxu0 0
  %478 = vmatmul.mubr.bf16.gmra.mxu0 %v295
  %v479 = vpop.f32.mrf.mxu0
  %v480 = vadd.f32 0.0, %v479
  %v481 = vpop.f32.mrf.mxu0
  %v482 = vpop.f32.mrf.mxu0
  %v483 = vadd.f32 0.0, %v482
  %v484 = vpop.f32.mrf.mxu0
  %485 = vmatprep.mubr.bf16.mxu0 0
  %486 = vmatmul.mubr.bf16.gmra.mxu0 %v298
  %v487 = vpop.f32.mrf.mxu0
  %v488 = vadd.f32 0.0, %v487
  %v489 = vpop.f32.mrf.mxu0
  %v490 = vpop.f32.mrf.mxu0
  %v491 = vadd.f32 0.0, %v490
  %v492 = vpop.f32.mrf.mxu0
  %493 = vmatprep.mubr.bf16.mxu0 0
  %494 = vmatmul.mubr.bf16.gmra.mxu0 %v301
  %v495 = vpop.f32.mrf.mxu0
  %v496 = vadd.f32 0.0, %v495
  %v497 = vpop.f32.mrf.mxu0
  %v498 = vpop.f32.mrf.mxu0
  %v499 = vadd.f32 0.0, %v498
  %v500 = vpop.f32.mrf.mxu0
  %501 = vmatprep.mubr.bf16.mxu0 0
  %502 = vmatmul.mubr.bf16.gmra.mxu0 %v304
  %v503 = vpop.f32.mrf.mxu0
  %v504 = vadd.f32 0.0, %v503
  %v505 = vpop.f32.mrf.mxu0
  %v506 = vpop.f32.mrf.mxu0
  %v507 = vadd.f32 0.0, %v506
  %v508 = vpop.f32.mrf.mxu0
  %509 = vmatprep.mubr.bf16.mxu0 0
  %510 = vmatmul.mubr.bf16.gmra.mxu0 %v307
  %v511 = vpop.f32.mrf.mxu0
  %v512 = vadd.f32 0.0, %v511
  %v513 = vpop.f32.mrf.mxu0
  %v514 = vpop.f32.mrf.mxu0
  %v515 = vadd.f32 0.0, %v514
  %v516 = vpop.f32.mrf.mxu0
  %517 = vmatprep.mubr.bf16.mxu0 0
  %518 = vmatmul.mubr.bf16.gmra.mxu0 %v310
  %v519 = vpop.f32.mrf.mxu0
  %v520 = vadd.f32 0.0, %v519
  %v521 = vpop.f32.mrf.mxu0
  %v522 = vpop.f32.mrf.mxu0
  %v523 = vadd.f32 0.0, %v522
  %v524 = vpop.f32.mrf.mxu0
  %525 = vmatprep.mubr.bf16.mxu0 0
  %526 = vmatmul.mubr.bf16.gmra.mxu0 %v313
  %v527 = vpop.f32.mrf.mxu0
  %v528 = vadd.f32 0.0, %v527
  %v529 = vpop.f32.mrf.mxu0
  %v530 = vpop.f32.mrf.mxu0
  %v531 = vadd.f32 0.0, %v530
  %v532 = vpop.f32.mrf.mxu0
  %533 = vmatprep.mubr.bf16.mxu0 0
  %534 = vmatmul.mubr.bf16.gmra.mxu0 %v316
  %v535 = vpop.f32.mrf.mxu0
  %v536 = vadd.f32 0.0, %v535
  %v537 = vpop.f32.mrf.mxu0
  %v538 = vpop.f32.mrf.mxu0
  %v539 = vadd.f32 0.0, %v538
  %v540 = vpop.f32.mrf.mxu0
  %541 = vmatprep.mubr.bf16.mxu0 0
  %542 = vmatmul.mubr.bf16.gmra.mxu0 %v319
  %v543 = vpop.f32.mrf.mxu0
  %v544 = vadd.f32 0.0, %v543
  %v545 = vpop.f32.mrf.mxu0
  %v546 = vpop.f32.mrf.mxu0
  %v547 = vadd.f32 0.0, %v546
  %v548 = vpop.f32.mrf.mxu0
  %549 = vmatprep.mubr.bf16.mxu0 0
  %550 = vmatmul.mubr.bf16.gmra.mxu0 %v322
  %v551 = vpop.f32.mrf.mxu0
  %v552 = vadd.f32 0.0, %v551
  %v553 = vpop.f32.mrf.mxu0
  %v554 = vpop.f32.mrf.mxu0
  %v555 = vadd.f32 0.0, %v554
  %v556 = vpop.f32.mrf.mxu0
  %557 = vmatprep.mubr.bf16.mxu0 0
  %558 = vmatmul.mubr.bf16.gmra.mxu0 %v325
  %v559 = vpop.f32.mrf.mxu0
  %v560 = vadd.f32 0.0, %v559
  %v561 = vpop.f32.mrf.mxu0
  %v562 = vpop.f32.mrf.mxu0
  %v563 = vadd.f32 0.0, %v562
  %v564 = vpop.f32.mrf.mxu0
  %565 = vmatprep.mubr.bf16.mxu0 0
  %566 = vmatmul.mubr.bf16.gmra.mxu0 %v328
  %v567 = vpop.f32.mrf.mxu0
  %v568 = vadd.f32 0.0, %v567
  %v569 = vpop.f32.mrf.mxu0
  %v570 = vpop.f32.mrf.mxu0
  %v571 = vadd.f32 0.0, %v570
  %v572 = vpop.f32.mrf.mxu0
  %573 = vmatprep.mubr.bf16.mxu0 0
  %574 = vmatmul.mubr.bf16.gmra.mxu0 %v331
  %v575 = vpop.f32.mrf.mxu0
  %v576 = vadd.f32 0.0, %v575
  %v577 = vpop.f32.mrf.mxu0
  %v578 = vpop.f32.mrf.mxu0
  %v579 = vadd.f32 0.0, %v578
  %v580 = vpop.f32.mrf.mxu0
  %581 = vmatprep.mubr.bf16.mxu0 0
  %582 = vmatmul.mubr.bf16.gmra.mxu0 %v334
  %v583 = vpop.f32.mrf.mxu0
  %v584 = vadd.f32 0.0, %v583
  %v585 = vpop.f32.mrf.mxu0
  %v586 = vpop.f32.mrf.mxu0
  %v587 = vadd.f32 0.0, %v586
  %v588 = vpop.f32.mrf.mxu0
  %589 = vmatprep.mubr.bf16.mxu0 0
  %590 = vmatmul.mubr.bf16.gmra.mxu0 %v337
  %v591 = vpop.f32.mrf.mxu0
  %v592 = vadd.f32 0.0, %v591
  %v593 = vpop.f32.mrf.mxu0
  %v594 = vpop.f32.mrf.mxu0
  %v595 = vadd.f32 0.0, %v594
  %v596 = vpop.f32.mrf.mxu0
  %597 = vmatprep.mubr.bf16.mxu0 0
  %598 = vmatmul.mubr.bf16.gmra.mxu0 %v340
  %v599 = vpop.f32.mrf.mxu0
  %v600 = vadd.f32 0.0, %v599
  %v601 = vpop.f32.mrf.mxu0
  %v602 = vpop.f32.mrf.mxu0
  %v603 = vadd.f32 0.0, %v602
  %v604 = vpop.f32.mrf.mxu0
  %605 = vmatprep.mubr.bf16.mxu0 0
  %606 = vmatmul.mubr.bf16.gmra.mxu0 %v343
  %v607 = vpop.f32.mrf.mxu0
  %v608 = vadd.f32 0.0, %v607
  %v609 = vpop.f32.mrf.mxu0
  %v610 = vpop.f32.mrf.mxu0
  %v611 = vadd.f32 0.0, %v610
  %v612 = vpop.f32.mrf.mxu0
  %613 = vmatprep.mubr.bf16.mxu0 0
  %614 = vmatmul.mubr.bf16.gmra.mxu0 %v346
  %v615 = vpop.f32.mrf.mxu0
  %v616 = vadd.f32 0.0, %v615
  %v617 = vpop.f32.mrf.mxu0
  %v618 = vpop.f32.mrf.mxu0
  %v619 = vadd.f32 0.0, %v618
  %v620 = vpop.f32.mrf.mxu0
  %621 = vmatprep.mubr.bf16.mxu0 0
  %622 = vmatmul.mubr.bf16.gmra.mxu0 %v349
  %v623 = vpop.f32.mrf.mxu0
  %v624 = vadd.f32 0.0, %v623
  %v625 = vpop.f32.mrf.mxu0
  %v626 = vpop.f32.mrf.mxu0
  %v627 = vadd.f32 0.0, %v626
  %v628 = vpop.f32.mrf.mxu0
  %629 = vmatprep.mubr.bf16.mxu0 0
  %630 = vmatmul.mubr.bf16.gmra.mxu0 %v352
  %v631 = vpop.f32.mrf.mxu0
  %v632 = vadd.f32 0.0, %v631
  %v633 = vpop.f32.mrf.mxu0
  %v634 = vpop.f32.mrf.mxu0
  %v635 = vadd.f32 0.0, %v634
  %v636 = vpop.f32.mrf.mxu0
  %637 = vmatprep.mubr.bf16.mxu0 0
  %638 = vmatmul.mubr.bf16.gmra.mxu0 %v355
  %v639 = vpop.f32.mrf.mxu0
  %v640 = vadd.f32 0.0, %v639
  %v641 = vpop.f32.mrf.mxu0
  %v642 = vpop.f32.mrf.mxu0
  %v643 = vadd.f32 0.0, %v642
  %v644 = vpop.f32.mrf.mxu0
  %645 = vdwg.mxu0
  %v646 = vmul.f32 %v392, %v392
  %v647 = vmul.f32 %v395, %v395
  %v648 = vmul.f32 %v400, %v400
  %v649 = vmul.f32 %v403, %v403
  %v650 = vmul.f32 %v408, %v408
  %v651 = vmul.f32 %v411, %v411
  %v652 = vmul.f32 %v416, %v416
  %v653 = vmul.f32 %v419, %v419
  %v654 = vmul.f32 %v424, %v424
  %v655 = vmul.f32 %v427, %v427
  %v656 = vmul.f32 %v432, %v432
  %v657 = vmul.f32 %v435, %v435
  %v658 = vmul.f32 %v440, %v440
  %v659 = vmul.f32 %v443, %v443
  %v660 = vmul.f32 %v448, %v448
  %v661 = vmul.f32 %v451, %v451
  %v662 = vmul.f32 %v456, %v456
  %v663 = vmul.f32 %v459, %v459
  %v664 = vmul.f32 %v464, %v464
  %v665 = vmul.f32 %v467, %v467
  %v666 = vmul.f32 %v472, %v472
  %v667 = vmul.f32 %v475, %v475
  %v668 = vmul.f32 %v480, %v480
  %v669 = vmul.f32 %v483, %v483
  %v670 = vmul.f32 %v488, %v488
  %v671 = vmul.f32 %v491, %v491
  %v672 = vmul.f32 %v496, %v496
  %v673 = vmul.f32 %v499, %v499
  %v674 = vmul.f32 %v504, %v504
  %v675 = vmul.f32 %v507, %v507
  %v676 = vmul.f32 %v512, %v512
  %v677 = vmul.f32 %v515, %v515
  %v678 = vmul.f32 %v520, %v520
  %v679 = vmul.f32 %v523, %v523
  %v680 = vmul.f32 %v528, %v528
  %v681 = vmul.f32 %v531, %v531
  %v682 = vmul.f32 %v536, %v536
  %v683 = vmul.f32 %v539, %v539
  %v684 = vmul.f32 %v544, %v544
  %v685 = vmul.f32 %v547, %v547
  %v686 = vmul.f32 %v552, %v552
  %v687 = vmul.f32 %v555, %v555
  %v688 = vmul.f32 %v560, %v560
  %v689 = vmul.f32 %v563, %v563
  %v690 = vmul.f32 %v568, %v568
  %v691 = vmul.f32 %v571, %v571
  %v692 = vmul.f32 %v576, %v576
  %v693 = vmul.f32 %v579, %v579
  %v694 = vmul.f32 %v584, %v584
  %v695 = vmul.f32 %v587, %v587
  %v696 = vmul.f32 %v592, %v592
  %v697 = vmul.f32 %v595, %v595
  %v698 = vmul.f32 %v600, %v600
  %v699 = vmul.f32 %v603, %v603
  %v700 = vmul.f32 %v608, %v608
  %v701 = vmul.f32 %v611, %v611
  %v702 = vmul.f32 %v616, %v616
  %v703 = vmul.f32 %v619, %v619
  %v704 = vmul.f32 %v624, %v624
  %v705 = vmul.f32 %v627, %v627
  %v706 = vmul.f32 %v632, %v632
  %v707 = vmul.f32 %v635, %v635
  %v708 = vmul.f32 %v640, %v640
  %v709 = vmul.f32 %v643, %v643
  %v710 = vmul.f32 %v392, %v646
  %v711 = vmul.f32 %v395, %v647
  %v712 = vmul.f32 %v400, %v648
  %v713 = vmul.f32 %v403, %v649
  %v714 = vmul.f32 %v408, %v650
  %v715 = vmul.f32 %v411, %v651
  %v716 = vmul.f32 %v416, %v652
  %v717 = vmul.f32 %v419, %v653
  %v718 = vmul.f32 %v424, %v654
  %v719 = vmul.f32 %v427, %v655
  %v720 = vmul.f32 %v432, %v656
  %v721 = vmul.f32 %v435, %v657
  %v722 = vmul.f32 %v440, %v658
  %v723 = vmul.f32 %v443, %v659
  %v724 = vmul.f32 %v448, %v660
  %v725 = vmul.f32 %v451, %v661
  %v726 = vmul.f32 %v456, %v662
  %v727 = vmul.f32 %v459, %v663
  %v728 = vmul.f32 %v464, %v664
  %v729 = vmul.f32 %v467, %v665
  %v730 = vmul.f32 %v472, %v666
  %v731 = vmul.f32 %v475, %v667
  %v732 = vmul.f32 %v480, %v668
  %v733 = vmul.f32 %v483, %v669
  %v734 = vmul.f32 %v488, %v670
  %v735 = vmul.f32 %v491, %v671
  %v736 = vmul.f32 %v496, %v672
  %v737 = vmul.f32 %v499, %v673
  %v738 = vmul.f32 %v504, %v674
  %v739 = vmul.f32 %v507, %v675
  %v740 = vmul.f32 %v512, %v676
  %v741 = vmul.f32 %v515, %v677
  %v742 = vmul.f32 %v520, %v678
  %v743 = vmul.f32 %v523, %v679
  %v744 = vmul.f32 %v528, %v680
  %v745 = vmul.f32 %v531, %v681
  %v746 = vmul.f32 %v536, %v682
  %v747 = vmul.f32 %v539, %v683
  %v748 = vmul.f32 %v544, %v684
  %v749 = vmul.f32 %v547, %v685
  %v750 = vmul.f32 %v552, %v686
  %v751 = vmul.f32 %v555, %v687
  %v752 = vmul.f32 %v560, %v688
  %v753 = vmul.f32 %v563, %v689
  %v754 = vmul.f32 %v568, %v690
  %v755 = vmul.f32 %v571, %v691
  %v756 = vmul.f32 %v576, %v692
  %v757 = vmul.f32 %v579, %v693
  %v758 = vmul.f32 %v584, %v694
  %v759 = vmul.f32 %v587, %v695
  %v760 = vmul.f32 %v592, %v696
  %v761 = vmul.f32 %v595, %v697
  %v762 = vmul.f32 %v600, %v698
  %v763 = vmul.f32 %v603, %v699
  %v764 = vmul.f32 %v608, %v700
  %v765 = vmul.f32 %v611, %v701
  %v766 = vmul.f32 %v616, %v702
  %v767 = vmul.f32 %v619, %v703
  %v768 = vmul.f32 %v624, %v704
  %v769 = vmul.f32 %v627, %v705
  %v770 = vmul.f32 %v632, %v706
  %v771 = vmul.f32 %v635, %v707
  %v772 = vmul.f32 %v640, %v708
  %v773 = vmul.f32 %v643, %v709
  %v774 = vmul.f32 %v710, 0.044715
  %v775 = vmul.f32 %v711, 0.044715
  %v776 = vmul.f32 %v712, 0.044715
  %v777 = vmul.f32 %v713, 0.044715
  %v778 = vmul.f32 %v714, 0.044715
  %v779 = vmul.f32 %v715, 0.044715
  %v780 = vmul.f32 %v716, 0.044715
  %v781 = vmul.f32 %v717, 0.044715
  %v782 = vmul.f32 %v718, 0.044715
  %v783 = vmul.f32 %v719, 0.044715
  %v784 = vmul.f32 %v720, 0.044715
  %v785 = vmul.f32 %v721, 0.044715
  %v786 = vmul.f32 %v722, 0.044715
  %v787 = vmul.f32 %v723, 0.044715
  %v788 = vmul.f32 %v724, 0.044715
  %v789 = vmul.f32 %v725, 0.044715
  %v790 = vmul.f32 %v726, 0.044715
  %v791 = vmul.f32 %v727, 0.044715
  %v792 = vmul.f32 %v728, 0.044715
  %v793 = vmul.f32 %v729, 0.044715
  %v794 = vmul.f32 %v730, 0.044715
  %v795 = vmul.f32 %v731, 0.044715
  %v796 = vmul.f32 %v732, 0.044715
  %v797 = vmul.f32 %v733, 0.044715
  %v798 = vmul.f32 %v734, 0.044715
  %v799 = vmul.f32 %v735, 0.044715
  %v800 = vmul.f32 %v736, 0.044715
  %v801 = vmul.f32 %v737, 0.044715
  %v802 = vmul.f32 %v738, 0.044715
  %v803 = vmul.f32 %v739, 0.044715
  %v804 = vmul.f32 %v740, 0.044715
  %v805 = vmul.f32 %v741, 0.044715
  %v806 = vmul.f32 %v742, 0.044715
  %v807 = vmul.f32 %v743, 0.044715
  %v808 = vmul.f32 %v744, 0.044715
  %v809 = vmul.f32 %v745, 0.044715
  %v810 = vmul.f32 %v746, 0.044715
  %v811 = vmul.f32 %v747, 0.044715
  %v812 = vmul.f32 %v748, 0.044715
  %v813 = vmul.f32 %v749, 0.044715
  %v814 = vmul.f32 %v750, 0.044715
  %v815 = vmul.f32 %v751, 0.044715
  %v816 = vmul.f32 %v752, 0.044715
  %v817 = vmul.f32 %v753, 0.044715
  %v818 = vmul.f32 %v754, 0.044715
  %v819 = vmul.f32 %v755, 0.044715
  %v820 = vmul.f32 %v756, 0.044715
  %v821 = vmul.f32 %v757, 0.044715
  %v822 = vmul.f32 %v758, 0.044715
  %v823 = vmul.f32 %v759, 0.044715
  %v824 = vmul.f32 %v760, 0.044715
  %v825 = vmul.f32 %v761, 0.044715
  %v826 = vmul.f32 %v762, 0.044715
  %v827 = vmul.f32 %v763, 0.044715
  %v828 = vmul.f32 %v764, 0.044715
  %v829 = vmul.f32 %v765, 0.044715
  %v830 = vmul.f32 %v766, 0.044715
  %v831 = vmul.f32 %v767, 0.044715
  %v832 = vmul.f32 %v768, 0.044715
  %v833 = vmul.f32 %v769, 0.044715
  %v834 = vmul.f32 %v770, 0.044715
  %v835 = vmul.f32 %v771, 0.044715
  %v836 = vmul.f32 %v772, 0.044715
  %v837 = vmul.f32 %v773, 0.044715
  %v838 = vadd.f32 %v392, %v774
  %v839 = vadd.f32 %v395, %v775
  %v840 = vadd.f32 %v400, %v776
  %v841 = vadd.f32 %v403, %v777
  %v842 = vadd.f32 %v408, %v778
  %v843 = vadd.f32 %v411, %v779
  %v844 = vadd.f32 %v416, %v780
  %v845 = vadd.f32 %v419, %v781
  %v846 = vadd.f32 %v424, %v782
  %v847 = vadd.f32 %v427, %v783
  %v848 = vadd.f32 %v432, %v784
  %v849 = vadd.f32 %v435, %v785
  %v850 = vadd.f32 %v440, %v786
  %v851 = vadd.f32 %v443, %v787
  %v852 = vadd.f32 %v448, %v788
  %v853 = vadd.f32 %v451, %v789
  %v854 = vadd.f32 %v456, %v790
  %v855 = vadd.f32 %v459, %v791
  %v856 = vadd.f32 %v464, %v792
  %v857 = vadd.f32 %v467, %v793
  %v858 = vadd.f32 %v472, %v794
  %v859 = vadd.f32 %v475, %v795
  %v860 = vadd.f32 %v480, %v796
  %v861 = vadd.f32 %v483, %v797
  %v862 = vadd.f32 %v488, %v798
  %v863 = vadd.f32 %v491, %v799
  %v864 = vadd.f32 %v496, %v800
  %v865 = vadd.f32 %v499, %v801
  %v866 = vadd.f32 %v504, %v802
  %v867 = vadd.f32 %v507, %v803
  %v868 = vadd.f32 %v512, %v804
  %v869 = vadd.f32 %v515, %v805
  %v870 = vadd.f32 %v520, %v806
  %v871 = vadd.f32 %v523, %v807
  %v872 = vadd.f32 %v528, %v808
  %v873 = vadd.f32 %v531, %v809
  %v874 = vadd.f32 %v536, %v810
  %v875 = vadd.f32 %v539, %v811
  %v876 = vadd.f32 %v544, %v812
  %v877 = vadd.f32 %v547, %v813
  %v878 = vadd.f32 %v552, %v814
  %v879 = vadd.f32 %v555, %v815
  %v880 = vadd.f32 %v560, %v816
  %v881 = vadd.f32 %v563, %v817
  %v882 = vadd.f32 %v568, %v818
  %v883 = vadd.f32 %v571, %v819
  %v884 = vadd.f32 %v576, %v820
  %v885 = vadd.f32 %v579, %v821
  %v886 = vadd.f32 %v584, %v822
  %v887 = vadd.f32 %v587, %v823
  %v888 = vadd.f32 %v592, %v824
  %v889 = vadd.f32 %v595, %v825
  %v890 = vadd.f32 %v600, %v826
  %v891 = vadd.f32 %v603, %v827
  %v892 = vadd.f32 %v608, %v828
  %v893 = vadd.f32 %v611, %v829
  %v894 = vadd.f32 %v616, %v830
  %v895 = vadd.f32 %v619, %v831
  %v896 = vadd.f32 %v624, %v832
  %v897 = vadd.f32 %v627, %v833
  %v898 = vadd.f32 %v632, %v834
  %v899 = vadd.f32 %v635, %v835
  %v900 = vadd.f32 %v640, %v836
  %v901 = vadd.f32 %v643, %v837
  %v902 = vmul.f32 %v838, 0.7978846
  %v903 = vmul.f32 %v839, 0.7978846
  %v904 = vmul.f32 %v840, 0.7978846
  %v905 = vmul.f32 %v841, 0.7978846
  %v906 = vmul.f32 %v842, 0.7978846
  %v907 = vmul.f32 %v843, 0.7978846
  %v908 = vmul.f32 %v844, 0.7978846
  %v909 = vmul.f32 %v845, 0.7978846
  %v910 = vmul.f32 %v846, 0.7978846
  %v911 = vmul.f32 %v847, 0.7978846
  %v912 = vmul.f32 %v848, 0.7978846
  %v913 = vmul.f32 %v849, 0.7978846
  %v914 = vmul.f32 %v850, 0.7978846
  %v915 = vmul.f32 %v851, 0.7978846
  %v916 = vmul.f32 %v852, 0.7978846
  %v917 = vmul.f32 %v853, 0.7978846
  %v918 = vmul.f32 %v854, 0.7978846
  %v919 = vmul.f32 %v855, 0.7978846
  %v920 = vmul.f32 %v856, 0.7978846
  %v921 = vmul.f32 %v857, 0.7978846
  %v922 = vmul.f32 %v858, 0.7978846
  %v923 = vmul.f32 %v859, 0.7978846
  %v924 = vmul.f32 %v860, 0.7978846
  %v925 = vmul.f32 %v861, 0.7978846
  %v926 = vmul.f32 %v862, 0.7978846
  %v927 = vmul.f32 %v863, 0.7978846
  %v928 = vmul.f32 %v864, 0.7978846
  %v929 = vmul.f32 %v865, 0.7978846
  %v930 = vmul.f32 %v866, 0.7978846
  %v931 = vmul.f32 %v867, 0.7978846
  %v932 = vmul.f32 %v868, 0.7978846
  %v933 = vmul.f32 %v869, 0.7978846
  %v934 = vmul.f32 %v870, 0.7978846
  %v935 = vmul.f32 %v871, 0.7978846
  %v936 = vmul.f32 %v872, 0.7978846
  %v937 = vmul.f32 %v873, 0.7978846
  %v938 = vmul.f32 %v874, 0.7978846
  %v939 = vmul.f32 %v875, 0.7978846
  %v940 = vmul.f32 %v876, 0.7978846
  %v941 = vmul.f32 %v877, 0.7978846
  %v942 = vmul.f32 %v878, 0.7978846
  %v943 = vmul.f32 %v879, 0.7978846
  %v944 = vmul.f32 %v880, 0.7978846
  %v945 = vmul.f32 %v881, 0.7978846
  %v946 = vmul.f32 %v882, 0.7978846
  %v947 = vmul.f32 %v883, 0.7978846
  %v948 = vmul.f32 %v884, 0.7978846
  %v949 = vmul.f32 %v885, 0.7978846
  %v950 = vmul.f32 %v886, 0.7978846
  %v951 = vmul.f32 %v887, 0.7978846
  %v952 = vmul.f32 %v888, 0.7978846
  %v953 = vmul.f32 %v889, 0.7978846
  %v954 = vmul.f32 %v890, 0.7978846
  %v955 = vmul.f32 %v891, 0.7978846
  %v956 = vmul.f32 %v892, 0.7978846
  %v957 = vmul.f32 %v893, 0.7978846
  %v958 = vmul.f32 %v894, 0.7978846
  %v959 = vmul.f32 %v895, 0.7978846
  %v960 = vmul.f32 %v896, 0.7978846
  %v961 = vmul.f32 %v897, 0.7978846
  %v962 = vmul.f32 %v898, 0.7978846
  %v963 = vmul.f32 %v899, 0.7978846
  %v964 = vmul.f32 %v900, 0.7978846
  %v965 = vmul.f32 %v901, 0.7978846
  %v966 = vtanh.pop %v902
  %v967 = vtanh.pop %v903
  %v968 = vtanh.pop %v904
  %v969 = vtanh.pop %v905
  %v970 = vtanh.pop %v906
  %v971 = vtanh.pop %v907
  %v972 = vtanh.pop %v908
  %v973 = vtanh.pop %v909
  %v974 = vtanh.pop %v910
  %v975 = vtanh.pop %v911
  %v976 = vtanh.pop %v912
  %v977 = vtanh.pop %v913
  %v978 = vtanh.pop %v914
  %v979 = vtanh.pop %v915
  %v980 = vtanh.pop %v916
  %v981 = vtanh.pop %v917
  %v982 = vtanh.pop %v918
  %v983 = vtanh.pop %v919
  %v984 = vtanh.pop %v920
  %v985 = vtanh.pop %v921
  %v986 = vtanh.pop %v922
  %v987 = vtanh.pop %v923
  %v988 = vtanh.pop %v924
  %v989 = vtanh.pop %v925
  %v990 = vtanh.pop %v926
  %v991 = vtanh.pop %v927
  %v992 = vtanh.pop %v928
  %v993 = vtanh.pop %v929
  %v994 = vtanh.pop %v930
  %v995 = vtanh.pop %v931
  %v996 = vtanh.pop %v932
  %v997 = vtanh.pop %v933
  %v998 = vtanh.pop %v934
  %v999 = vtanh.pop %v935
  %v1000 = vtanh.pop %v936
  %v1001 = vtanh.pop %v937
  %v1002 = vtanh.pop %v938
  %v1003 = vtanh.pop %v939
  %v1004 = vtanh.pop %v940
  %v1005 = vtanh.pop %v941
  %v1006 = vtanh.pop %v942
  %v1007 = vtanh.pop %v943
  %v1008 = vtanh.pop %v944
  %v1009 = vtanh.pop %v945
  %v1010 = vtanh.pop %v946
  %v1011 = vtanh.pop %v947
  %v1012 = vtanh.pop %v948
  %v1013 = vtanh.pop %v949
  %v1014 = vtanh.pop %v950
  %v1015 = vtanh.pop %v951
  %v1016 = vtanh.pop %v952
  %v1017 = vtanh.pop %v953
  %v1018 = vtanh.pop %v954
  %v1019 = vtanh.pop %v955
  %v1020 = vtanh.pop %v956
  %v1021 = vtanh.pop %v957
  %v1022 = vtanh.pop %v958
  %v1023 = vtanh.pop %v959
  %v1024 = vtanh.pop %v960
  %v1025 = vtanh.pop %v961
  %v1026 = vtanh.pop %v962
  %v1027 = vtanh.pop %v963
  %v1028 = vtanh.pop %v964
  %v1029 = vtanh.pop %v965
  %v1030 = vadd.f32 %v966, 1.0
  %v1031 = vadd.f32 %v967, 1.0
  %v1032 = vadd.f32 %v968, 1.0
  %v1033 = vadd.f32 %v969, 1.0
  %v1034 = vadd.f32 %v970, 1.0
  %v1035 = vadd.f32 %v971, 1.0
  %v1036 = vadd.f32 %v972, 1.0
  %v1037 = vadd.f32 %v973, 1.0
  %v1038 = vadd.f32 %v974, 1.0
  %v1039 = vadd.f32 %v975, 1.0
  %v1040 = vadd.f32 %v976, 1.0
  %v1041 = vadd.f32 %v977, 1.0
  %v1042 = vadd.f32 %v978, 1.0
  %v1043 = vadd.f32 %v979, 1.0
  %v1044 = vadd.f32 %v980, 1.0
  %v1045 = vadd.f32 %v981, 1.0
  %v1046 = vadd.f32 %v982, 1.0
  %v1047 = vadd.f32 %v983, 1.0
  %v1048 = vadd.f32 %v984, 1.0
  %v1049 = vadd.f32 %v985, 1.0
  %v1050 = vadd.f32 %v986, 1.0
  %v1051 = vadd.f32 %v987, 1.0
  %v1052 = vadd.f32 %v988, 1.0
  %v1053 = vadd.f32 %v989, 1.0
  %v1054 = vadd.f32 %v990, 1.0
  %v1055 = vadd.f32 %v991, 1.0
  %v1056 = vadd.f32 %v992, 1.0
  %v1057 = vadd.f32 %v993, 1.0
  %v1058 = vadd.f32 %v994, 1.0
  %v1059 = vadd.f32 %v995, 1.0
  %v1060 = vadd.f32 %v996, 1.0
  %v1061 = vadd.f32 %v997, 1.0
  %v1062 = vadd.f32 %v998, 1.0
  %v1063 = vadd.f32 %v999, 1.0
  %v1064 = vadd.f32 %v1000, 1.0
  %v1065 = vadd.f32 %v1001, 1.0
  %v1066 = vadd.f32 %v1002, 1.0
  %v1067 = vadd.f32 %v1003, 1.0
  %v1068 = vadd.f32 %v1004, 1.0
  %v1069 = vadd.f32 %v1005, 1.0
  %v1070 = vadd.f32 %v1006, 1.0
  %v1071 = vadd.f32 %v1007, 1.0
  %v1072 = vadd.f32 %v1008, 1.0
  %v1073 = vadd.f32 %v1009, 1.0
  %v1074 = vadd.f32 %v1010, 1.0
  %v1075 = vadd.f32 %v1011, 1.0
  %v1076 = vadd.f32 %v1012, 1.0
  %v1077 = vadd.f32 %v1013, 1.0
  %v1078 = vadd.f32 %v1014, 1.0
  %v1079 = vadd.f32 %v1015, 1.0
  %v1080 = vadd.f32 %v1016, 1.0
  %v1081 = vadd.f32 %v1017, 1.0
  %v1082 = vadd.f32 %v1018, 1.0
  %v1083 = vadd.f32 %v1019, 1.0
  %v1084 = vadd.f32 %v1020, 1.0
  %v1085 = vadd.f32 %v1021, 1.0
  %v1086 = vadd.f32 %v1022, 1.0
  %v1087 = vadd.f32 %v1023, 1.0
  %v1088 = vadd.f32 %v1024, 1.0
  %v1089 = vadd.f32 %v1025, 1.0
  %v1090 = vadd.f32 %v1026, 1.0
  %v1091 = vadd.f32 %v1027, 1.0
  %v1092 = vadd.f32 %v1028, 1.0
  %v1093 = vadd.f32 %v1029, 1.0
  %v1094 = vmul.f32 %v1030, 0.5
  %v1095 = vmul.f32 %v1031, 0.5
  %v1096 = vmul.f32 %v1032, 0.5
  %v1097 = vmul.f32 %v1033, 0.5
  %v1098 = vmul.f32 %v1034, 0.5
  %v1099 = vmul.f32 %v1035, 0.5
  %v1100 = vmul.f32 %v1036, 0.5
  %v1101 = vmul.f32 %v1037, 0.5
  %v1102 = vmul.f32 %v1038, 0.5
  %v1103 = vmul.f32 %v1039, 0.5
  %v1104 = vmul.f32 %v1040, 0.5
  %v1105 = vmul.f32 %v1041, 0.5
  %v1106 = vmul.f32 %v1042, 0.5
  %v1107 = vmul.f32 %v1043, 0.5
  %v1108 = vmul.f32 %v1044, 0.5
  %v1109 = vmul.f32 %v1045, 0.5
  %v1110 = vmul.f32 %v1046, 0.5
  %v1111 = vmul.f32 %v1047, 0.5
  %v1112 = vmul.f32 %v1048, 0.5
  %v1113 = vmul.f32 %v1049, 0.5
  %v1114 = vmul.f32 %v1050, 0.5
  %v1115 = vmul.f32 %v1051, 0.5
  %v1116 = vmul.f32 %v1052, 0.5
  %v1117 = vmul.f32 %v1053, 0.5
  %v1118 = vmul.f32 %v1054, 0.5
  %v1119 = vmul.f32 %v1055, 0.5
  %v1120 = vmul.f32 %v1056, 0.5
  %v1121 = vmul.f32 %v1057, 0.5
  %v1122 = vmul.f32 %v1058, 0.5
  %v1123 = vmul.f32 %v1059, 0.5
  %v1124 = vmul.f32 %v1060, 0.5
  %v1125 = vmul.f32 %v1061, 0.5
  %v1126 = vmul.f32 %v1062, 0.5
  %v1127 = vmul.f32 %v1063, 0.5
  %v1128 = vmul.f32 %v1064, 0.5
  %v1129 = vmul.f32 %v1065, 0.5
  %v1130 = vmul.f32 %v1066, 0.5
  %v1131 = vmul.f32 %v1067, 0.5
  %v1132 = vmul.f32 %v1068, 0.5
  %v1133 = vmul.f32 %v1069, 0.5
  %v1134 = vmul.f32 %v1070, 0.5
  %v1135 = vmul.f32 %v1071, 0.5
  %v1136 = vmul.f32 %v1072, 0.5
  %v1137 = vmul.f32 %v1073, 0.5
  %v1138 = vmul.f32 %v1074, 0.5
  %v1139 = vmul.f32 %v1075, 0.5
  %v1140 = vmul.f32 %v1076, 0.5
  %v1141 = vmul.f32 %v1077, 0.5
  %v1142 = vmul.f32 %v1078, 0.5
  %v1143 = vmul.f32 %v1079, 0.5
  %v1144 = vmul.f32 %v1080, 0.5
  %v1145 = vmul.f32 %v1081, 0.5
  %v1146 = vmul.f32 %v1082, 0.5
  %v1147 = vmul.f32 %v1083, 0.5
  %v1148 = vmul.f32 %v1084, 0.5
  %v1149 = vmul.f32 %v1085, 0.5
  %v1150 = vmul.f32 %v1086, 0.5
  %v1151 = vmul.f32 %v1087, 0.5
  %v1152 = vmul.f32 %v1088, 0.5
  %v1153 = vmul.f32 %v1089, 0.5
  %v1154 = vmul.f32 %v1090, 0.5
  %v1155 = vmul.f32 %v1091, 0.5
  %v1156 = vmul.f32 %v1092, 0.5
  %v1157 = vmul.f32 %v1093, 0.5
  %v1158 = vmul.f32 %v392, %v1094
  %v1159 = vmul.f32 %v395, %v1095
  %v1160 = vmul.f32 %v400, %v1096
  %v1161 = vmul.f32 %v403, %v1097
  %v1162 = vmul.f32 %v408, %v1098
  %v1163 = vmul.f32 %v411, %v1099
  %v1164 = vmul.f32 %v416, %v1100
  %v1165 = vmul.f32 %v419, %v1101
  %v1166 = vmul.f32 %v424, %v1102
  %v1167 = vmul.f32 %v427, %v1103
  %v1168 = vmul.f32 %v432, %v1104
  %v1169 = vmul.f32 %v435, %v1105
  %v1170 = vmul.f32 %v440, %v1106
  %v1171 = vmul.f32 %v443, %v1107
  %v1172 = vmul.f32 %v448, %v1108
  %v1173 = vmul.f32 %v451, %v1109
  %v1174 = vmul.f32 %v456, %v1110
  %v1175 = vmul.f32 %v459, %v1111
  %v1176 = vmul.f32 %v464, %v1112
  %v1177 = vmul.f32 %v467, %v1113
  %v1178 = vmul.f32 %v472, %v1114
  %v1179 = vmul.f32 %v475, %v1115
  %v1180 = vmul.f32 %v480, %v1116
  %v1181 = vmul.f32 %v483, %v1117
  %v1182 = vmul.f32 %v488, %v1118
  %v1183 = vmul.f32 %v491, %v1119
  %v1184 = vmul.f32 %v496, %v1120
  %v1185 = vmul.f32 %v499, %v1121
  %v1186 = vmul.f32 %v504, %v1122
  %v1187 = vmul.f32 %v507, %v1123
  %v1188 = vmul.f32 %v512, %v1124
  %v1189 = vmul.f32 %v515, %v1125
  %v1190 = vmul.f32 %v520, %v1126
  %v1191 = vmul.f32 %v523, %v1127
  %v1192 = vmul.f32 %v528, %v1128
  %v1193 = vmul.f32 %v531, %v1129
  %v1194 = vmul.f32 %v536, %v1130
  %v1195 = vmul.f32 %v539, %v1131
  %v1196 = vmul.f32 %v544, %v1132
  %v1197 = vmul.f32 %v547, %v1133
  %v1198 = vmul.f32 %v552, %v1134
  %v1199 = vmul.f32 %v555, %v1135
  %v1200 = vmul.f32 %v560, %v1136
  %v1201 = vmul.f32 %v563, %v1137
  %v1202 = vmul.f32 %v568, %v1138
  %v1203 = vmul.f32 %v571, %v1139
  %v1204 = vmul.f32 %v576, %v1140
  %v1205 = vmul.f32 %v579, %v1141
  %v1206 = vmul.f32 %v584, %v1142
  %v1207 = vmul.f32 %v587, %v1143
  %v1208 = vmul.f32 %v592, %v1144
  %v1209 = vmul.f32 %v595, %v1145
  %v1210 = vmul.f32 %v600, %v1146
  %v1211 = vmul.f32 %v603, %v1147
  %v1212 = vmul.f32 %v608, %v1148
  %v1213 = vmul.f32 %v611, %v1149
  %v1214 = vmul.f32 %v616, %v1150
  %v1215 = vmul.f32 %v619, %v1151
  %v1216 = vmul.f32 %v624, %v1152
  %v1217 = vmul.f32 %v627, %v1153
  %v1218 = vmul.f32 %v632, %v1154
  %v1219 = vmul.f32 %v635, %v1155
  %v1220 = vmul.f32 %v640, %v1156
  %v1221 = vmul.f32 %v643, %v1157
  %v1222 = vpack.c.bf16 %v1159, %v1158
  %v1223 = vpack.c.bf16 %v1161, %v1160
  %v1224 = vpack.c.bf16 %v1163, %v1162
  %v1225 = vpack.c.bf16 %v1165, %v1164
  %v1226 = vpack.c.bf16 %v1167, %v1166
  %v1227 = vpack.c.bf16 %v1169, %v1168
  %v1228 = vpack.c.bf16 %v1171, %v1170
  %v1229 = vpack.c.bf16 %v1173, %v1172
  %v1230 = vpack.c.bf16 %v1175, %v1174
  %v1231 = vpack.c.bf16 %v1177, %v1176
  %v1232 = vpack.c.bf16 %v1179, %v1178
  %v1233 = vpack.c.bf16 %v1181, %v1180
  %v1234 = vpack.c.bf16 %v1183, %v1182
  %v1235 = vpack.c.bf16 %v1185, %v1184
  %v1236 = vpack.c.bf16 %v1187, %v1186
  %v1237 = vpack.c.bf16 %v1189, %v1188
  %v1238 = vpack.c.bf16 %v1191, %v1190
  %v1239 = vpack.c.bf16 %v1193, %v1192
  %v1240 = vpack.c.bf16 %v1195, %v1194
  %v1241 = vpack.c.bf16 %v1197, %v1196
  %v1242 = vpack.c.bf16 %v1199, %v1198
  %v1243 = vpack.c.bf16 %v1201, %v1200
  %v1244 = vpack.c.bf16 %v1203, %v1202
  %v1245 = vpack.c.bf16 %v1205, %v1204
  %v1246 = vpack.c.bf16 %v1207, %v1206
  %v1247 = vpack.c.bf16 %v1209, %v1208
  %v1248 = vpack.c.bf16 %v1211, %v1210
  %v1249 = vpack.c.bf16 %v1213, %v1212
  %v1250 = vpack.c.bf16 %v1215, %v1214
  %v1251 = vpack.c.bf16 %v1217, %v1216
  %v1252 = vpack.c.bf16 %v1219, %v1218
  %v1253 = vpack.c.bf16 %v1221, %v1220
  %v1286 = vunpack.c.l.b16 %v1222
  %v1287 = vunpack.c.h.b16 %v1222
  %v1288 = vunpack.c.l.b16 %v1223
  %v1289 = vunpack.c.h.b16 %v1223
  %v1290 = vunpack.c.l.b16 %v1224
  %v1291 = vunpack.c.h.b16 %v1224
  %v1292 = vunpack.c.l.b16 %v1225
  %v1293 = vunpack.c.h.b16 %v1225
  %v1294 = vunpack.c.l.b16 %v1226
  %v1295 = vunpack.c.h.b16 %v1226
  %v1296 = vunpack.c.l.b16 %v1227
  %v1297 = vunpack.c.h.b16 %v1227
  %v1298 = vunpack.c.l.b16 %v1228
  %v1299 = vunpack.c.h.b16 %v1228
  %v1300 = vunpack.c.l.b16 %v1229
  %v1301 = vunpack.c.h.b16 %v1229
  %v1302 = vunpack.c.l.b16 %v1230
  %v1303 = vunpack.c.h.b16 %v1230
  %v1304 = vunpack.c.l.b16 %v1231
  %v1305 = vunpack.c.h.b16 %v1231
  %v1306 = vunpack.c.l.b16 %v1232
  %v1307 = vunpack.c.h.b16 %v1232
  %v1308 = vunpack.c.l.b16 %v1233
  %v1309 = vunpack.c.h.b16 %v1233
  %v1310 = vunpack.c.l.b16 %v1234
  %v1311 = vunpack.c.h.b16 %v1234
  %v1312 = vunpack.c.l.b16 %v1235
  %v1313 = vunpack.c.h.b16 %v1235
  %v1314 = vunpack.c.l.b16 %v1236
  %v1315 = vunpack.c.h.b16 %v1236
  %v1316 = vunpack.c.l.b16 %v1237
  %v1317 = vunpack.c.h.b16 %v1237
  %v1318 = vunpack.c.l.b16 %v1238
  %v1319 = vunpack.c.h.b16 %v1238
  %v1320 = vunpack.c.l.b16 %v1239
  %v1321 = vunpack.c.h.b16 %v1239
  %v1322 = vunpack.c.l.b16 %v1240
  %v1323 = vunpack.c.h.b16 %v1240
  %v1324 = vunpack.c.l.b16 %v1241
  %v1325 = vunpack.c.h.b16 %v1241
  %v1326 = vunpack.c.l.b16 %v1242
  %v1327 = vunpack.c.h.b16 %v1242
  %v1328 = vunpack.c.l.b16 %v1243
  %v1329 = vunpack.c.h.b16 %v1243
  %v1330 = vunpack.c.l.b16 %v1244
  %v1331 = vunpack.c.h.b16 %v1244
  %v1332 = vunpack.c.l.b16 %v1245
  %v1333 = vunpack.c.h.b16 %v1245
  %v1334 = vunpack.c.l.b16 %v1246
  %v1335 = vunpack.c.h.b16 %v1246
  %v1336 = vunpack.c.l.b16 %v1247
  %v1337 = vunpack.c.h.b16 %v1247
  %v1338 = vunpack.c.l.b16 %v1248
  %v1339 = vunpack.c.h.b16 %v1248
  %v1340 = vunpack.c.l.b16 %v1249
  %v1341 = vunpack.c.h.b16 %v1249
  %v1342 = vunpack.c.l.b16 %v1250
  %v1343 = vunpack.c.h.b16 %v1250
  %v1344 = vunpack.c.l.b16 %v1251
  %v1345 = vunpack.c.h.b16 %v1251
  %v1346 = vunpack.c.l.b16 %v1252
  %v1347 = vunpack.c.h.b16 %v1252
  %v1348 = vunpack.c.l.b16 %v1253
  %v1349 = vunpack.c.h.b16 %v1253
  %v1350 = vpack.c.b16 %v1286, %v1286
  %v1351 = vpack.c.b16 %v1287, %v1287
  %v1352 = vpack.c.b16 %v1288, %v1288
  %v1353 = vpack.c.b16 %v1289, %v1289
  %v1354 = vpack.c.b16 %v1290, %v1290
  %v1355 = vpack.c.b16 %v1291, %v1291
  %v1356 = vpack.c.b16 %v1292, %v1292
  %v1357 = vpack.c.b16 %v1293, %v1293
  %v1358 = vpack.c.b16 %v1294, %v1294
  %v1359 = vpack.c.b16 %v1295, %v1295
  %v1360 = vpack.c.b16 %v1296, %v1296
  %v1361 = vpack.c.b16 %v1297, %v1297
  %v1362 = vpack.c.b16 %v1298, %v1298
  %v1363 = vpack.c.b16 %v1299, %v1299
  %v1364 = vpack.c.b16 %v1300, %v1300
  %v1365 = vpack.c.b16 %v1301, %v1301
  %v1366 = vpack.c.b16 %v1302, %v1302
  %v1367 = vpack.c.b16 %v1303, %v1303
  %v1368 = vpack.c.b16 %v1304, %v1304
  %v1369 = vpack.c.b16 %v1305, %v1305
  %v1370 = vpack.c.b16 %v1306, %v1306
  %v1371 = vpack.c.b16 %v1307, %v1307
  %v1372 = vpack.c.b16 %v1308, %v1308
  %v1373 = vpack.c.b16 %v1309, %v1309
  %v1374 = vpack.c.b16 %v1310, %v1310
  %v1375 = vpack.c.b16 %v1311, %v1311
  %v1376 = vpack.c.b16 %v1312, %v1312
  %v1377 = vpack.c.b16 %v1313, %v1313
  %v1378 = vpack.c.b16 %v1314, %v1314
  %v1379 = vpack.c.b16 %v1315, %v1315
  %v1380 = vpack.c.b16 %v1316, %v1316
  %v1381 = vpack.c.b16 %v1317, %v1317
  %v1382 = vpack.c.b16 %v1318, %v1318
  %v1383 = vpack.c.b16 %v1319, %v1319
  %v1384 = vpack.c.b16 %v1320, %v1320
  %v1385 = vpack.c.b16 %v1321, %v1321
  %v1386 = vpack.c.b16 %v1322, %v1322
  %v1387 = vpack.c.b16 %v1323, %v1323
  %v1388 = vpack.c.b16 %v1324, %v1324
  %v1389 = vpack.c.b16 %v1325, %v1325
  %v1390 = vpack.c.b16 %v1326, %v1326
  %v1391 = vpack.c.b16 %v1327, %v1327
  %v1392 = vpack.c.b16 %v1328, %v1328
  %v1393 = vpack.c.b16 %v1329, %v1329
  %v1394 = vpack.c.b16 %v1330, %v1330
  %v1395 = vpack.c.b16 %v1331, %v1331
  %v1396 = vpack.c.b16 %v1332, %v1332
  %v1397 = vpack.c.b16 %v1333, %v1333
  %v1398 = vpack.c.b16 %v1334, %v1334
  %v1399 = vpack.c.b16 %v1335, %v1335
  %v1400 = vpack.c.b16 %v1336, %v1336
  %v1401 = vpack.c.b16 %v1337, %v1337
  %v1402 = vpack.c.b16 %v1338, %v1338
  %v1403 = vpack.c.b16 %v1339, %v1339
  %v1404 = vpack.c.b16 %v1340, %v1340
  %v1405 = vpack.c.b16 %v1341, %v1341
  %v1406 = vpack.c.b16 %v1342, %v1342
  %v1407 = vpack.c.b16 %v1343, %v1343
  %v1408 = vpack.c.b16 %v1344, %v1344
  %v1409 = vpack.c.b16 %v1345, %v1345
  %v1410 = vpack.c.b16 %v1346, %v1346
  %v1411 = vpack.c.b16 %v1347, %v1347
  %v1412 = vpack.c.b16 %v1348, %v1348
  %v1413 = vpack.c.b16 %v1349, %v1349
  %1478 = vst [vmem:[%s2] sm:$0xf] %v1350
  %1479 = vst [vmem:[%s2 + $0x4] sm:$0xf] %v1351
  %1480 = vst [vmem:[%s2 + $0x8] sm:$0xf] %v1352
  %1481 = vst [vmem:[%s2 + $0xc] sm:$0xf] %v1353
  %1482 = vst [vmem:[%s2 + $0x10] sm:$0xf] %v1354
  %1483 = vst [vmem:[%s2 + $0x14] sm:$0xf] %v1355
  %1484 = vst [vmem:[%s2 + $0x18] sm:$0xf] %v1356
  %1485 = vst [vmem:[%s2 + $0x1c] sm:$0xf] %v1357
  %1486 = vst [vmem:[%s2 + $0x20] sm:$0xf] %v1358
  %1487 = vst [vmem:[%s2 + $0x24] sm:$0xf] %v1359
  %1488 = vst [vmem:[%s2 + $0x28] sm:$0xf] %v1360
  %1489 = vst [vmem:[%s2 + $0x2c] sm:$0xf] %v1361
  %1490 = vst [vmem:[%s2 + $0x30] sm:$0xf] %v1362
  %1491 = vst [vmem:[%s2 + $0x34] sm:$0xf] %v1363
  %1492 = vst [vmem:[%s2 + $0x38] sm:$0xf] %v1364
  %1493 = vst [vmem:[%s2 + $0x3c] sm:$0xf] %v1365
  %1494 = vst [vmem:[%s2 + $0x40] sm:$0xf] %v1366
  %1495 = vst [vmem:[%s2 + $0x44] sm:$0xf] %v1367
  %1496 = vst [vmem:[%s2 + $0x48] sm:$0xf] %v1368
  %1497 = vst [vmem:[%s2 + $0x4c] sm:$0xf] %v1369
  %1498 = vst [vmem:[%s2 + $0x50] sm:$0xf] %v1370
  %1499 = vst [vmem:[%s2 + $0x54] sm:$0xf] %v1371
  %1500 = vst [vmem:[%s2 + $0x58] sm:$0xf] %v1372
  %1501 = vst [vmem:[%s2 + $0x5c] sm:$0xf] %v1373
  %1502 = vst [vmem:[%s2 + $0x60] sm:$0xf] %v1374
  %1503 = vst [vmem:[%s2 + $0x64] sm:$0xf] %v1375
  %1504 = vst [vmem:[%s2 + $0x68] sm:$0xf] %v1376
  %1505 = vst [vmem:[%s2 + $0x6c] sm:$0xf] %v1377
  %1506 = vst [vmem:[%s2 + $0x70] sm:$0xf] %v1378
  %1507 = vst [vmem:[%s2 + $0x74] sm:$0xf] %v1379
  %1508 = vst [vmem:[%s2 + $0x78] sm:$0xf] %v1380
  %1509 = vst [vmem:[%s2 + $0x7c] sm:$0xf] %v1381
  %1510 = vst [vmem:[%s2 + $0x80] sm:$0xf] %v1382
  %1511 = vst [vmem:[%s2 + $0x84] sm:$0xf] %v1383
  %1512 = vst [vmem:[%s2 + $0x88] sm:$0xf] %v1384
  %1513 = vst [vmem:[%s2 + $0x8c] sm:$0xf] %v1385
  %1514 = vst [vmem:[%s2 + $0x90] sm:$0xf] %v1386
  %1515 = vst [vmem:[%s2 + $0x94] sm:$0xf] %v1387
  %1516 = vst [vmem:[%s2 + $0x98] sm:$0xf] %v1388
  %1517 = vst [vmem:[%s2 + $0x9c] sm:$0xf] %v1389
  %1518 = vst [vmem:[%s2 + $0xa0] sm:$0xf] %v1390
  %1519 = vst [vmem:[%s2 + $0xa4] sm:$0xf] %v1391
  %1520 = vst [vmem:[%s2 + $0xa8] sm:$0xf] %v1392
  %1521 = vst [vmem:[%s2 + $0xac] sm:$0xf] %v1393
  %1522 = vst [vmem:[%s2 + $0xb0] sm:$0xf] %v1394
  %1523 = vst [vmem:[%s2 + $0xb4] sm:$0xf] %v1395
  %1524 = vst [vmem:[%s2 + $0xb8] sm:$0xf] %v1396
  %1525 = vst [vmem:[%s2 + $0xbc] sm:$0xf] %v1397
  %1526 = vst [vmem:[%s2 + $0xc0] sm:$0xf] %v1398
  %1527 = vst [vmem:[%s2 + $0xc4] sm:$0xf] %v1399
  %1528 = vst [vmem:[%s2 + $0xc8] sm:$0xf] %v1400
  %1529 = vst [vmem:[%s2 + $0xcc] sm:$0xf] %v1401
  %1530 = vst [vmem:[%s2 + $0xd0] sm:$0xf] %v1402
  %1531 = vst [vmem:[%s2 + $0xd4] sm:$0xf] %v1403
  %1532 = vst [vmem:[%s2 + $0xd8] sm:$0xf] %v1404
  %1533 = vst [vmem:[%s2 + $0xdc] sm:$0xf] %v1405
  %1534 = vst [vmem:[%s2 + $0xe0] sm:$0xf] %v1406
  %1535 = vst [vmem:[%s2 + $0xe4] sm:$0xf] %v1407
  %1536 = vst [vmem:[%s2 + $0xe8] sm:$0xf] %v1408
  %1537 = vst [vmem:[%s2 + $0xec] sm:$0xf] %v1409
  %1538 = vst [vmem:[%s2 + $0xf0] sm:$0xf] %v1410
  %1539 = vst [vmem:[%s2 + $0xf4] sm:$0xf] %v1411
  %1540 = vst [vmem:[%s2 + $0xf8] sm:$0xf] %v1412
  %1541 = vst [vmem:[%s2 + $0xfc] sm:$0xf] %v1413
  // Predicated region
  $region10: #{mitcls_seg_forward.5} parent=0 // pred_check
    _
  $region11: #{mitcls_seg_forward.5} parent=0 // pred_check_branch
    %1543 = sbr.rel (0) target = $region13
  $region12: #{mitcls_seg_forward.5} parent=0 // pred_region
    _
  $region13: #{mitcls_seg_forward.5} parent=0 // pred_fallthru
    _
  // Predicated region
  $region14: #{mitcls_seg_forward.5} parent=0 // pred_check
    _
  $region15: #{mitcls_seg_forward.5} parent=0 // pred_check_branch
    %1545 = sbr.rel (0) target = $region17
  $region16: #{mitcls_seg_forward.5} parent=0 // pred_region
    _
  $region17: #{mitcls_seg_forward.5} parent=0 // pred_fallthru
    _

// kernel: mitcls_seg_forward.6
$region0: #{mitcls_seg_forward.6}
  #allocation0 [shape = 'u32[]', space=smem, size = 0x4, offset = 0x4, fixed_abs, tag = 'smem constant byte address 0x4 - core index']
  #allocation1 [shape = 'u32[144,128]{1,0:T(1,128)}', space=vmem, size = 0x12000, scoped, tag = 'internal scratch']
  %s0 = inlined_call_operand.vmem [shape: bf16[128,512], index: 0, kind: input, shape index: {}]
  %s1 = inlined_call_operand.vmem [shape: bf16[512,128], index: 1, kind: input, shape index: {}]
  %s2 = inlined_call_operand.vmem [shape: bf16[128,128], index: 2, kind: output, shape index: {}]
  %s3 = sld [smem:[#allocation0]]
  $region18: #{mitcls_seg_forward.6} parent=0
    _
  %s5 = ssub.s32 1, %s3
  %s6 = scalar_select 0, %s5, %s3
  // Predicated region
  $region2: #{mitcls_seg_forward.6} parent=0 // pred_check
    _
  $region3: #{mitcls_seg_forward.6} parent=0 // pred_check_branch
    %8 = sbr.rel (0) target = $region5
  $region4: #{mitcls_seg_forward.6} parent=0 // pred_region
    _
  $region5: #{mitcls_seg_forward.6} parent=0 // pred_fallthru
    _
  // Predicated region
  $region6: #{mitcls_seg_forward.6} parent=0 // pred_check
    _
  $region7: #{mitcls_seg_forward.6} parent=0 // pred_check_branch
    %10 = sbr.rel (0) target = $region9
  $region8: #{mitcls_seg_forward.6} parent=0 // pred_region
    _
  $region9: #{mitcls_seg_forward.6} parent=0 // pred_fallthru
    _
  %v12 = vld [vmem:[%s0] sm:$0xff]
  %v13 = vld [vmem:[%s0 + $0x8] sm:$0xff]
  %v14 = vld [vmem:[%s0 + $0x10] sm:$0xff]
  %v15 = vld [vmem:[%s0 + $0x18] sm:$0xff]
  %v16 = vld [vmem:[%s0 + $0x20] sm:$0xff]
  %v17 = vld [vmem:[%s0 + $0x28] sm:$0xff]
  %v18 = vld [vmem:[%s0 + $0x30] sm:$0xff]
  %v19 = vld [vmem:[%s0 + $0x38] sm:$0xff]
  %v20 = vld [vmem:[%s0 + $0x40] sm:$0xff]
  %v21 = vld [vmem:[%s0 + $0x48] sm:$0xff]
  %v22 = vld [vmem:[%s0 + $0x50] sm:$0xff]
  %v23 = vld [vmem:[%s0 + $0x58] sm:$0xff]
  %v24 = vld [vmem:[%s0 + $0x60] sm:$0xff]
  %v25 = vld [vmem:[%s0 + $0x68] sm:$0xff]
  %v26 = vld [vmem:[%s0 + $0x70] sm:$0xff]
  %v27 = vld [vmem:[%s0 + $0x78] sm:$0xff]
  %v28 = vld [vmem:[%s0 + $0x80] sm:$0xff]
  %v29 = vld [vmem:[%s0 + $0x88] sm:$0xff]
  %v30 = vld [vmem:[%s0 + $0x90] sm:$0xff]
  %v31 = vld [vmem:[%s0 + $0x98] sm:$0xff]
  %v32 = vld [vmem:[%s0 + $0xa0] sm:$0xff]
  %v33 = vld [vmem:[%s0 + $0xa8] sm:$0xff]
  %v34 = vld [vmem:[%s0 + $0xb0] sm:$0xff]
  %v35 = vld [vmem:[%s0 + $0xb8] sm:$0xff]
  %v36 = vld [vmem:[%s0 + $0xc0] sm:$0xff]
  %v37 = vld [vmem:[%s0 + $0xc8] sm:$0xff]
  %v38 = vld [vmem:[%s0 + $0xd0] sm:$0xff]
  %v39 = vld [vmem:[%s0 + $0xd8] sm:$0xff]
  %v40 = vld [vmem:[%s0 + $0xe0] sm:$0xff]
  %v41 = vld [vmem:[%s0 + $0xe8] sm:$0xff]
  %v42 = vld [vmem:[%s0 + $0xf0] sm:$0xff]
  %v43 = vld [vmem:[%s0 + $0xf8] sm:$0xff]
  %v44 = vld [vmem:[%s1] sm:$0xf]
  %v45 = vld [vmem:[%s1 + $0x4] sm:$0xf]
  %v46 = vld [vmem:[%s1 + $0x8] sm:$0xf]
  %v47 = vld [vmem:[%s1 + $0xc] sm:$0xf]
  %v48 = vld [vmem:[%s1 + $0x10] sm:$0xf]
  %v49 = vld [vmem:[%s1 + $0x14] sm:$0xf]
  %v50 = vld [vmem:[%s1 + $0x18] sm:$0xf]
  %v51 = vld [vmem:[%s1 + $0x1c] sm:$0xf]
  %v52 = vld [vmem:[%s1 + $0x20] sm:$0xf]
  %v53 = vld [vmem:[%s1 + $0x24] sm:$0xf]
  %v54 = vld [vmem:[%s1 + $0x28] sm:$0xf]
  %v55 = vld [vmem:[%s1 + $0x2c] sm:$0xf]
  %v56 = vld [vmem:[%s1 + $0x30] sm:$0xf]
  %v57 = vld [vmem:[%s1 + $0x34] sm:$0xf]
  %v58 = vld [vmem:[%s1 + $0x38] sm:$0xf]
  %v59 = vld [vmem:[%s1 + $0x3c] sm:$0xf]
  %v60 = vld [vmem:[%s1 + $0x40] sm:$0xf]
  %v61 = vld [vmem:[%s1 + $0x44] sm:$0xf]
  %v62 = vld [vmem:[%s1 + $0x48] sm:$0xf]
  %v63 = vld [vmem:[%s1 + $0x4c] sm:$0xf]
  %v64 = vld [vmem:[%s1 + $0x50] sm:$0xf]
  %v65 = vld [vmem:[%s1 + $0x54] sm:$0xf]
  %v66 = vld [vmem:[%s1 + $0x58] sm:$0xf]
  %v67 = vld [vmem:[%s1 + $0x5c] sm:$0xf]
  %v68 = vld [vmem:[%s1 + $0x60] sm:$0xf]
  %v69 = vld [vmem:[%s1 + $0x64] sm:$0xf]
  %v70 = vld [vmem:[%s1 + $0x68] sm:$0xf]
  %v71 = vld [vmem:[%s1 + $0x6c] sm:$0xf]
  %v72 = vld [vmem:[%s1 + $0x70] sm:$0xf]
  %v73 = vld [vmem:[%s1 + $0x74] sm:$0xf]
  %v74 = vld [vmem:[%s1 + $0x78] sm:$0xf]
  %v75 = vld [vmem:[%s1 + $0x7c] sm:$0xf]
  %v76 = vld [vmem:[%s1 + $0x80] sm:$0xf]
  %v77 = vld [vmem:[%s1 + $0x84] sm:$0xf]
  %v78 = vld [vmem:[%s1 + $0x88] sm:$0xf]
  %v79 = vld [vmem:[%s1 + $0x8c] sm:$0xf]
  %v80 = vld [vmem:[%s1 + $0x90] sm:$0xf]
  %v81 = vld [vmem:[%s1 + $0x94] sm:$0xf]
  %v82 = vld [vmem:[%s1 + $0x98] sm:$0xf]
  %v83 = vld [vmem:[%s1 + $0x9c] sm:$0xf]
  %v84 = vld [vmem:[%s1 + $0xa0] sm:$0xf]
  %v85 = vld [vmem:[%s1 + $0xa4] sm:$0xf]
  %v86 = vld [vmem:[%s1 + $0xa8] sm:$0xf]
  %v87 = vld [vmem:[%s1 + $0xac] sm:$0xf]
  %v88 = vld [vmem:[%s1 + $0xb0] sm:$0xf]
  %v89 = vld [vmem:[%s1 + $0xb4] sm:$0xf]
  %v90 = vld [vmem:[%s1 + $0xb8] sm:$0xf]
  %v91 = vld [vmem:[%s1 + $0xbc] sm:$0xf]
  %v92 = vld [vmem:[%s1 + $0xc0] sm:$0xf]
  %v93 = vld [vmem:[%s1 + $0xc4] sm:$0xf]
  %v94 = vld [vmem:[%s1 + $0xc8] sm:$0xf]
  %v95 = vld [vmem:[%s1 + $0xcc] sm:$0xf]
  %v96 = vld [vmem:[%s1 + $0xd0] sm:$0xf]
  %v97 = vld [vmem:[%s1 + $0xd4] sm:$0xf]
  %v98 = vld [vmem:[%s1 + $0xd8] sm:$0xf]
  %v99 = vld [vmem:[%s1 + $0xdc] sm:$0xf]
  %v100 = vld [vmem:[%s1 + $0xe0] sm:$0xf]
  %v101 = vld [vmem:[%s1 + $0xe4] sm:$0xf]
  %v102 = vld [vmem:[%s1 + $0xe8] sm:$0xf]
  %v103 = vld [vmem:[%s1 + $0xec] sm:$0xf]
  %v104 = vld [vmem:[%s1 + $0xf0] sm:$0xf]
  %v105 = vld [vmem:[%s1 + $0xf4] sm:$0xf]
  %v106 = vld [vmem:[%s1 + $0xf8] sm:$0xf]
  %v107 = vld [vmem:[%s1 + $0xfc] sm:$0xf]
  %v140 = vunpack.c.l.b16 %v12
  %v141 = vunpack.c.h.b16 %v12
  %v142 = vunpack.c.l.b16 %v13
  %v143 = vunpack.c.h.b16 %v13
  %v144 = vunpack.c.l.b16 %v14
  %v145 = vunpack.c.h.b16 %v14
  %v146 = vunpack.c.l.b16 %v15
  %v147 = vunpack.c.h.b16 %v15
  %v148 = vunpack.c.l.b16 %v16
  %v149 = vunpack.c.h.b16 %v16
  %v150 = vunpack.c.l.b16 %v17
  %v151 = vunpack.c.h.b16 %v17
  %v152 = vunpack.c.l.b16 %v18
  %v153 = vunpack.c.h.b16 %v18
  %v154 = vunpack.c.l.b16 %v19
  %v155 = vunpack.c.h.b16 %v19
  %v156 = vunpack.c.l.b16 %v20
  %v157 = vunpack.c.h.b16 %v20
  %v158 = vunpack.c.l.b16 %v21
  %v159 = vunpack.c.h.b16 %v21
  %v160 = vunpack.c.l.b16 %v22
  %v161 = vunpack.c.h.b16 %v22
  %v162 = vunpack.c.l.b16 %v23
  %v163 = vunpack.c.h.b16 %v23
  %v164 = vunpack.c.l.b16 %v24
  %v165 = vunpack.c.h.b16 %v24
  %v166 = vunpack.c.l.b16 %v25
  %v167 = vunpack.c.h.b16 %v25
  %v168 = vunpack.c.l.b16 %v26
  %v169 = vunpack.c.h.b16 %v26
  %v170 = vunpack.c.l.b16 %v27
  %v171 = vunpack.c.h.b16 %v27
  %v172 = vunpack.c.l.b16 %v28
  %v173 = vunpack.c.h.b16 %v28
  %v174 = vunpack.c.l.b16 %v29
  %v175 = vunpack.c.h.b16 %v29
  %v176 = vunpack.c.l.b16 %v30
  %v177 = vunpack.c.h.b16 %v30
  %v178 = vunpack.c.l.b16 %v31
  %v179 = vunpack.c.h.b16 %v31
  %v180 = vunpack.c.l.b16 %v32
  %v181 = vunpack.c.h.b16 %v32
  %v182 = vunpack.c.l.b16 %v33
  %v183 = vunpack.c.h.b16 %v33
  %v184 = vunpack.c.l.b16 %v34
  %v185 = vunpack.c.h.b16 %v34
  %v186 = vunpack.c.l.b16 %v35
  %v187 = vunpack.c.h.b16 %v35
  %v188 = vunpack.c.l.b16 %v36
  %v189 = vunpack.c.h.b16 %v36
  %v190 = vunpack.c.l.b16 %v37
  %v191 = vunpack.c.h.b16 %v37
  %v192 = vunpack.c.l.b16 %v38
  %v193 = vunpack.c.h.b16 %v38
  %v194 = vunpack.c.l.b16 %v39
  %v195 = vunpack.c.h.b16 %v39
  %v196 = vunpack.c.l.b16 %v40
  %v197 = vunpack.c.h.b16 %v40
  %v198 = vunpack.c.l.b16 %v41
  %v199 = vunpack.c.h.b16 %v41
  %v200 = vunpack.c.l.b16 %v42
  %v201 = vunpack.c.h.b16 %v42
  %v202 = vunpack.c.l.b16 %v43
  %v203 = vunpack.c.h.b16 %v43
  %v204 = vpack.c.b16 %v144, %v140
  %v205 = vpack.c.b16 %v145, %v141
  %v206 = vpack.c.b16 %v146, %v142
  %v207 = vpack.c.b16 %v147, %v143
  %v208 = vpack.c.b16 %v152, %v148
  %v209 = vpack.c.b16 %v153, %v149
  %v210 = vpack.c.b16 %v154, %v150
  %v211 = vpack.c.b16 %v155, %v151
  %v212 = vpack.c.b16 %v160, %v156
  %v213 = vpack.c.b16 %v161, %v157
  %v214 = vpack.c.b16 %v162, %v158
  %v215 = vpack.c.b16 %v163, %v159
  %v216 = vpack.c.b16 %v168, %v164
  %v217 = vpack.c.b16 %v169, %v165
  %v218 = vpack.c.b16 %v170, %v166
  %v219 = vpack.c.b16 %v171, %v167
  %v220 = vpack.c.b16 %v176, %v172
  %v221 = vpack.c.b16 %v177, %v173
  %v222 = vpack.c.b16 %v178, %v174
  %v223 = vpack.c.b16 %v179, %v175
  %v224 = vpack.c.b16 %v184, %v180
  %v225 = vpack.c.b16 %v185, %v181
  %v226 = vpack.c.b16 %v186, %v182
  %v227 = vpack.c.b16 %v187, %v183
  %v228 = vpack.c.b16 %v192, %v188
  %v229 = vpack.c.b16 %v193, %v189
  %v230 = vpack.c.b16 %v194, %v190
  %v231 = vpack.c.b16 %v195, %v191
  %v232 = vpack.c.b16 %v200, %v196
  %v233 = vpack.c.b16 %v201, %v197
  %v234 = vpack.c.b16 %v202, %v198
  %v235 = vpack.c.b16 %v203, %v199
  %v332 = vunpack.c.l.b16 %v44
  %v333 = vunpack.c.l.b16 %v45
  %v334 = vunpack.c.l.b16 %v46
  %v335 = vunpack.c.l.b16 %v47
  %v336 = vunpack.c.l.b16 %v48
  %v337 = vunpack.c.l.b16 %v49
  %v338 = vunpack.c.l.b16 %v50
  %v339 = vunpack.c.l.b16 %v51
  %v340 = vunpack.c.l.b16 %v52
  %v341 = vunpack.c.l.b16 %v53
  %v342 = vunpack.c.l.b16 %v54
  %v343 = vunpack.c.l.b16 %v55
  %v344 = vunpack.c.l.b16 %v56
  %v345 = vunpack.c.l.b16 %v57
  %v346 = vunpack.c.l.b16 %v58
  %v347 = vunpack.c.l.b16 %v59
  %v348 = vunpack.c.l.b16 %v60
  %v349 = vunpack.c.l.b16 %v61
  %v350 = vunpack.c.l.b16 %v62
  %v351 = vunpack.c.l.b16 %v63
  %v352 = vunpack.c.l.b16 %v64
  %v353 = vunpack.c.l.b16 %v65
  %v354 = vunpack.c.l.b16 %v66
  %v355 = vunpack.c.l.b16 %v67
  %v356 = vunpack.c.l.b16 %v68
  %v357 = vunpack.c.l.b16 %v69
  %v358 = vunpack.c.l.b16 %v70
  %v359 = vunpack.c.l.b16 %v71
  %v360 = vunpack.c.l.b16 %v72
  %v361 = vunpack.c.l.b16 %v73
  %v362 = vunpack.c.l.b16 %v74
  %v363 = vunpack.c.l.b16 %v75
  %v364 = vunpack.c.l.b16 %v76
  %v365 = vunpack.c.l.b16 %v77
  %v366 = vunpack.c.l.b16 %v78
  %v367 = vunpack.c.l.b16 %v79
  %v368 = vunpack.c.l.b16 %v80
  %v369 = vunpack.c.l.b16 %v81
  %v370 = vunpack.c.l.b16 %v82
  %v371 = vunpack.c.l.b16 %v83
  %v372 = vunpack.c.l.b16 %v84
  %v373 = vunpack.c.l.b16 %v85
  %v374 = vunpack.c.l.b16 %v86
  %v375 = vunpack.c.l.b16 %v87
  %v376 = vunpack.c.l.b16 %v88
  %v377 = vunpack.c.l.b16 %v89
  %v378 = vunpack.c.l.b16 %v90
  %v379 = vunpack.c.l.b16 %v91
  %v380 = vunpack.c.l.b16 %v92
  %v381 = vunpack.c.l.b16 %v93
  %v382 = vunpack.c.l.b16 %v94
  %v383 = vunpack.c.l.b16 %v95
  %v384 = vunpack.c.l.b16 %v96
  %v385 = vunpack.c.l.b16 %v97
  %v386 = vunpack.c.l.b16 %v98
  %v387 = vunpack.c.l.b16 %v99
  %v388 = vunpack.c.l.b16 %v100
  %v389 = vunpack.c.l.b16 %v101
  %v390 = vunpack.c.l.b16 %v102
  %v391 = vunpack.c.l.b16 %v103
  %v392 = vunpack.c.l.b16 %v104
  %v393 = vunpack.c.l.b16 %v105
  %v394 = vunpack.c.l.b16 %v106
  %v395 = vunpack.c.l.b16 %v107
  %v396 = vpack.c.b16 %v333, %v332
  %v397 = vpack.c.b16 %v335, %v334
  %v398 = vpack.c.b16 %v337, %v336
  %v399 = vpack.c.b16 %v339, %v338
  %v400 = vpack.c.b16 %v341, %v340
  %v401 = vpack.c.b16 %v343, %v342
  %v402 = vpack.c.b16 %v345, %v344
  %v403 = vpack.c.b16 %v347, %v346
  %v404 = vpack.c.b16 %v349, %v348
  %v405 = vpack.c.b16 %v351, %v350
  %v406 = vpack.c.b16 %v353, %v352
  %v407 = vpack.c.b16 %v355, %v354
  %v408 = vpack.c.b16 %v357, %v356
  %v409 = vpack.c.b16 %v359, %v358
  %v410 = vpack.c.b16 %v361, %v360
  %v411 = vpack.c.b16 %v363, %v362
  %v412 = vpack.c.b16 %v365, %v364
  %v413 = vpack.c.b16 %v367, %v366
  %v414 = vpack.c.b16 %v369, %v368
  %v415 = vpack.c.b16 %v371, %v370
  %v416 = vpack.c.b16 %v373, %v372
  %v417 = vpack.c.b16 %v375, %v374
  %v418 = vpack.c.b16 %v377, %v376
  %v419 = vpack.c.b16 %v379, %v378
  %v420 = vpack.c.b16 %v381, %v380
  %v421 = vpack.c.b16 %v383, %v382
  %v422 = vpack.c.b16 %v385, %v384
  %v423 = vpack.c.b16 %v387, %v386
  %v424 = vpack.c.b16 %v389, %v388
  %v425 = vpack.c.b16 %v391, %v390
  %v426 = vpack.c.b16 %v393, %v392
  %v427 = vpack.c.b16 %v395, %v394
  %460 = vmatprep.subr.bf16.mxu0 0
  %461 = vmatpush1.bf16.msra.mxu0 %v403
  %462 = vmatprep.subr.bf16.mxu0 0
  %463 = vmatpush1.bf16.msra.mxu0 %v402
  %464 = vmatprep.subr.bf16.mxu0 0
  %465 = vmatpush1.bf16.msra.mxu0 %v401
  %466 = vmatprep.subr.bf16.mxu0 0
  %467 = vmatpush1.bf16.msra.mxu0 %v400
  %468 = vmatprep.subr.bf16.mxu0 0
  %469 = vmatpush1.bf16.msra.mxu0 %v399
  %470 = vmatprep.subr.bf16.mxu0 0
  %471 = vmatpush1.bf16.msra.mxu0 %v398
  %472 = vmatprep.subr.bf16.mxu0 0
  %473 = vmatpush1.bf16.msra.mxu0 %v397
  %474 = vmatprep.subr.bf16.mxu0 0
  %475 = vmatpush1.bf16.msra.mxu0 %v396
  %476 = vmatprep.subr.bf16.mxu0 0
  %477 = vmatpush2.bf16.msra.mxu0 %v411
  %478 = vmatprep.subr.bf16.mxu0 0
  %479 = vmatpush2.bf16.msra.mxu0 %v410
  %480 = vmatprep.subr.bf16.mxu0 0
  %481 = vmatpush2.bf16.msra.mxu0 %v409
  %482 = vmatprep.subr.bf16.mxu0 0
  %483 = vmatpush2.bf16.msra.mxu0 %v408
  %484 = vmatprep.subr.bf16.mxu0 0
  %485 = vmatpush2.bf16.msra.mxu0 %v407
  %486 = vmatprep.subr.bf16.mxu0 0
  %487 = vmatpush2.bf16.msra.mxu0 %v406
  %488 = vmatprep.subr.bf16.mxu0 0
  %489 = vmatpush2.bf16.msra.mxu0 %v405
  %490 = vmatprep.subr.bf16.mxu0 0
  %491 = vmatpush2.bf16.msra.mxu0 %v404
  %492 = vmatprep.mubr.bf16.mxu0 %v205
  %493 = vmatmul.mubr.bf16.gmra.mxu0 %v204
  %v494 = vpop.f32.mrf.mxu0
  %v495 = vadd.f32 0.0, %v494
  %v496 = vpop.f32.mrf.mxu0
  %v497 = vpop.f32.mrf.mxu0
  %v498 = vadd.f32 0.0, %v497
  %v499 = vpop.f32.mrf.mxu0
  %500 = vmatprep.mubr.bf16.mxu0 %v209
  %501 = vmatmul.mubr.bf16.gmra.mxu0 %v208
  %v502 = vpop.f32.mrf.mxu0
  %v503 = vadd.f32 0.0, %v502
  %v504 = vpop.f32.mrf.mxu0
  %v505 = vpop.f32.mrf.mxu0
  %v506 = vadd.f32 0.0, %v505
  %v507 = vpop.f32.mrf.mxu0
  %508 = vmatprep.mubr.bf16.mxu0 %v213
  %509 = vmatmul.mubr.bf16.gmra.mxu0 %v212
  %v510 = vpop.f32.mrf.mxu0
  %v511 = vadd.f32 0.0, %v510
  %v512 = vpop.f32.mrf.mxu0
  %v513 = vpop.f32.mrf.mxu0
  %v514 = vadd.f32 0.0, %v513
  %v515 = vpop.f32.mrf.mxu0
  %516 = vmatprep.mubr.bf16.mxu0 %v217
  %517 = vmatmul.mubr.bf16.gmra.mxu0 %v216
  %v518 = vpop.f32.mrf.mxu0
  %v519 = vadd.f32 0.0, %v518
  %v520 = vpop.f32.mrf.mxu0
  %v521 = vpop.f32.mrf.mxu0
  %v522 = vadd.f32 0.0, %v521
  %v523 = vpop.f32.mrf.mxu0
  %524 = vmatprep.mubr.bf16.mxu0 %v221
  %525 = vmatmul.mubr.bf16.gmra.mxu0 %v220
  %v526 = vpop.f32.mrf.mxu0
  %v527 = vadd.f32 0.0, %v526
  %v528 = vpop.f32.mrf.mxu0
  %v529 = vpop.f32.mrf.mxu0
  %v530 = vadd.f32 0.0, %v529
  %v531 = vpop.f32.mrf.mxu0
  %532 = vmatprep.mubr.bf16.mxu0 %v225
  %533 = vmatmul.mubr.bf16.gmra.mxu0 %v224
  %v534 = vpop.f32.mrf.mxu0
  %v535 = vadd.f32 0.0, %v534
  %v536 = vpop.f32.mrf.mxu0
  %v537 = vpop.f32.mrf.mxu0
  %v538 = vadd.f32 0.0, %v537
  %v539 = vpop.f32.mrf.mxu0
  %540 = vmatprep.mubr.bf16.mxu0 %v229
  %541 = vmatmul.mubr.bf16.gmra.mxu0 %v228
  %v542 = vpop.f32.mrf.mxu0
  %v543 = vadd.f32 0.0, %v542
  %v544 = vpop.f32.mrf.mxu0
  %v545 = vpop.f32.mrf.mxu0
  %v546 = vadd.f32 0.0, %v545
  %v547 = vpop.f32.mrf.mxu0
  %548 = vmatprep.mubr.bf16.mxu0 %v233
  %549 = vmatmul.mubr.bf16.gmra.mxu0 %v232
  %v550 = vpop.f32.mrf.mxu0
  %v551 = vadd.f32 0.0, %v550
  %v552 = vpop.f32.mrf.mxu0
  %v553 = vpop.f32.mrf.mxu0
  %v554 = vadd.f32 0.0, %v553
  %v555 = vpop.f32.mrf.mxu0
  %556 = vdwg.mxu0
  %557 = vmatprep.subr.bf16.mxu0 0
  %558 = vmatpush1.bf16.msra.mxu0 %v419
  %559 = vmatprep.subr.bf16.mxu0 0
  %560 = vmatpush1.bf16.msra.mxu0 %v418
  %561 = vmatprep.subr.bf16.mxu0 0
  %562 = vmatpush1.bf16.msra.mxu0 %v417
  %563 = vmatprep.subr.bf16.mxu0 0
  %564 = vmatpush1.bf16.msra.mxu0 %v416
  %565 = vmatprep.subr.bf16.mxu0 0
  %566 = vmatpush1.bf16.msra.mxu0 %v415
  %567 = vmatprep.subr.bf16.mxu0 0
  %568 = vmatpush1.bf16.msra.mxu0 %v414
  %569 = vmatprep.subr.bf16.mxu0 0
  %570 = vmatpush1.bf16.msra.mxu0 %v413
  %571 = vmatprep.subr.bf16.mxu0 0
  %572 = vmatpush1.bf16.msra.mxu0 %v412
  %573 = vmatprep.subr.bf16.mxu0 0
  %574 = vmatpush2.bf16.msra.mxu0 %v427
  %575 = vmatprep.subr.bf16.mxu0 0
  %576 = vmatpush2.bf16.msra.mxu0 %v426
  %577 = vmatprep.subr.bf16.mxu0 0
  %578 = vmatpush2.bf16.msra.mxu0 %v425
  %579 = vmatprep.subr.bf16.mxu0 0
  %580 = vmatpush2.bf16.msra.mxu0 %v424
  %581 = vmatprep.subr.bf16.mxu0 0
  %582 = vmatpush2.bf16.msra.mxu0 %v423
  %583 = vmatprep.subr.bf16.mxu0 0
  %584 = vmatpush2.bf16.msra.mxu0 %v422
  %585 = vmatprep.subr.bf16.mxu0 0
  %586 = vmatpush2.bf16.msra.mxu0 %v421
  %587 = vmatprep.subr.bf16.mxu0 0
  %588 = vmatpush2.bf16.msra.mxu0 %v420
  %589 = vmatprep.mubr.bf16.mxu0 %v207
  %590 = vmatmul.mubr.bf16.gmra.mxu0 %v206
  %v591 = vpop.f32.mrf.mxu0
  %v592 = vadd.f32 %v495, %v591
  %v593 = vpop.f32.mrf.mxu0
  %v594 = vpop.f32.mrf.mxu0
  %v595 = vadd.f32 %v498, %v594
  %v596 = vpop.f32.mrf.mxu0
  %597 = vmatprep.mubr.bf16.mxu0 %v211
  %598 = vmatmul.mubr.bf16.gmra.mxu0 %v210
  %v599 = vpop.f32.mrf.mxu0
  %v600 = vadd.f32 %v503, %v599
  %v601 = vpop.f32.mrf.mxu0
  %v602 = vpop.f32.mrf.mxu0
  %v603 = vadd.f32 %v506, %v602
  %v604 = vpop.f32.mrf.mxu0
  %605 = vmatprep.mubr.bf16.mxu0 %v215
  %606 = vmatmul.mubr.bf16.gmra.mxu0 %v214
  %v607 = vpop.f32.mrf.mxu0
  %v608 = vadd.f32 %v511, %v607
  %v609 = vpop.f32.mrf.mxu0
  %v610 = vpop.f32.mrf.mxu0
  %v611 = vadd.f32 %v514, %v610
  %v612 = vpop.f32.mrf.mxu0
  %613 = vmatprep.mubr.bf16.mxu0 %v219
  %614 = vmatmul.mubr.bf16.gmra.mxu0 %v218
  %v615 = vpop.f32.mrf.mxu0
  %v616 = vadd.f32 %v519, %v615
  %v617 = vpop.f32.mrf.mxu0
  %v618 = vpop.f32.mrf.mxu0
  %v619 = vadd.f32 %v522, %v618
  %v620 = vpop.f32.mrf.mxu0
  %621 = vmatprep.mubr.bf16.mxu0 %v223
  %622 = vmatmul.mubr.bf16.gmra.mxu0 %v222
  %v623 = vpop.f32.mrf.mxu0
  %v624 = vadd.f32 %v527, %v623
  %v625 = vpop.f32.mrf.mxu0
  %v626 = vpop.f32.mrf.mxu0
  %v627 = vadd.f32 %v530, %v626
  %v628 = vpop.f32.mrf.mxu0
  %629 = vmatprep.mubr.bf16.mxu0 %v227
  %630 = vmatmul.mubr.bf16.gmra.mxu0 %v226
  %v631 = vpop.f32.mrf.mxu0
  %v632 = vadd.f32 %v535, %v631
  %v633 = vpop.f32.mrf.mxu0
  %v634 = vpop.f32.mrf.mxu0
  %v635 = vadd.f32 %v538, %v634
  %v636 = vpop.f32.mrf.mxu0
  %637 = vmatprep.mubr.bf16.mxu0 %v231
  %638 = vmatmul.mubr.bf16.gmra.mxu0 %v230
  %v639 = vpop.f32.mrf.mxu0
  %v640 = vadd.f32 %v543, %v639
  %v641 = vpop.f32.mrf.mxu0
  %v642 = vpop.f32.mrf.mxu0
  %v643 = vadd.f32 %v546, %v642
  %v644 = vpop.f32.mrf.mxu0
  %645 = vmatprep.mubr.bf16.mxu0 %v235
  %646 = vmatmul.mubr.bf16.gmra.mxu0 %v234
  %v647 = vpop.f32.mrf.mxu0
  %v648 = vadd.f32 %v551, %v647
  %v649 = vpop.f32.mrf.mxu0
  %v650 = vpop.f32.mrf.mxu0
  %v651 = vadd.f32 %v554, %v650
  %v652 = vpop.f32.mrf.mxu0
  %653 = vdwg.mxu0
  %v654 = vmul.f32 %v592, %v592
  %v655 = vmul.f32 %v595, %v595
  %v656 = vmul.f32 %v600, %v600
  %v657 = vmul.f32 %v603, %v603
  %v658 = vmul.f32 %v608, %v608
  %v659 = vmul.f32 %v611, %v611
  %v660 = vmul.f32 %v616, %v616
  %v661 = vmul.f32 %v619, %v619
  %v662 = vmul.f32 %v624, %v624
  %v663 = vmul.f32 %v627, %v627
  %v664 = vmul.f32 %v632, %v632
  %v665 = vmul.f32 %v635, %v635
  %v666 = vmul.f32 %v640, %v640
  %v667 = vmul.f32 %v643, %v643
  %v668 = vmul.f32 %v648, %v648
  %v669 = vmul.f32 %v651, %v651
  %v670 = vmul.f32 %v592, %v654
  %v671 = vmul.f32 %v595, %v655
  %v672 = vmul.f32 %v600, %v656
  %v673 = vmul.f32 %v603, %v657
  %v674 = vmul.f32 %v608, %v658
  %v675 = vmul.f32 %v611, %v659
  %v676 = vmul.f32 %v616, %v660
  %v677 = vmul.f32 %v619, %v661
  %v678 = vmul.f32 %v624, %v662
  %v679 = vmul.f32 %v627, %v663
  %v680 = vmul.f32 %v632, %v664
  %v681 = vmul.f32 %v635, %v665
  %v682 = vmul.f32 %v640, %v666
  %v683 = vmul.f32 %v643, %v667
  %v684 = vmul.f32 %v648, %v668
  %v685 = vmul.f32 %v651, %v669
  %v686 = vmul.f32 %v670, 0.044715
  %v687 = vmul.f32 %v671, 0.044715
  %v688 = vmul.f32 %v672, 0.044715
  %v689 = vmul.f32 %v673, 0.044715
  %v690 = vmul.f32 %v674, 0.044715
  %v691 = vmul.f32 %v675, 0.044715
  %v692 = vmul.f32 %v676, 0.044715
  %v693 = vmul.f32 %v677, 0.044715
  %v694 = vmul.f32 %v678, 0.044715
  %v695 = vmul.f32 %v679, 0.044715
  %v696 = vmul.f32 %v680, 0.044715
  %v697 = vmul.f32 %v681, 0.044715
  %v698 = vmul.f32 %v682, 0.044715
  %v699 = vmul.f32 %v683, 0.044715
  %v700 = vmul.f32 %v684, 0.044715
  %v701 = vmul.f32 %v685, 0.044715
  %v702 = vadd.f32 %v592, %v686
  %v703 = vadd.f32 %v595, %v687
  %v704 = vadd.f32 %v600, %v688
  %v705 = vadd.f32 %v603, %v689
  %v706 = vadd.f32 %v608, %v690
  %v707 = vadd.f32 %v611, %v691
  %v708 = vadd.f32 %v616, %v692
  %v709 = vadd.f32 %v619, %v693
  %v710 = vadd.f32 %v624, %v694
  %v711 = vadd.f32 %v627, %v695
  %v712 = vadd.f32 %v632, %v696
  %v713 = vadd.f32 %v635, %v697
  %v714 = vadd.f32 %v640, %v698
  %v715 = vadd.f32 %v643, %v699
  %v716 = vadd.f32 %v648, %v700
  %v717 = vadd.f32 %v651, %v701
  %v718 = vmul.f32 %v702, 0.7978846
  %v719 = vmul.f32 %v703, 0.7978846
  %v720 = vmul.f32 %v704, 0.7978846
  %v721 = vmul.f32 %v705, 0.7978846
  %v722 = vmul.f32 %v706, 0.7978846
  %v723 = vmul.f32 %v707, 0.7978846
  %v724 = vmul.f32 %v708, 0.7978846
  %v725 = vmul.f32 %v709, 0.7978846
  %v726 = vmul.f32 %v710, 0.7978846
  %v727 = vmul.f32 %v711, 0.7978846
  %v728 = vmul.f32 %v712, 0.7978846
  %v729 = vmul.f32 %v713, 0.7978846
  %v730 = vmul.f32 %v714, 0.7978846
  %v731 = vmul.f32 %v715, 0.7978846
  %v732 = vmul.f32 %v716, 0.7978846
  %v733 = vmul.f32 %v717, 0.7978846
  %v734 = vtanh.pop %v718
  %v735 = vtanh.pop %v719
  %v736 = vtanh.pop %v720
  %v737 = vtanh.pop %v721
  %v738 = vtanh.pop %v722
  %v739 = vtanh.pop %v723
  %v740 = vtanh.pop %v724
  %v741 = vtanh.pop %v725
  %v742 = vtanh.pop %v726
  %v743 = vtanh.pop %v727
  %v744 = vtanh.pop %v728
  %v745 = vtanh.pop %v729
  %v746 = vtanh.pop %v730
  %v747 = vtanh.pop %v731
  %v748 = vtanh.pop %v732
  %v749 = vtanh.pop %v733
  %v750 = vadd.f32 %v734, 1.0
  %v751 = vadd.f32 %v735, 1.0
  %v752 = vadd.f32 %v736, 1.0
  %v753 = vadd.f32 %v737, 1.0
  %v754 = vadd.f32 %v738, 1.0
  %v755 = vadd.f32 %v739, 1.0
  %v756 = vadd.f32 %v740, 1.0
  %v757 = vadd.f32 %v741, 1.0
  %v758 = vadd.f32 %v742, 1.0
  %v759 = vadd.f32 %v743, 1.0
  %v760 = vadd.f32 %v744, 1.0
  %v761 = vadd.f32 %v745, 1.0
  %v762 = vadd.f32 %v746, 1.0
  %v763 = vadd.f32 %v747, 1.0
  %v764 = vadd.f32 %v748, 1.0
  %v765 = vadd.f32 %v749, 1.0
  %v766 = vmul.f32 %v750, 0.5
  %v767 = vmul.f32 %v751, 0.5
  %v768 = vmul.f32 %v752, 0.5
  %v769 = vmul.f32 %v753, 0.5
  %v770 = vmul.f32 %v754, 0.5
  %v771 = vmul.f32 %v755, 0.5
  %v772 = vmul.f32 %v756, 0.5
  %v773 = vmul.f32 %v757, 0.5
  %v774 = vmul.f32 %v758, 0.5
  %v775 = vmul.f32 %v759, 0.5
  %v776 = vmul.f32 %v760, 0.5
  %v777 = vmul.f32 %v761, 0.5
  %v778 = vmul.f32 %v762, 0.5
  %v779 = vmul.f32 %v763, 0.5
  %v780 = vmul.f32 %v764, 0.5
  %v781 = vmul.f32 %v765, 0.5
  %v782 = vmul.f32 %v592, %v766
  %v783 = vmul.f32 %v595, %v767
  %v784 = vmul.f32 %v600, %v768
  %v785 = vmul.f32 %v603, %v769
  %v786 = vmul.f32 %v608, %v770
  %v787 = vmul.f32 %v611, %v771
  %v788 = vmul.f32 %v616, %v772
  %v789 = vmul.f32 %v619, %v773
  %v790 = vmul.f32 %v624, %v774
  %v791 = vmul.f32 %v627, %v775
  %v792 = vmul.f32 %v632, %v776
  %v793 = vmul.f32 %v635, %v777
  %v794 = vmul.f32 %v640, %v778
  %v795 = vmul.f32 %v643, %v779
  %v796 = vmul.f32 %v648, %v780
  %v797 = vmul.f32 %v651, %v781
  %v798 = vpack.c.bf16 %v783, %v782
  %v799 = vpack.c.bf16 %v785, %v784
  %v800 = vpack.c.bf16 %v787, %v786
  %v801 = vpack.c.bf16 %v789, %v788
  %v802 = vpack.c.bf16 %v791, %v790
  %v803 = vpack.c.bf16 %v793, %v792
  %v804 = vpack.c.bf16 %v795, %v794
  %v805 = vpack.c.bf16 %v797, %v796
  %v814 = vunpack.c.l.b16 %v798
  %v815 = vunpack.c.h.b16 %v798
  %v816 = vunpack.c.l.b16 %v799
  %v817 = vunpack.c.h.b16 %v799
  %v818 = vunpack.c.l.b16 %v800
  %v819 = vunpack.c.h.b16 %v800
  %v820 = vunpack.c.l.b16 %v801
  %v821 = vunpack.c.h.b16 %v801
  %v822 = vunpack.c.l.b16 %v802
  %v823 = vunpack.c.h.b16 %v802
  %v824 = vunpack.c.l.b16 %v803
  %v825 = vunpack.c.h.b16 %v803
  %v826 = vunpack.c.l.b16 %v804
  %v827 = vunpack.c.h.b16 %v804
  %v828 = vunpack.c.l.b16 %v805
  %v829 = vunpack.c.h.b16 %v805
  %v830 = vpack.c.b16 %v814, %v814
  %v831 = vpack.c.b16 %v815, %v815
  %v832 = vpack.c.b16 %v816, %v816
  %v833 = vpack.c.b16 %v817, %v817
  %v834 = vpack.c.b16 %v818, %v818
  %v835 = vpack.c.b16 %v819, %v819
  %v836 = vpack.c.b16 %v820, %v820
  %v837 = vpack.c.b16 %v821, %v821
  %v838 = vpack.c.b16 %v822, %v822
  %v839 = vpack.c.b16 %v823, %v823
  %v840 = vpack.c.b16 %v824, %v824
  %v841 = vpack.c.b16 %v825, %v825
  %v842 = vpack.c.b16 %v826, %v826
  %v843 = vpack.c.b16 %v827, %v827
  %v844 = vpack.c.b16 %v828, %v828
  %v845 = vpack.c.b16 %v829, %v829
  %862 = vst [vmem:[%s2] sm:$0xf] %v830
  %863 = vst [vmem:[%s2 + $0x4] sm:$0xf] %v831
  %864 = vst [vmem:[%s2 + $0x8] sm:$0xf] %v832
  %865 = vst [vmem:[%s2 + $0xc] sm:$0xf] %v833
  %866 = vst [vmem:[%s2 + $0x10] sm:$0xf] %v834
  %867 = vst [vmem:[%s2 + $0x14] sm:$0xf] %v835
  %868 = vst [vmem:[%s2 + $0x18] sm:$0xf] %v836
  %869 = vst [vmem:[%s2 + $0x1c] sm:$0xf] %v837
  %870 = vst [vmem:[%s2 + $0x20] sm:$0xf] %v838
  %871 = vst [vmem:[%s2 + $0x24] sm:$0xf] %v839
  %872 = vst [vmem:[%s2 + $0x28] sm:$0xf] %v840
  %873 = vst [vmem:[%s2 + $0x2c] sm:$0xf] %v841
  %874 = vst [vmem:[%s2 + $0x30] sm:$0xf] %v842
  %875 = vst [vmem:[%s2 + $0x34] sm:$0xf] %v843
  %876 = vst [vmem:[%s2 + $0x38] sm:$0xf] %v844
  %877 = vst [vmem:[%s2 + $0x3c] sm:$0xf] %v845
  // Predicated region
  $region10: #{mitcls_seg_forward.6} parent=0 // pred_check
    _
  $region11: #{mitcls_seg_forward.6} parent=0 // pred_check_branch
    %879 = sbr.rel (0) target = $region13
  $region12: #{mitcls_seg_forward.6} parent=0 // pred_region
    _
  $region13: #{mitcls_seg_forward.6} parent=0 // pred_fallthru
    _
  // Predicated region
  $region14: #{mitcls_seg_forward.6} parent=0 // pred_check
    _
  $region15: #{mitcls_seg_forward.6} parent=0 // pred_check_branch
    %881 = sbr.rel (0) target = $region17
  $region16: #{mitcls_seg_forward.6} parent=0 // pred_region
    _
  $region17: #{mitcls_seg_forward.6} parent=0 // pred_fallthru
    _

// kernel: mitcls_seg_forward.7
$region0: #{mitcls_seg_forward.7}
  #allocation0 [shape = 'u32[]', space=smem, size = 0x4, offset = 0x4, fixed_abs, tag = 'smem constant byte address 0x4 - core index']
  #allocation1 [shape = 'u32[144,128]{1,0:T(1,128)}', space=vmem, size = 0x12000, scoped, tag = 'internal scratch']
  %s0 = inlined_call_operand.vmem [shape: bf16[32,512], index: 0, kind: input, shape index: {}]
  %s1 = inlined_call_operand.vmem [shape: bf16[512,256], index: 1, kind: input, shape index: {}]
  %s2 = inlined_call_operand.vmem [shape: bf16[32,256], index: 2, kind: output, shape index: {}]
  %s3 = sld [smem:[#allocation0]]
  $region18: #{mitcls_seg_forward.7} parent=0
    _
  %s5 = ssub.s32 1, %s3
  %s6 = scalar_select 0, %s5, %s3
  // Predicated region
  $region2: #{mitcls_seg_forward.7} parent=0 // pred_check
    _
  $region3: #{mitcls_seg_forward.7} parent=0 // pred_check_branch
    %8 = sbr.rel (0) target = $region5
  $region4: #{mitcls_seg_forward.7} parent=0 // pred_region
    _
  $region5: #{mitcls_seg_forward.7} parent=0 // pred_fallthru
    _
  // Predicated region
  $region6: #{mitcls_seg_forward.7} parent=0 // pred_check
    _
  $region7: #{mitcls_seg_forward.7} parent=0 // pred_check_branch
    %10 = sbr.rel (0) target = $region9
  $region8: #{mitcls_seg_forward.7} parent=0 // pred_region
    _
  $region9: #{mitcls_seg_forward.7} parent=0 // pred_fallthru
    _
  %v11 = vld [vmem:[%s0] sm:$0xff]
  %v12 = vld [vmem:[%s0 + $0x8] sm:$0xff]
  %v13 = vld [vmem:[%s0 + $0x10] sm:$0xff]
  %v14 = vld [vmem:[%s0 + $0x18] sm:$0xff]
  %v15 = vld [vmem:[%s0 + $0x20] sm:$0xff]
  %v16 = vld [vmem:[%s0 + $0x28] sm:$0xff]
  %v17 = vld [vmem:[%s0 + $0x30] sm:$0xff]
  %v18 = vld [vmem:[%s0 + $0x38] sm:$0xff]
  %v19 = vld [vmem:[%s1] sm:$0xff]
  %v20 = vld [vmem:[%s1 + $0x8] sm:$0xff]
  %v21 = vld [vmem:[%s1 + $0x10] sm:$0xff]
  %v22 = vld [vmem:[%s1 + $0x18] sm:$0xff]
  %v23 = vld [vmem:[%s1 + $0x20] sm:$0xff]
  %v24 = vld [vmem:[%s1 + $0x28] sm:$0xff]
  %v25 = vld [vmem:[%s1 + $0x30] sm:$0xff]
  %v26 = vld [vmem:[%s1 + $0x38] sm:$0xff]
  %v27 = vld [vmem:[%s1 + $0x40] sm:$0xff]
  %v28 = vld [vmem:[%s1 + $0x48] sm:$0xff]
  %v29 = vld [vmem:[%s1 + $0x50] sm:$0xff]
  %v30 = vld [vmem:[%s1 + $0x58] sm:$0xff]
  %v31 = vld [vmem:[%s1 + $0x60] sm:$0xff]
  %v32 = vld [vmem:[%s1 + $0x68] sm:$0xff]
  %v33 = vld [vmem:[%s1 + $0x70] sm:$0xff]
  %v34 = vld [vmem:[%s1 + $0x78] sm:$0xff]
  %v35 = vld [vmem:[%s1 + $0x80] sm:$0xff]
  %v36 = vld [vmem:[%s1 + $0x88] sm:$0xff]
  %v37 = vld [vmem:[%s1 + $0x90] sm:$0xff]
  %v38 = vld [vmem:[%s1 + $0x98] sm:$0xff]
  %v39 = vld [vmem:[%s1 + $0xa0] sm:$0xff]
  %v40 = vld [vmem:[%s1 + $0xa8] sm:$0xff]
  %v41 = vld [vmem:[%s1 + $0xb0] sm:$0xff]
  %v42 = vld [vmem:[%s1 + $0xb8] sm:$0xff]
  %v43 = vld [vmem:[%s1 + $0xc0] sm:$0xff]
  %v44 = vld [vmem:[%s1 + $0xc8] sm:$0xff]
  %v45 = vld [vmem:[%s1 + $0xd0] sm:$0xff]
  %v46 = vld [vmem:[%s1 + $0xd8] sm:$0xff]
  %v47 = vld [vmem:[%s1 + $0xe0] sm:$0xff]
  %v48 = vld [vmem:[%s1 + $0xe8] sm:$0xff]
  %v49 = vld [vmem:[%s1 + $0xf0] sm:$0xff]
  %v50 = vld [vmem:[%s1 + $0xf8] sm:$0xff]
  %v51 = vld [vmem:[%s1 + $0x100] sm:$0xff]
  %v52 = vld [vmem:[%s1 + $0x108] sm:$0xff]
  %v53 = vld [vmem:[%s1 + $0x110] sm:$0xff]
  %v54 = vld [vmem:[%s1 + $0x118] sm:$0xff]
  %v55 = vld [vmem:[%s1 + $0x120] sm:$0xff]
  %v56 = vld [vmem:[%s1 + $0x128] sm:$0xff]
  %v57 = vld [vmem:[%s1 + $0x130] sm:$0xff]
  %v58 = vld [vmem:[%s1 + $0x138] sm:$0xff]
  %v59 = vld [vmem:[%s1 + $0x140] sm:$0xff]
  %v60 = vld [vmem:[%s1 + $0x148] sm:$0xff]
  %v61 = vld [vmem:[%s1 + $0x150] sm:$0xff]
  %v62 = vld [vmem:[%s1 + $0x158] sm:$0xff]
  %v63 = vld [vmem:[%s1 + $0x160] sm:$0xff]
  %v64 = vld [vmem:[%s1 + $0x168] sm:$0xff]
  %v65 = vld [vmem:[%s1 + $0x170] sm:$0xff]
  %v66 = vld [vmem:[%s1 + $0x178] sm:$0xff]
  %v67 = vld [vmem:[%s1 + $0x180] sm:$0xff]
  %v68 = vld [vmem:[%s1 + $0x188] sm:$0xff]
  %v69 = vld [vmem:[%s1 + $0x190] sm:$0xff]
  %v70 = vld [vmem:[%s1 + $0x198] sm:$0xff]
  %v71 = vld [vmem:[%s1 + $0x1a0] sm:$0xff]
  %v72 = vld [vmem:[%s1 + $0x1a8] sm:$0xff]
  %v73 = vld [vmem:[%s1 + $0x1b0] sm:$0xff]
  %v74 = vld [vmem:[%s1 + $0x1b8] sm:$0xff]
  %v75 = vld [vmem:[%s1 + $0x1c0] sm:$0xff]
  %v76 = vld [vmem:[%s1 + $0x1c8] sm:$0xff]
  %v77 = vld [vmem:[%s1 + $0x1d0] sm:$0xff]
  %v78 = vld [vmem:[%s1 + $0x1d8] sm:$0xff]
  %v79 = vld [vmem:[%s1 + $0x1e0] sm:$0xff]
  %v80 = vld [vmem:[%s1 + $0x1e8] sm:$0xff]
  %v81 = vld [vmem:[%s1 + $0x1f0] sm:$0xff]
  %v82 = vld [vmem:[%s1 + $0x1f8] sm:$0xff]
  %v91 = vunpack.c.l.b16 %v11
  %v92 = vunpack.c.h.b16 %v11
  %v93 = vunpack.c.l.b16 %v12
  %v94 = vunpack.c.h.b16 %v12
  %v95 = vunpack.c.l.b16 %v13
  %v96 = vunpack.c.h.b16 %v13
  %v97 = vunpack.c.l.b16 %v14
  %v98 = vunpack.c.h.b16 %v14
  %v99 = vunpack.c.l.b16 %v15
  %v100 = vunpack.c.h.b16 %v15
  %v101 = vunpack.c.l.b16 %v16
  %v102 = vunpack.c.h.b16 %v16
  %v103 = vunpack.c.l.b16 %v17
  %v104 = vunpack.c.h.b16 %v17
  %v105 = vunpack.c.l.b16 %v18
  %v106 = vunpack.c.h.b16 %v18
  %v107 = vpack.c.b16 %v95, %v91
  %v108 = vpack.c.b16 %v96, %v92
  %v109 = vpack.c.b16 %v97, %v93
  %v110 = vpack.c.b16 %v98, %v94
  %v111 = vpack.c.b16 %v103, %v99
  %v112 = vpack.c.b16 %v104, %v100
  %v113 = vpack.c.b16 %v105, %v101
  %v114 = vpack.c.b16 %v106, %v102
  %v187 = vunpack.c.l.b16 %v19
  %v188 = vunpack.c.h.b16 %v19
  %v189 = vunpack.c.l.b16 %v20
  %v190 = vunpack.c.h.b16 %v20
  %v191 = vunpack.c.l.b16 %v21
  %v192 = vunpack.c.h.b16 %v21
  %v193 = vunpack.c.l.b16 %v22
  %v194 = vunpack.c.h.b16 %v22
  %v195 = vunpack.c.l.b16 %v23
  %v196 = vunpack.c.h.b16 %v23
  %v197 = vunpack.c.l.b16 %v24
  %v198 = vunpack.c.h.b16 %v24
  %v199 = vunpack.c.l.b16 %v25
  %v200 = vunpack.c.h.b16 %v25
  %v201 = vunpack.c.l.b16 %v26
  %v202 = vunpack.c.h.b16 %v26
  %v203 = vunpack.c.l.b16 %v27
  %v204 = vunpack.c.h.b16 %v27
  %v205 = vunpack.c.l.b16 %v28
  %v206 = vunpack.c.h.b16 %v28
  %v207 = vunpack.c.l.b16 %v29
  %v208 = vunpack.c.h.b16 %v29
  %v209 = vunpack.c.l.b16 %v30
  %v210 = vunpack.c.h.b16 %v30
  %v211 = vunpack.c.l.b16 %v31
  %v212 = vunpack.c.h.b16 %v31
  %v213 = vunpack.c.l.b16 %v32
  %v214 = vunpack.c.h.b16 %v32
  %v215 = vunpack.c.l.b16 %v33
  %v216 = vunpack.c.h.b16 %v33
  %v217 = vunpack.c.l.b16 %v34
  %v218 = vunpack.c.h.b16 %v34
  %v219 = vunpack.c.l.b16 %v35
  %v220 = vunpack.c.h.b16 %v35
  %v221 = vunpack.c.l.b16 %v36
  %v222 = vunpack.c.h.b16 %v36
  %v223 = vunpack.c.l.b16 %v37
  %v224 = vunpack.c.h.b16 %v37
  %v225 = vunpack.c.l.b16 %v38
  %v226 = vunpack.c.h.b16 %v38
  %v227 = vunpack.c.l.b16 %v39
  %v228 = vunpack.c.h.b16 %v39
  %v229 = vunpack.c.l.b16 %v40
  %v230 = vunpack.c.h.b16 %v40
  %v231 = vunpack.c.l.b16 %v41
  %v232 = vunpack.c.h.b16 %v41
  %v233 = vunpack.c.l.b16 %v42
  %v234 = vunpack.c.h.b16 %v42
  %v235 = vunpack.c.l.b16 %v43
  %v236 = vunpack.c.h.b16 %v43
  %v237 = vunpack.c.l.b16 %v44
  %v238 = vunpack.c.h.b16 %v44
  %v239 = vunpack.c.l.b16 %v45
  %v240 = vunpack.c.h.b16 %v45
  %v241 = vunpack.c.l.b16 %v46
  %v242 = vunpack.c.h.b16 %v46
  %v243 = vunpack.c.l.b16 %v47
  %v244 = vunpack.c.h.b16 %v47
  %v245 = vunpack.c.l.b16 %v48
  %v246 = vunpack.c.h.b16 %v48
  %v247 = vunpack.c.l.b16 %v49
  %v248 = vunpack.c.h.b16 %v49
  %v249 = vunpack.c.l.b16 %v50
  %v250 = vunpack.c.h.b16 %v50
  %v251 = vunpack.c.l.b16 %v51
  %v252 = vunpack.c.h.b16 %v51
  %v253 = vunpack.c.l.b16 %v52
  %v254 = vunpack.c.h.b16 %v52
  %v255 = vunpack.c.l.b16 %v53
  %v256 = vunpack.c.h.b16 %v53
  %v257 = vunpack.c.l.b16 %v54
  %v258 = vunpack.c.h.b16 %v54
  %v259 = vunpack.c.l.b16 %v55
  %v260 = vunpack.c.h.b16 %v55
  %v261 = vunpack.c.l.b16 %v56
  %v262 = vunpack.c.h.b16 %v56
  %v263 = vunpack.c.l.b16 %v57
  %v264 = vunpack.c.h.b16 %v57
  %v265 = vunpack.c.l.b16 %v58
  %v266 = vunpack.c.h.b16 %v58
  %v267 = vunpack.c.l.b16 %v59
  %v268 = vunpack.c.h.b16 %v59
  %v269 = vunpack.c.l.b16 %v60
  %v270 = vunpack.c.h.b16 %v60
  %v271 = vunpack.c.l.b16 %v61
  %v272 = vunpack.c.h.b16 %v61
  %v273 = vunpack.c.l.b16 %v62
  %v274 = vunpack.c.h.b16 %v62
  %v275 = vunpack.c.l.b16 %v63
  %v276 = vunpack.c.h.b16 %v63
  %v277 = vunpack.c.l.b16 %v64
  %v278 = vunpack.c.h.b16 %v64
  %v279 = vunpack.c.l.b16 %v65
  %v280 = vunpack.c.h.b16 %v65
  %v281 = vunpack.c.l.b16 %v66
  %v282 = vunpack.c.h.b16 %v66
  %v283 = vunpack.c.l.b16 %v67
  %v284 = vunpack.c.h.b16 %v67
  %v285 = vunpack.c.l.b16 %v68
  %v286 = vunpack.c.h.b16 %v68
  %v287 = vunpack.c.l.b16 %v69
  %v288 = vunpack.c.h.b16 %v69
  %v289 = vunpack.c.l.b16 %v70
  %v290 = vunpack.c.h.b16 %v70
  %v291 = vunpack.c.l.b16 %v71
  %v292 = vunpack.c.h.b16 %v71
  %v293 = vunpack.c.l.b16 %v72
  %v294 = vunpack.c.h.b16 %v72
  %v295 = vunpack.c.l.b16 %v73
  %v296 = vunpack.c.h.b16 %v73
  %v297 = vunpack.c.l.b16 %v74
  %v298 = vunpack.c.h.b16 %v74
  %v299 = vunpack.c.l.b16 %v75
  %v300 = vunpack.c.h.b16 %v75
  %v301 = vunpack.c.l.b16 %v76
  %v302 = vunpack.c.h.b16 %v76
  %v303 = vunpack.c.l.b16 %v77
  %v304 = vunpack.c.h.b16 %v77
  %v305 = vunpack.c.l.b16 %v78
  %v306 = vunpack.c.h.b16 %v78
  %v307 = vunpack.c.l.b16 %v79
  %v308 = vunpack.c.h.b16 %v79
  %v309 = vunpack.c.l.b16 %v80
  %v310 = vunpack.c.h.b16 %v80
  %v311 = vunpack.c.l.b16 %v81
  %v312 = vunpack.c.h.b16 %v81
  %v313 = vunpack.c.l.b16 %v82
  %v314 = vunpack.c.h.b16 %v82
  %v315 = vpack.c.b16 %v189, %v187
  %v316 = vpack.c.b16 %v190, %v188
  %v317 = vpack.c.b16 %v193, %v191
  %v318 = vpack.c.b16 %v194, %v192
  %v319 = vpack.c.b16 %v197, %v195
  %v320 = vpack.c.b16 %v198, %v196
  %v321 = vpack.c.b16 %v201, %v199
  %v322 = vpack.c.b16 %v202, %v200
  %v323 = vpack.c.b16 %v205, %v203
  %v324 = vpack.c.b16 %v206, %v204
  %v325 = vpack.c.b16 %v209, %v207
  %v326 = vpack.c.b16 %v210, %v208
  %v327 = vpack.c.b16 %v213, %v211
  %v328 = vpack.c.b16 %v214, %v212
  %v329 = vpack.c.b16 %v217, %v215
  %v330 = vpack.c.b16 %v218, %v216
  %v331 = vpack.c.b16 %v221, %v219
  %v332 = vpack.c.b16 %v222, %v220
  %v333 = vpack.c.b16 %v225, %v223
  %v334 = vpack.c.b16 %v226, %v224
  %v335 = vpack.c.b16 %v229, %v227
  %v336 = vpack.c.b16 %v230, %v228
  %v337 = vpack.c.b16 %v233, %v231
  %v338 = vpack.c.b16 %v234, %v232
  %v339 = vpack.c.b16 %v237, %v235
  %v340 = vpack.c.b16 %v238, %v236
  %v341 = vpack.c.b16 %v241, %v239
  %v342 = vpack.c.b16 %v242, %v240
  %v343 = vpack.c.b16 %v245, %v243
  %v344 = vpack.c.b16 %v246, %v244
  %v345 = vpack.c.b16 %v249, %v247
  %v346 = vpack.c.b16 %v250, %v248
  %v347 = vpack.c.b16 %v253, %v251
  %v348 = vpack.c.b16 %v254, %v252
  %v349 = vpack.c.b16 %v257, %v255
  %v350 = vpack.c.b16 %v258, %v256
  %v351 = vpack.c.b16 %v261, %v259
  %v352 = vpack.c.b16 %v262, %v260
  %v353 = vpack.c.b16 %v265, %v263
  %v354 = vpack.c.b16 %v266, %v264
  %v355 = vpack.c.b16 %v269, %v267
  %v356 = vpack.c.b16 %v270, %v268
  %v357 = vpack.c.b16 %v273, %v271
  %v358 = vpack.c.b16 %v274, %v272
  %v359 = vpack.c.b16 %v277, %v275
  %v360 = vpack.c.b16 %v278, %v276
  %v361 = vpack.c.b16 %v281, %v279
  %v362 = vpack.c.b16 %v282, %v280
  %v363 = vpack.c.b16 %v285, %v283
  %v364 = vpack.c.b16 %v286, %v284
  %v365 = vpack.c.b16 %v289, %v287
  %v366 = vpack.c.b16 %v290, %v288
  %v367 = vpack.c.b16 %v293, %v291
  %v368 = vpack.c.b16 %v294, %v292
  %v369 = vpack.c.b16 %v297, %v295
  %v370 = vpack.c.b16 %v298, %v296
  %v371 = vpack.c.b16 %v301, %v299
  %v372 = vpack.c.b16 %v302, %v300
  %v373 = vpack.c.b16 %v305, %v303
  %v374 = vpack.c.b16 %v306, %v304
  %v375 = vpack.c.b16 %v309, %v307
  %v376 = vpack.c.b16 %v310, %v308
  %v377 = vpack.c.b16 %v313, %v311
  %v378 = vpack.c.b16 %v314, %v312
  %443 = vmatprep.subr.bf16.mxu0 %v330
  %444 = vmatpush1.bf16.msra.mxu0 %v329
  %445 = vmatprep.subr.bf16.mxu0 %v328
  %446 = vmatpush1.bf16.msra.mxu0 %v327
  %447 = vmatprep.subr.bf16.mxu0 %v326
  %448 = vmatpush1.bf16.msra.mxu0 %v325
  %449 = vmatprep.subr.bf16.mxu0 %v324
  %450 = vmatpush1.bf16.msra.mxu0 %v323
  %451 = vmatprep.subr.bf16.mxu0 %v322
  %452 = vmatpush1.bf16.msra.mxu0 %v321
  %453 = vmatprep.subr.bf16.mxu0 %v320
  %454 = vmatpush1.bf16.msra.mxu0 %v319
  %455 = vmatprep.subr.bf16.mxu0 %v318
  %456 = vmatpush1.bf16.msra.mxu0 %v317
  %457 = vmatprep.subr.bf16.mxu0 %v316
  %458 = vmatpush1.bf16.msra.mxu0 %v315
  %459 = vmatprep.subr.bf16.mxu0 %v346
  %460 = vmatpush2.bf16.msra.mxu0 %v345
  %461 = vmatprep.subr.bf16.mxu0 %v344
  %462 = vmatpush2.bf16.msra.mxu0 %v343
  %463 = vmatprep.subr.bf16.mxu0 %v342
  %464 = vmatpush2.bf16.msra.mxu0 %v341
  %465 = vmatprep.subr.bf16.mxu0 %v340
  %466 = vmatpush2.bf16.msra.mxu0 %v339
  %467 = vmatprep.subr.bf16.mxu0 %v338
  %468 = vmatpush2.bf16.msra.mxu0 %v337
  %469 = vmatprep.subr.bf16.mxu0 %v336
  %470 = vmatpush2.bf16.msra.mxu0 %v335
  %471 = vmatprep.subr.bf16.mxu0 %v334
  %472 = vmatpush2.bf16.msra.mxu0 %v333
  %473 = vmatprep.subr.bf16.mxu0 %v332
  %474 = vmatpush2.bf16.msra.mxu0 %v331
  %475 = vmatprep.mubr.bf16.mxu0 %v108
  %476 = vmatmul.mubr.bf16.gmra.mxu0 %v107
  %v477 = vpop.f32.mrf.mxu0
  %v478 = vadd.f32 0.0, %v477
  %v479 = vpop.f32.mrf.mxu0
  %v480 = vadd.f32 0.0, %v479
  %v481 = vpop.f32.mrf.mxu0
  %v482 = vadd.f32 0.0, %v481
  %v483 = vpop.f32.mrf.mxu0
  %v484 = vadd.f32 0.0, %v483
  %485 = vmatprep.mubr.bf16.mxu0 %v112
  %486 = vmatmul.mubr.bf16.gmra.mxu0 %v111
  %v487 = vpop.f32.mrf.mxu0
  %v488 = vadd.f32 0.0, %v487
  %v489 = vpop.f32.mrf.mxu0
  %v490 = vadd.f32 0.0, %v489
  %v491 = vpop.f32.mrf.mxu0
  %v492 = vadd.f32 0.0, %v491
  %v493 = vpop.f32.mrf.mxu0
  %v494 = vadd.f32 0.0, %v493
  %495 = vdwg.mxu0
  %496 = vmatprep.subr.bf16.mxu0 %v362
  %497 = vmatpush1.bf16.msra.mxu0 %v361
  %498 = vmatprep.subr.bf16.mxu0 %v360
  %499 = vmatpush1.bf16.msra.mxu0 %v359
  %500 = vmatprep.subr.bf16.mxu0 %v358
  %501 = vmatpush1.bf16.msra.mxu0 %v357
  %502 = vmatprep.subr.bf16.mxu0 %v356
  %503 = vmatpush1.bf16.msra.mxu0 %v355
  %504 = vmatprep.subr.bf16.mxu0 %v354
  %505 = vmatpush1.bf16.msra.mxu0 %v353
  %506 = vmatprep.subr.bf16.mxu0 %v352
  %507 = vmatpush1.bf16.msra.mxu0 %v351
  %508 = vmatprep.subr.bf16.mxu0 %v350
  %509 = vmatpush1.bf16.msra.mxu0 %v349
  %510 = vmatprep.subr.bf16.mxu0 %v348
  %511 = vmatpush1.bf16.msra.mxu0 %v347
  %512 = vmatprep.subr.bf16.mxu0 %v378
  %513 = vmatpush2.bf16.msra.mxu0 %v377
  %514 = vmatprep.subr.bf16.mxu0 %v376
  %515 = vmatpush2.bf16.msra.mxu0 %v375
  %516 = vmatprep.subr.bf16.mxu0 %v374
  %517 = vmatpush2.bf16.msra.mxu0 %v373
  %518 = vmatprep.subr.bf16.mxu0 %v372
  %519 = vmatpush2.bf16.msra.mxu0 %v371
  %520 = vmatprep.subr.bf16.mxu0 %v370
  %521 = vmatpush2.bf16.msra.mxu0 %v369
  %522 = vmatprep.subr.bf16.mxu0 %v368
  %523 = vmatpush2.bf16.msra.mxu0 %v367
  %524 = vmatprep.subr.bf16.mxu0 %v366
  %525 = vmatpush2.bf16.msra.mxu0 %v365
  %526 = vmatprep.subr.bf16.mxu0 %v364
  %527 = vmatpush2.bf16.msra.mxu0 %v363
  %528 = vmatprep.mubr.bf16.mxu0 %v110
  %529 = vmatmul.mubr.bf16.gmra.mxu0 %v109
  %v530 = vpop.f32.mrf.mxu0
  %v531 = vadd.f32 %v478, %v530
  %v532 = vpop.f32.mrf.mxu0
  %v533 = vadd.f32 %v480, %v532
  %v534 = vpop.f32.mrf.mxu0
  %v535 = vadd.f32 %v482, %v534
  %v536 = vpop.f32.mrf.mxu0
  %v537 = vadd.f32 %v484, %v536
  %538 = vmatprep.mubr.bf16.mxu0 %v114
  %539 = vmatmul.mubr.bf16.gmra.mxu0 %v113
  %v540 = vpop.f32.mrf.mxu0
  %v541 = vadd.f32 %v488, %v540
  %v542 = vpop.f32.mrf.mxu0
  %v543 = vadd.f32 %v490, %v542
  %v544 = vpop.f32.mrf.mxu0
  %v545 = vadd.f32 %v492, %v544
  %v546 = vpop.f32.mrf.mxu0
  %v547 = vadd.f32 %v494, %v546
  %548 = vdwg.mxu0
  %v549 = vmul.f32 %v531, %v531
  %v550 = vmul.f32 %v533, %v533
  %v551 = vmul.f32 %v535, %v535
  %v552 = vmul.f32 %v537, %v537
  %v553 = vmul.f32 %v541, %v541
  %v554 = vmul.f32 %v543, %v543
  %v555 = vmul.f32 %v545, %v545
  %v556 = vmul.f32 %v547, %v547
  %v557 = vmul.f32 %v531, %v549
  %v558 = vmul.f32 %v533, %v550
  %v559 = vmul.f32 %v535, %v551
  %v560 = vmul.f32 %v537, %v552
  %v561 = vmul.f32 %v541, %v553
  %v562 = vmul.f32 %v543, %v554
  %v563 = vmul.f32 %v545, %v555
  %v564 = vmul.f32 %v547, %v556
  %v565 = vmul.f32 %v557, 0.044715
  %v566 = vmul.f32 %v558, 0.044715
  %v567 = vmul.f32 %v559, 0.044715
  %v568 = vmul.f32 %v560, 0.044715
  %v569 = vmul.f32 %v561, 0.044715
  %v570 = vmul.f32 %v562, 0.044715
  %v571 = vmul.f32 %v563, 0.044715
  %v572 = vmul.f32 %v564, 0.044715
  %v573 = vadd.f32 %v531, %v565
  %v574 = vadd.f32 %v533, %v566
  %v575 = vadd.f32 %v535, %v567
  %v576 = vadd.f32 %v537, %v568
  %v577 = vadd.f32 %v541, %v569
  %v578 = vadd.f32 %v543, %v570
  %v579 = vadd.f32 %v545, %v571
  %v580 = vadd.f32 %v547, %v572
  %v581 = vmul.f32 %v573, 0.7978846
  %v582 = vmul.f32 %v574, 0.7978846
  %v583 = vmul.f32 %v575, 0.7978846
  %v584 = vmul.f32 %v576, 0.7978846
  %v585 = vmul.f32 %v577, 0.7978846
  %v586 = vmul.f32 %v578, 0.7978846
  %v587 = vmul.f32 %v579, 0.7978846
  %v588 = vmul.f32 %v580, 0.7978846
  %v589 = vtanh.pop %v581
  %v590 = vtanh.pop %v582
  %v591 = vtanh.pop %v583
  %v592 = vtanh.pop %v584
  %v593 = vtanh.pop %v585
  %v594 = vtanh.pop %v586
  %v595 = vtanh.pop %v587
  %v596 = vtanh.pop %v588
  %v597 = vadd.f32 %v589, 1.0
  %v598 = vadd.f32 %v590, 1.0
  %v599 = vadd.f32 %v591, 1.0
  %v600 = vadd.f32 %v592, 1.0
  %v601 = vadd.f32 %v593, 1.0
  %v602 = vadd.f32 %v594, 1.0
  %v603 = vadd.f32 %v595, 1.0
  %v604 = vadd.f32 %v596, 1.0
  %v605 = vmul.f32 %v597, 0.5
  %v606 = vmul.f32 %v598, 0.5
  %v607 = vmul.f32 %v599, 0.5
  %v608 = vmul.f32 %v600, 0.5
  %v609 = vmul.f32 %v601, 0.5
  %v610 = vmul.f32 %v602, 0.5
  %v611 = vmul.f32 %v603, 0.5
  %v612 = vmul.f32 %v604, 0.5
  %v613 = vmul.f32 %v531, %v605
  %v614 = vmul.f32 %v533, %v606
  %v615 = vmul.f32 %v535, %v607
  %v616 = vmul.f32 %v537, %v608
  %v617 = vmul.f32 %v541, %v609
  %v618 = vmul.f32 %v543, %v610
  %v619 = vmul.f32 %v545, %v611
  %v620 = vmul.f32 %v547, %v612
  %v621 = vpack.c.bf16 %v615, %v613
  %v622 = vpack.c.bf16 %v616, %v614
  %v623 = vpack.c.bf16 %v619, %v617
  %v624 = vpack.c.bf16 %v620, %v618
  %v629 = vunpack.c.l.b16 %v621
  %v630 = vunpack.c.l.b16 %v622
  %v631 = vunpack.c.h.b16 %v621
  %v632 = vunpack.c.h.b16 %v622
  %v633 = vunpack.c.l.b16 %v623
  %v634 = vunpack.c.l.b16 %v624
  %v635 = vunpack.c.h.b16 %v623
  %v636 = vunpack.c.h.b16 %v624
  %v637 = vpack.c.b16 %v630, %v629
  %v638 = vpack.c.b16 %v632, %v631
  %v639 = vpack.c.b16 %v634, %v633
  %v640 = vpack.c.b16 %v636, %v635
  %645 = vst [vmem:[%s2] sm:$0xff] %v637
  %646 = vst [vmem:[%s2 + $0x8] sm:$0xff] %v638
  %647 = vst [vmem:[%s2 + $0x10] sm:$0xff] %v639
  %648 = vst [vmem:[%s2 + $0x18] sm:$0xff] %v640
  // Predicated region
  $region10: #{mitcls_seg_forward.7} parent=0 // pred_check
    _
  $region11: #{mitcls_seg_forward.7} parent=0 // pred_check_branch
    %650 = sbr.rel (0) target = $region13
  $region12: #{mitcls_seg_forward.7} parent=0 // pred_region
    _
  $region13: #{mitcls_seg_forward.7} parent=0 // pred_fallthru
    _
  // Predicated region
  $region14: #{mitcls_seg_forward.7} parent=0 // pred_check
    _
  $region15: #{mitcls_seg_forward.7} parent=0 // pred_check_branch
    %652 = sbr.rel (0) target = $region17
  $region16: #{mitcls_seg_forward.7} parent=0 // pred_region
    _
  $region17: #{mitcls_seg_forward.7} parent=0 // pred_fallthru
    _

// kernel: mitcls_seg_forward.9
$region0: #{mitcls_seg_forward.9}
  #allocation0 [shape = 'u32[]', space=smem, size = 0x4, offset = 0x4, fixed_abs, tag = 'smem constant byte address 0x4 - core index']
  #allocation1 [shape = 'u32[144,128]{1,0:T(1,128)}', space=vmem, size = 0x12000, scoped, tag = 'internal scratch']
  #allocation2 [shape = 'f32[2,256]{1,0:T(2,128)}', space=vmem, size = 0x800, scoped, tag = 'scratch operand']
  %s0 = inlined_call_operand.vmem [shape: bf16[2,4,256], index: 0, kind: input, shape index: {}]
  %s1 = inlined_call_operand.vmem [shape: bf16[256,128], index: 1, kind: input, shape index: {}]
  %s2 = inlined_call_operand.hbm [shape: f32[2,128], index: 2, kind: output, shape index: {}]
  %s3 = sld [smem:[#allocation0]]
  $region26: #{mitcls_seg_forward.9} parent=0
    _
  %s5 = ssub.s32 1, %s3
  %s6 = scalar_select 0, %s5, %s3
  $region1: #{mitcls_seg_forward.9} parent=0
    #allocation3 [shape = 'u8[1024]{0}', space=vmem, size = 0x400, scoped, tag = 'output window, operand 0, single buffered']
    #allocation4 [shape = 's32[1]{0}', space=sflag, size = 0x4, scoped, tag = 'scoped memory for mitcls_seg_forward.9']
    %7 = vsyncpa [#allocation4], 0
    // Predicated region
    $region2: #{mitcls_seg_forward.9} parent=1 // pred_check
      _
    $region3: #{mitcls_seg_forward.9} parent=1 // pred_check_branch
      %9 = sbr.rel (0) target = $region5
    $region4: #{mitcls_seg_forward.9} parent=1 // pred_region
      _
    $region5: #{mitcls_seg_forward.9} parent=1 // pred_fallthru
      _
    // Predicated region
    $region6: #{mitcls_seg_forward.9} parent=1 // pred_check
      _
    $region7: #{mitcls_seg_forward.9} parent=1 // pred_check_branch
      %11 = sbr.rel (0) target = $region9
    $region8: #{mitcls_seg_forward.9} parent=1 // pred_region
      _
    $region9: #{mitcls_seg_forward.9} parent=1 // pred_fallthru
      _
    %p13 = scmp.eq.s32.totalorder 0, 0
    // Predicated region
    $region10: #{mitcls_seg_forward.9} parent=1 // pred_check
      %p14 = pneg %p13
    $region11: #{mitcls_seg_forward.9} parent=1 // pred_check_branch
      %16 = sbr.rel (%p14) target = $region13
    $region12: #{mitcls_seg_forward.9} parent=1 // pred_region
      %17 = vst [vmem:[#allocation2] sm:$0xf] -inf
    $region13: #{mitcls_seg_forward.9} parent=1 // pred_fallthru
      _
    %v18 = vld [vmem:[%s0] sm:$0xf]
    %v19 = vld [vmem:[%s0 + $0x4] sm:$0xf]
    %v20 = vunpack.c.l.bf16 %v18
    %v21 = vunpack.c.l.bf16 %v19
    %v23 = vcombine.high %v20, %v20
    %vm25 = vcmask 1043456
    %v26 = vsel %vm25, %v20, -inf
    %v27 = vrot.slane %v26, 4
    %v28 = vmax.f32 %v26, %v27
    %v29 = vrot.slane %v28, 2
    %v30 = vmax.f32 %v28, %v29
    %v31 = vrot.slane %v30, 1
    %v32 = vmax.f32 %v30, %v31
    %v33 = vsel %vm25, %v23, -inf
    %v34 = vrot.slane %v33, 4
    %v35 = vmax.f32 %v33, %v34
    %v36 = vrot.slane %v35, 2
    %v37 = vmax.f32 %v35, %v36
    %v38 = vrot.slane %v37, 1
    %v39 = vmax.f32 %v37, %v38
    %v41 = vcombine.high %v21, %v21
    %v43 = vsel %vm25, %v21, -inf
    %v44 = vrot.slane %v43, 4
    %v45 = vmax.f32 %v43, %v44
    %v46 = vrot.slane %v45, 2
    %v47 = vmax.f32 %v45, %v46
    %v48 = vrot.slane %v47, 1
    %v49 = vmax.f32 %v47, %v48
    %v50 = vsel %vm25, %v41, -inf
    %v51 = vrot.slane %v50, 4
    %v52 = vmax.f32 %v50, %v51
    %v53 = vrot.slane %v52, 2
    %v54 = vmax.f32 %v52, %v53
    %v55 = vrot.slane %v54, 1
    %v56 = vmax.f32 %v54, %v55
    %v57 = vld [vmem:[#allocation2] sm:$0xf]
    %vm58 = vcmask 1040384
    %v59 = vsel %vm58, %v32, %v49
    %v60 = vsel %vm58, %v39, %v56
    %v63 = vcombine.low %v59, %v60
    %v65 = vunpack.c.l.s4 1983009808
    %v66 = vunpack.c.0.s8 %v65
    %v67 = vlaneseq
    %v68 = vshrl.u32 %v67, 7
    %v69 = vsub.s32 %v66, %v68
    %v70 = vrot.slane %v63, %v69
    %v72 = vmax.f32 %v57, %v70
    %73 = vst [vmem:[#allocation2] sm:$0xf] %v72
    // Predicated region
    $region14: #{mitcls_seg_forward.9} parent=1 // pred_check
      %p74 = pneg %p13
    $region15: #{mitcls_seg_forward.9} parent=1 // pred_check_branch
      %76 = sbr.rel (%p74) target = $region17
    $region16: #{mitcls_seg_forward.9} parent=1 // pred_region
      %v77 = vld [vmem:[#allocation2] sm:$0xf]
      %v80 = vunpack.c.l.s4 1983009808
      %v81 = vunpack.c.0.s8 %v80
      %v82 = vlaneseq
      %v83 = vshrl.u32 %v82, 7
      %v84 = vsub.s32 %v81, %v83
      %v85 = vrot.slane %v77, %v84
      %v86 = vcombine.high %v85, %v85
      %v89 = vpack.c.bf16 %v85, %v85
      %v90 = vpack.c.bf16 %v86, %v86
      %v91 = vld [vmem:[%s1] sm:$0xf]
      %v92 = vld [vmem:[%s1 + $0x4] sm:$0xf]
      %v93 = vld [vmem:[%s1 + $0x8] sm:$0xf]
      %v94 = vld [vmem:[%s1 + $0xc] sm:$0xf]
      %v95 = vld [vmem:[%s1 + $0x10] sm:$0xf]
      %v96 = vld [vmem:[%s1 + $0x14] sm:$0xf]
      %v97 = vld [vmem:[%s1 + $0x18] sm:$0xf]
      %v98 = vld [vmem:[%s1 + $0x1c] sm:$0xf]
      %v99 = vld [vmem:[%s1 + $0x20] sm:$0xf]
      %v100 = vld [vmem:[%s1 + $0x24] sm:$0xf]
      %v101 = vld [vmem:[%s1 + $0x28] sm:$0xf]
      %v102 = vld [vmem:[%s1 + $0x2c] sm:$0xf]
      %v103 = vld [vmem:[%s1 + $0x30] sm:$0xf]
      %v104 = vld [vmem:[%s1 + $0x34] sm:$0xf]
      %v105 = vld [vmem:[%s1 + $0x38] sm:$0xf]
      %v106 = vld [vmem:[%s1 + $0x3c] sm:$0xf]
      %v107 = vld [vmem:[%s1 + $0x40] sm:$0xf]
      %v108 = vld [vmem:[%s1 + $0x44] sm:$0xf]
      %v109 = vld [vmem:[%s1 + $0x48] sm:$0xf]
      %v110 = vld [vmem:[%s1 + $0x4c] sm:$0xf]
      %v111 = vld [vmem:[%s1 + $0x50] sm:$0xf]
      %v112 = vld [vmem:[%s1 + $0x54] sm:$0xf]
      %v113 = vld [vmem:[%s1 + $0x58] sm:$0xf]
      %v114 = vld [vmem:[%s1 + $0x5c] sm:$0xf]
      %v115 = vld [vmem:[%s1 + $0x60] sm:$0xf]
      %v116 = vld [vmem:[%s1 + $0x64] sm:$0xf]
      %v117 = vld [vmem:[%s1 + $0x68] sm:$0xf]
      %v118 = vld [vmem:[%s1 + $0x6c] sm:$0xf]
      %v119 = vld [vmem:[%s1 + $0x70] sm:$0xf]
      %v120 = vld [vmem:[%s1 + $0x74] sm:$0xf]
      %v121 = vld [vmem:[%s1 + $0x78] sm:$0xf]
      %v122 = vld [vmem:[%s1 + $0x7c] sm:$0xf]
      %v155 = vunpack.c.l.b16 %v91
      %v156 = vunpack.c.l.b16 %v92
      %v157 = vunpack.c.l.b16 %v93
      %v158 = vunpack.c.l.b16 %v94
      %v159 = vunpack.c.l.b16 %v95
      %v160 = vunpack.c.l.b16 %v96
      %v161 = vunpack.c.l.b16 %v97
      %v162 = vunpack.c.l.b16 %v98
      %v163 = vunpack.c.l.b16 %v99
      %v164 = vunpack.c.l.b16 %v100
      %v165 = vunpack.c.l.b16 %v101
      %v166 = vunpack.c.l.b16 %v102
      %v167 = vunpack.c.l.b16 %v103
      %v168 = vunpack.c.l.b16 %v104
      %v169 = vunpack.c.l.b16 %v105
      %v170 = vunpack.c.l.b16 %v106
      %v171 = vunpack.c.l.b16 %v107
      %v172 = vunpack.c.l.b16 %v108
      %v173 = vunpack.c.l.b16 %v109
      %v174 = vunpack.c.l.b16 %v110
      %v175 = vunpack.c.l.b16 %v111
      %v176 = vunpack.c.l.b16 %v112
      %v177 = vunpack.c.l.b16 %v113
      %v178 = vunpack.c.l.b16 %v114
      %v179 = vunpack.c.l.b16 %v115
      %v180 = vunpack.c.l.b16 %v116
      %v181 = vunpack.c.l.b16 %v117
      %v182 = vunpack.c.l.b16 %v118
      %v183 = vunpack.c.l.b16 %v119
      %v184 = vunpack.c.l.b16 %v120
      %v185 = vunpack.c.l.b16 %v121
      %v186 = vunpack.c.l.b16 %v122
      %v187 = vpack.c.b16 %v156, %v155
      %v188 = vpack.c.b16 %v158, %v157
      %v189 = vpack.c.b16 %v160, %v159
      %v190 = vpack.c.b16 %v162, %v161
      %v191 = vpack.c.b16 %v164, %v163
      %v192 = vpack.c.b16 %v166, %v165
      %v193 = vpack.c.b16 %v168, %v167
      %v194 = vpack.c.b16 %v170, %v169
      %v195 = vpack.c.b16 %v172, %v171
      %v196 = vpack.c.b16 %v174, %v173
      %v197 = vpack.c.b16 %v176, %v175
      %v198 = vpack.c.b16 %v178, %v177
      %v199 = vpack.c.b16 %v180, %v179
      %v200 = vpack.c.b16 %v182, %v181
      %v201 = vpack.c.b16 %v184, %v183
      %v202 = vpack.c.b16 %v186, %v185
      %219 = vmatprep.subr.bf16.mxu0 0
      %220 = vmatpush1.bf16.msra.mxu0 %v194
      %221 = vmatprep.subr.bf16.mxu0 0
      %222 = vmatpush1.bf16.msra.mxu0 %v193
      %223 = vmatprep.subr.bf16.mxu0 0
      %224 = vmatpush1.bf16.msra.mxu0 %v192
      %225 = vmatprep.subr.bf16.mxu0 0
      %226 = vmatpush1.bf16.msra.mxu0 %v191
      %227 = vmatprep.subr.bf16.mxu0 0
      %228 = vmatpush1.bf16.msra.mxu0 %v190
      %229 = vmatprep.subr.bf16.mxu0 0
      %230 = vmatpush1.bf16.msra.mxu0 %v189
      %231 = vmatprep.subr.bf16.mxu0 0
      %232 = vmatpush1.bf16.msra.mxu0 %v188
      %233 = vmatprep.subr.bf16.mxu0 0
      %234 = vmatpush1.bf16.msra.mxu0 %v187
      %235 = vmatprep.subr.bf16.mxu0 0
      %236 = vmatpush2.bf16.msra.mxu0 %v202
      %237 = vmatprep.subr.bf16.mxu0 0
      %238 = vmatpush2.bf16.msra.mxu0 %v201
      %239 = vmatprep.subr.bf16.mxu0 0
      %240 = vmatpush2.bf16.msra.mxu0 %v200
      %241 = vmatprep.subr.bf16.mxu0 0
      %242 = vmatpush2.bf16.msra.mxu0 %v199
      %243 = vmatprep.subr.bf16.mxu0 0
      %244 = vmatpush2.bf16.msra.mxu0 %v198
      %245 = vmatprep.subr.bf16.mxu0 0
      %246 = vmatpush2.bf16.msra.mxu0 %v197
      %247 = vmatprep.subr.bf16.mxu0 0
      %248 = vmatpush2.bf16.msra.mxu0 %v196
      %249 = vmatprep.subr.bf16.mxu0 0
      %250 = vmatpush2.bf16.msra.mxu0 %v195
      %251 = vmatprep.mubr.bf16.mxu0 %v90
      %252 = vmatmul.mubr.bf16.gmra.mxu0 %v89
      %v253 = vpop.f32.mrf.mxu0
      %v254 = vadd.f32 0.0, %v253
      %v255 = vpop.f32.mrf.mxu0
      %v256 = vpop.f32.mrf.mxu0
      %v257 = vpop.f32.mrf.mxu0
      %258 = vdwg.mxu0
      %259 = vst [vmem:[#allocation3] sm:$0x3] %v254
    $region17: #{mitcls_seg_forward.9} parent=1 // pred_fallthru
      _
    // Predicated region
    $region18: #{mitcls_seg_forward.9} parent=1 // pred_check
      _
    $region19: #{mitcls_seg_forward.9} parent=1 // pred_check_branch
      %261 = sbr.rel (0) target = $region21
    $region20: #{mitcls_seg_forward.9} parent=1 // pred_region
      %s263 = ssub.s32 32, 32
      %264 = vsyncadd [#allocation4], %s263
      %s266 = sshll.u32 [#allocation3], 4
      %s267 = int_to_ptr.vmem [resolvable:$true] %s266
      %269 = dma.vmem_to_hbm [thread:$0]  %s267, 32, %s2, [#allocation4]
    $region21: #{mitcls_seg_forward.9} parent=1 // pred_fallthru
      _
    // Predicated region
    $region22: #{mitcls_seg_forward.9} parent=1 // pred_check
      _
    $region23: #{mitcls_seg_forward.9} parent=1 // pred_check_branch
      %271 = sbr.rel (0) target = $region25
    $region24: #{mitcls_seg_forward.9} parent=1 // pred_region
      %272 = dma.done [#allocation4], 32
    $region25: #{mitcls_seg_forward.9} parent=1 // pred_fallthru
      _
    %273 = vsyncpa [#allocation4], 1

// kernel: mitcls_seg_forward.8
$region0: #{mitcls_seg_forward.8}
  #allocation0 [shape = 'u32[]', space=smem, size = 0x4, offset = 0x4, fixed_abs, tag = 'smem constant byte address 0x4 - core index']
  #allocation1 [shape = 'u32[144,128]{1,0:T(1,128)}', space=vmem, size = 0x12000, scoped, tag = 'internal scratch']
  %s0 = inlined_call_operand.vmem [shape: bf16[8,1024], index: 0, kind: input, shape index: {}]
  %s1 = inlined_call_operand.vmem [shape: bf16[1024,256], index: 1, kind: input, shape index: {}]
  %s2 = inlined_call_operand.vmem [shape: bf16[8,256], index: 2, kind: output, shape index: {}]
  %s3 = sld [smem:[#allocation0]]
  $region18: #{mitcls_seg_forward.8} parent=0
    _
  %s5 = ssub.s32 1, %s3
  %s6 = scalar_select 0, %s5, %s3
  // Predicated region
  $region2: #{mitcls_seg_forward.8} parent=0 // pred_check
    _
  $region3: #{mitcls_seg_forward.8} parent=0 // pred_check_branch
    %8 = sbr.rel (0) target = $region5
  $region4: #{mitcls_seg_forward.8} parent=0 // pred_region
    _
  $region5: #{mitcls_seg_forward.8} parent=0 // pred_fallthru
    _
  // Predicated region
  $region6: #{mitcls_seg_forward.8} parent=0 // pred_check
    _
  $region7: #{mitcls_seg_forward.8} parent=0 // pred_check_branch
    %10 = sbr.rel (0) target = $region9
  $region8: #{mitcls_seg_forward.8} parent=0 // pred_region
    _
  $region9: #{mitcls_seg_forward.8} parent=0 // pred_fallthru
    _
  %v11 = vld [vmem:[%s0] sm:$0xff]
  %v12 = vld [vmem:[%s0 + $0x8] sm:$0xff]
  %v13 = vld [vmem:[%s0 + $0x10] sm:$0xff]
  %v14 = vld [vmem:[%s0 + $0x18] sm:$0xff]
  %v15 = vld [vmem:[%s1] sm:$0xff]
  %v16 = vld [vmem:[%s1 + $0x8] sm:$0xff]
  %v17 = vld [vmem:[%s1 + $0x10] sm:$0xff]
  %v18 = vld [vmem:[%s1 + $0x18] sm:$0xff]
  %v19 = vld [vmem:[%s1 + $0x20] sm:$0xff]
  %v20 = vld [vmem:[%s1 + $0x28] sm:$0xff]
  %v21 = vld [vmem:[%s1 + $0x30] sm:$0xff]
  %v22 = vld [vmem:[%s1 + $0x38] sm:$0xff]
  %v23 = vld [vmem:[%s1 + $0x40] sm:$0xff]
  %v24 = vld [vmem:[%s1 + $0x48] sm:$0xff]
  %v25 = vld [vmem:[%s1 + $0x50] sm:$0xff]
  %v26 = vld [vmem:[%s1 + $0x58] sm:$0xff]
  %v27 = vld [vmem:[%s1 + $0x60] sm:$0xff]
  %v28 = vld [vmem:[%s1 + $0x68] sm:$0xff]
  %v29 = vld [vmem:[%s1 + $0x70] sm:$0xff]
  %v30 = vld [vmem:[%s1 + $0x78] sm:$0xff]
  %v31 = vld [vmem:[%s1 + $0x80] sm:$0xff]
  %v32 = vld [vmem:[%s1 + $0x88] sm:$0xff]
  %v33 = vld [vmem:[%s1 + $0x90] sm:$0xff]
  %v34 = vld [vmem:[%s1 + $0x98] sm:$0xff]
  %v35 = vld [vmem:[%s1 + $0xa0] sm:$0xff]
  %v36 = vld [vmem:[%s1 + $0xa8] sm:$0xff]
  %v37 = vld [vmem:[%s1 + $0xb0] sm:$0xff]
  %v38 = vld [vmem:[%s1 + $0xb8] sm:$0xff]
  %v39 = vld [vmem:[%s1 + $0xc0] sm:$0xff]
  %v40 = vld [vmem:[%s1 + $0xc8] sm:$0xff]
  %v41 = vld [vmem:[%s1 + $0xd0] sm:$0xff]
  %v42 = vld [vmem:[%s1 + $0xd8] sm:$0xff]
  %v43 = vld [vmem:[%s1 + $0xe0] sm:$0xff]
  %v44 = vld [vmem:[%s1 + $0xe8] sm:$0xff]
  %v45 = vld [vmem:[%s1 + $0xf0] sm:$0xff]
  %v46 = vld [vmem:[%s1 + $0xf8] sm:$0xff]
  %v47 = vld [vmem:[%s1 + $0x100] sm:$0xff]
  %v48 = vld [vmem:[%s1 + $0x108] sm:$0xff]
  %v49 = vld [vmem:[%s1 + $0x110] sm:$0xff]
  %v50 = vld [vmem:[%s1 + $0x118] sm:$0xff]
  %v51 = vld [vmem:[%s1 + $0x120] sm:$0xff]
  %v52 = vld [vmem:[%s1 + $0x128] sm:$0xff]
  %v53 = vld [vmem:[%s1 + $0x130] sm:$0xff]
  %v54 = vld [vmem:[%s1 + $0x138] sm:$0xff]
  %v55 = vld [vmem:[%s1 + $0x140] sm:$0xff]
  %v56 = vld [vmem:[%s1 + $0x148] sm:$0xff]
  %v57 = vld [vmem:[%s1 + $0x150] sm:$0xff]
  %v58 = vld [vmem:[%s1 + $0x158] sm:$0xff]
  %v59 = vld [vmem:[%s1 + $0x160] sm:$0xff]
  %v60 = vld [vmem:[%s1 + $0x168] sm:$0xff]
  %v61 = vld [vmem:[%s1 + $0x170] sm:$0xff]
  %v62 = vld [vmem:[%s1 + $0x178] sm:$0xff]
  %v63 = vld [vmem:[%s1 + $0x180] sm:$0xff]
  %v64 = vld [vmem:[%s1 + $0x188] sm:$0xff]
  %v65 = vld [vmem:[%s1 + $0x190] sm:$0xff]
  %v66 = vld [vmem:[%s1 + $0x198] sm:$0xff]
  %v67 = vld [vmem:[%s1 + $0x1a0] sm:$0xff]
  %v68 = vld [vmem:[%s1 + $0x1a8] sm:$0xff]
  %v69 = vld [vmem:[%s1 + $0x1b0] sm:$0xff]
  %v70 = vld [vmem:[%s1 + $0x1b8] sm:$0xff]
  %v71 = vld [vmem:[%s1 + $0x1c0] sm:$0xff]
  %v72 = vld [vmem:[%s1 + $0x1c8] sm:$0xff]
  %v73 = vld [vmem:[%s1 + $0x1d0] sm:$0xff]
  %v74 = vld [vmem:[%s1 + $0x1d8] sm:$0xff]
  %v75 = vld [vmem:[%s1 + $0x1e0] sm:$0xff]
  %v76 = vld [vmem:[%s1 + $0x1e8] sm:$0xff]
  %v77 = vld [vmem:[%s1 + $0x1f0] sm:$0xff]
  %v78 = vld [vmem:[%s1 + $0x1f8] sm:$0xff]
  %v79 = vld [vmem:[%s1 + $0x200] sm:$0xff]
  %v80 = vld [vmem:[%s1 + $0x208] sm:$0xff]
  %v81 = vld [vmem:[%s1 + $0x210] sm:$0xff]
  %v82 = vld [vmem:[%s1 + $0x218] sm:$0xff]
  %v83 = vld [vmem:[%s1 + $0x220] sm:$0xff]
  %v84 = vld [vmem:[%s1 + $0x228] sm:$0xff]
  %v85 = vld [vmem:[%s1 + $0x230] sm:$0xff]
  %v86 = vld [vmem:[%s1 + $0x238] sm:$0xff]
  %v87 = vld [vmem:[%s1 + $0x240] sm:$0xff]
  %v88 = vld [vmem:[%s1 + $0x248] sm:$0xff]
  %v89 = vld [vmem:[%s1 + $0x250] sm:$0xff]
  %v90 = vld [vmem:[%s1 + $0x258] sm:$0xff]
  %v91 = vld [vmem:[%s1 + $0x260] sm:$0xff]
  %v92 = vld [vmem:[%s1 + $0x268] sm:$0xff]
  %v93 = vld [vmem:[%s1 + $0x270] sm:$0xff]
  %v94 = vld [vmem:[%s1 + $0x278] sm:$0xff]
  %v95 = vld [vmem:[%s1 + $0x280] sm:$0xff]
  %v96 = vld [vmem:[%s1 + $0x288] sm:$0xff]
  %v97 = vld [vmem:[%s1 + $0x290] sm:$0xff]
  %v98 = vld [vmem:[%s1 + $0x298] sm:$0xff]
  %v99 = vld [vmem:[%s1 + $0x2a0] sm:$0xff]
  %v100 = vld [vmem:[%s1 + $0x2a8] sm:$0xff]
  %v101 = vld [vmem:[%s1 + $0x2b0] sm:$0xff]
  %v102 = vld [vmem:[%s1 + $0x2b8] sm:$0xff]
  %v103 = vld [vmem:[%s1 + $0x2c0] sm:$0xff]
  %v104 = vld [vmem:[%s1 + $0x2c8] sm:$0xff]
  %v105 = vld [vmem:[%s1 + $0x2d0] sm:$0xff]
  %v106 = vld [vmem:[%s1 + $0x2d8] sm:$0xff]
  %v107 = vld [vmem:[%s1 + $0x2e0] sm:$0xff]
  %v108 = vld [vmem:[%s1 + $0x2e8] sm:$0xff]
  %v109 = vld [vmem:[%s1 + $0x2f0] sm:$0xff]
  %v110 = vld [vmem:[%s1 + $0x2f8] sm:$0xff]
  %v111 = vld [vmem:[%s1 + $0x300] sm:$0xff]
  %v112 = vld [vmem:[%s1 + $0x308] sm:$0xff]
  %v113 = vld [vmem:[%s1 + $0x310] sm:$0xff]
  %v114 = vld [vmem:[%s1 + $0x318] sm:$0xff]
  %v115 = vld [vmem:[%s1 + $0x320] sm:$0xff]
  %v116 = vld [vmem:[%s1 + $0x328] sm:$0xff]
  %v117 = vld [vmem:[%s1 + $0x330] sm:$0xff]
  %v118 = vld [vmem:[%s1 + $0x338] sm:$0xff]
  %v119 = vld [vmem:[%s1 + $0x340] sm:$0xff]
  %v120 = vld [vmem:[%s1 + $0x348] sm:$0xff]
  %v121 = vld [vmem:[%s1 + $0x350] sm:$0xff]
  %v122 = vld [vmem:[%s1 + $0x358] sm:$0xff]
  %v123 = vld [vmem:[%s1 + $0x360] sm:$0xff]
  %v124 = vld [vmem:[%s1 + $0x368] sm:$0xff]
  %v125 = vld [vmem:[%s1 + $0x370] sm:$0xff]
  %v126 = vld [vmem:[%s1 + $0x378] sm:$0xff]
  %v127 = vld [vmem:[%s1 + $0x380] sm:$0xff]
  %v128 = vld [vmem:[%s1 + $0x388] sm:$0xff]
  %v129 = vld [vmem:[%s1 + $0x390] sm:$0xff]
  %v130 = vld [vmem:[%s1 + $0x398] sm:$0xff]
  %v131 = vld [vmem:[%s1 + $0x3a0] sm:$0xff]
  %v132 = vld [vmem:[%s1 + $0x3a8] sm:$0xff]
  %v133 = vld [vmem:[%s1 + $0x3b0] sm:$0xff]
  %v134 = vld [vmem:[%s1 + $0x3b8] sm:$0xff]
  %v135 = vld [vmem:[%s1 + $0x3c0] sm:$0xff]
  %v136 = vld [vmem:[%s1 + $0x3c8] sm:$0xff]
  %v137 = vld [vmem:[%s1 + $0x3d0] sm:$0xff]
  %v138 = vld [vmem:[%s1 + $0x3d8] sm:$0xff]
  %v139 = vld [vmem:[%s1 + $0x3e0] sm:$0xff]
  %v140 = vld [vmem:[%s1 + $0x3e8] sm:$0xff]
  %v141 = vld [vmem:[%s1 + $0x3f0] sm:$0xff]
  %v142 = vld [vmem:[%s1 + $0x3f8] sm:$0xff]
  %v147 = vunpack.c.l.b16 %v11
  %v148 = vunpack.c.h.b16 %v11
  %v149 = vunpack.c.l.b16 %v12
  %v150 = vunpack.c.h.b16 %v12
  %v151 = vunpack.c.l.b16 %v13
  %v152 = vunpack.c.h.b16 %v13
  %v153 = vunpack.c.l.b16 %v14
  %v154 = vunpack.c.h.b16 %v14
  %v155 = vpack.c.b16 %v147, %v147
  %v156 = vpack.c.b16 %v148, %v148
  %v157 = vpack.c.b16 %v149, %v149
  %v158 = vpack.c.b16 %v150, %v150
  %v159 = vpack.c.b16 %v151, %v151
  %v160 = vpack.c.b16 %v152, %v152
  %v161 = vpack.c.b16 %v153, %v153
  %v162 = vpack.c.b16 %v154, %v154
  %v299 = vunpack.c.l.b16 %v15
  %v300 = vunpack.c.h.b16 %v15
  %v301 = vunpack.c.l.b16 %v16
  %v302 = vunpack.c.h.b16 %v16
  %v303 = vunpack.c.l.b16 %v17
  %v304 = vunpack.c.h.b16 %v17
  %v305 = vunpack.c.l.b16 %v18
  %v306 = vunpack.c.h.b16 %v18
  %v307 = vunpack.c.l.b16 %v19
  %v308 = vunpack.c.h.b16 %v19
  %v309 = vunpack.c.l.b16 %v20
  %v310 = vunpack.c.h.b16 %v20
  %v311 = vunpack.c.l.b16 %v21
  %v312 = vunpack.c.h.b16 %v21
  %v313 = vunpack.c.l.b16 %v22
  %v314 = vunpack.c.h.b16 %v22
  %v315 = vunpack.c.l.b16 %v23
  %v316 = vunpack.c.h.b16 %v23
  %v317 = vunpack.c.l.b16 %v24
  %v318 = vunpack.c.h.b16 %v24
  %v319 = vunpack.c.l.b16 %v25
  %v320 = vunpack.c.h.b16 %v25
  %v321 = vunpack.c.l.b16 %v26
  %v322 = vunpack.c.h.b16 %v26
  %v323 = vunpack.c.l.b16 %v27
  %v324 = vunpack.c.h.b16 %v27
  %v325 = vunpack.c.l.b16 %v28
  %v326 = vunpack.c.h.b16 %v28
  %v327 = vunpack.c.l.b16 %v29
  %v328 = vunpack.c.h.b16 %v29
  %v329 = vunpack.c.l.b16 %v30
  %v330 = vunpack.c.h.b16 %v30
  %v331 = vunpack.c.l.b16 %v31
  %v332 = vunpack.c.h.b16 %v31
  %v333 = vunpack.c.l.b16 %v32
  %v334 = vunpack.c.h.b16 %v32
  %v335 = vunpack.c.l.b16 %v33
  %v336 = vunpack.c.h.b16 %v33
  %v337 = vunpack.c.l.b16 %v34
  %v338 = vunpack.c.h.b16 %v34
  %v339 = vunpack.c.l.b16 %v35
  %v340 = vunpack.c.h.b16 %v35
  %v341 = vunpack.c.l.b16 %v36
  %v342 = vunpack.c.h.b16 %v36
  %v343 = vunpack.c.l.b16 %v37
  %v344 = vunpack.c.h.b16 %v37
  %v345 = vunpack.c.l.b16 %v38
  %v346 = vunpack.c.h.b16 %v38
  %v347 = vunpack.c.l.b16 %v39
  %v348 = vunpack.c.h.b16 %v39
  %v349 = vunpack.c.l.b16 %v40
  %v350 = vunpack.c.h.b16 %v40
  %v351 = vunpack.c.l.b16 %v41
  %v352 = vunpack.c.h.b16 %v41
  %v353 = vunpack.c.l.b16 %v42
  %v354 = vunpack.c.h.b16 %v42
  %v355 = vunpack.c.l.b16 %v43
  %v356 = vunpack.c.h.b16 %v43
  %v357 = vunpack.c.l.b16 %v44
  %v358 = vunpack.c.h.b16 %v44
  %v359 = vunpack.c.l.b16 %v45
  %v360 = vunpack.c.h.b16 %v45
  %v361 = vunpack.c.l.b16 %v46
  %v362 = vunpack.c.h.b16 %v46
  %v363 = vunpack.c.l.b16 %v47
  %v364 = vunpack.c.h.b16 %v47
  %v365 = vunpack.c.l.b16 %v48
  %v366 = vunpack.c.h.b16 %v48
  %v367 = vunpack.c.l.b16 %v49
  %v368 = vunpack.c.h.b16 %v49
  %v369 = vunpack.c.l.b16 %v50
  %v370 = vunpack.c.h.b16 %v50
  %v371 = vunpack.c.l.b16 %v51
  %v372 = vunpack.c.h.b16 %v51
  %v373 = vunpack.c.l.b16 %v52
  %v374 = vunpack.c.h.b16 %v52
  %v375 = vunpack.c.l.b16 %v53
  %v376 = vunpack.c.h.b16 %v53
  %v377 = vunpack.c.l.b16 %v54
  %v378 = vunpack.c.h.b16 %v54
  %v379 = vunpack.c.l.b16 %v55
  %v380 = vunpack.c.h.b16 %v55
  %v381 = vunpack.c.l.b16 %v56
  %v382 = vunpack.c.h.b16 %v56
  %v383 = vunpack.c.l.b16 %v57
  %v384 = vunpack.c.h.b16 %v57
  %v385 = vunpack.c.l.b16 %v58
  %v386 = vunpack.c.h.b16 %v58
  %v387 = vunpack.c.l.b16 %v59
  %v388 = vunpack.c.h.b16 %v59
  %v389 = vunpack.c.l.b16 %v60
  %v390 = vunpack.c.h.b16 %v60
  %v391 = vunpack.c.l.b16 %v61
  %v392 = vunpack.c.h.b16 %v61
  %v393 = vunpack.c.l.b16 %v62
  %v394 = vunpack.c.h.b16 %v62
  %v395 = vunpack.c.l.b16 %v63
  %v396 = vunpack.c.h.b16 %v63
  %v397 = vunpack.c.l.b16 %v64
  %v398 = vunpack.c.h.b16 %v64
  %v399 = vunpack.c.l.b16 %v65
  %v400 = vunpack.c.h.b16 %v65
  %v401 = vunpack.c.l.b16 %v66
  %v402 = vunpack.c.h.b16 %v66
  %v403 = vunpack.c.l.b16 %v67
  %v404 = vunpack.c.h.b16 %v67
  %v405 = vunpack.c.l.b16 %v68
  %v406 = vunpack.c.h.b16 %v68
  %v407 = vunpack.c.l.b16 %v69
  %v408 = vunpack.c.h.b16 %v69
  %v409 = vunpack.c.l.b16 %v70
  %v410 = vunpack.c.h.b16 %v70
  %v411 = vunpack.c.l.b16 %v71
  %v412 = vunpack.c.h.b16 %v71
  %v413 = vunpack.c.l.b16 %v72
  %v414 = vunpack.c.h.b16 %v72
  %v415 = vunpack.c.l.b16 %v73
  %v416 = vunpack.c.h.b16 %v73
  %v417 = vunpack.c.l.b16 %v74
  %v418 = vunpack.c.h.b16 %v74
  %v419 = vunpack.c.l.b16 %v75
  %v420 = vunpack.c.h.b16 %v75
  %v421 = vunpack.c.l.b16 %v76
  %v422 = vunpack.c.h.b16 %v76
  %v423 = vunpack.c.l.b16 %v77
  %v424 = vunpack.c.h.b16 %v77
  %v425 = vunpack.c.l.b16 %v78
  %v426 = vunpack.c.h.b16 %v78
  %v427 = vunpack.c.l.b16 %v79
  %v428 = vunpack.c.h.b16 %v79
  %v429 = vunpack.c.l.b16 %v80
  %v430 = vunpack.c.h.b16 %v80
  %v431 = vunpack.c.l.b16 %v81
  %v432 = vunpack.c.h.b16 %v81
  %v433 = vunpack.c.l.b16 %v82
  %v434 = vunpack.c.h.b16 %v82
  %v435 = vunpack.c.l.b16 %v83
  %v436 = vunpack.c.h.b16 %v83
  %v437 = vunpack.c.l.b16 %v84
  %v438 = vunpack.c.h.b16 %v84
  %v439 = vunpack.c.l.b16 %v85
  %v440 = vunpack.c.h.b16 %v85
  %v441 = vunpack.c.l.b16 %v86
  %v442 = vunpack.c.h.b16 %v86
  %v443 = vunpack.c.l.b16 %v87
  %v444 = vunpack.c.h.b16 %v87
  %v445 = vunpack.c.l.b16 %v88
  %v446 = vunpack.c.h.b16 %v88
  %v447 = vunpack.c.l.b16 %v89
  %v448 = vunpack.c.h.b16 %v89
  %v449 = vunpack.c.l.b16 %v90
  %v450 = vunpack.c.h.b16 %v90
  %v451 = vunpack.c.l.b16 %v91
  %v452 = vunpack.c.h.b16 %v91
  %v453 = vunpack.c.l.b16 %v92
  %v454 = vunpack.c.h.b16 %v92
  %v455 = vunpack.c.l.b16 %v93
  %v456 = vunpack.c.h.b16 %v93
  %v457 = vunpack.c.l.b16 %v94
  %v458 = vunpack.c.h.b16 %v94
  %v459 = vunpack.c.l.b16 %v95
  %v460 = vunpack.c.h.b16 %v95
  %v461 = vunpack.c.l.b16 %v96
  %v462 = vunpack.c.h.b16 %v96
  %v463 = vunpack.c.l.b16 %v97
  %v464 = vunpack.c.h.b16 %v97
  %v465 = vunpack.c.l.b16 %v98
  %v466 = vunpack.c.h.b16 %v98
  %v467 = vunpack.c.l.b16 %v99
  %v468 = vunpack.c.h.b16 %v99
  %v469 = vunpack.c.l.b16 %v100
  %v470 = vunpack.c.h.b16 %v100
  %v471 = vunpack.c.l.b16 %v101
  %v472 = vunpack.c.h.b16 %v101
  %v473 = vunpack.c.l.b16 %v102
  %v474 = vunpack.c.h.b16 %v102
  %v475 = vunpack.c.l.b16 %v103
  %v476 = vunpack.c.h.b16 %v103
  %v477 = vunpack.c.l.b16 %v104
  %v478 = vunpack.c.h.b16 %v104
  %v479 = vunpack.c.l.b16 %v105
  %v480 = vunpack.c.h.b16 %v105
  %v481 = vunpack.c.l.b16 %v106
  %v482 = vunpack.c.h.b16 %v106
  %v483 = vunpack.c.l.b16 %v107
  %v484 = vunpack.c.h.b16 %v107
  %v485 = vunpack.c.l.b16 %v108
  %v486 = vunpack.c.h.b16 %v108
  %v487 = vunpack.c.l.b16 %v109
  %v488 = vunpack.c.h.b16 %v109
  %v489 = vunpack.c.l.b16 %v110
  %v490 = vunpack.c.h.b16 %v110
  %v491 = vunpack.c.l.b16 %v111
  %v492 = vunpack.c.h.b16 %v111
  %v493 = vunpack.c.l.b16 %v112
  %v494 = vunpack.c.h.b16 %v112
  %v495 = vunpack.c.l.b16 %v113
  %v496 = vunpack.c.h.b16 %v113
  %v497 = vunpack.c.l.b16 %v114
  %v498 = vunpack.c.h.b16 %v114
  %v499 = vunpack.c.l.b16 %v115
  %v500 = vunpack.c.h.b16 %v115
  %v501 = vunpack.c.l.b16 %v116
  %v502 = vunpack.c.h.b16 %v116
  %v503 = vunpack.c.l.b16 %v117
  %v504 = vunpack.c.h.b16 %v117
  %v505 = vunpack.c.l.b16 %v118
  %v506 = vunpack.c.h.b16 %v118
  %v507 = vunpack.c.l.b16 %v119
  %v508 = vunpack.c.h.b16 %v119
  %v509 = vunpack.c.l.b16 %v120
  %v510 = vunpack.c.h.b16 %v120
  %v511 = vunpack.c.l.b16 %v121
  %v512 = vunpack.c.h.b16 %v121
  %v513 = vunpack.c.l.b16 %v122
  %v514 = vunpack.c.h.b16 %v122
  %v515 = vunpack.c.l.b16 %v123
  %v516 = vunpack.c.h.b16 %v123
  %v517 = vunpack.c.l.b16 %v124
  %v518 = vunpack.c.h.b16 %v124
  %v519 = vunpack.c.l.b16 %v125
  %v520 = vunpack.c.h.b16 %v125
  %v521 = vunpack.c.l.b16 %v126
  %v522 = vunpack.c.h.b16 %v126
  %v523 = vunpack.c.l.b16 %v127
  %v524 = vunpack.c.h.b16 %v127
  %v525 = vunpack.c.l.b16 %v128
  %v526 = vunpack.c.h.b16 %v128
  %v527 = vunpack.c.l.b16 %v129
  %v528 = vunpack.c.h.b16 %v129
  %v529 = vunpack.c.l.b16 %v130
  %v530 = vunpack.c.h.b16 %v130
  %v531 = vunpack.c.l.b16 %v131
  %v532 = vunpack.c.h.b16 %v131
  %v533 = vunpack.c.l.b16 %v132
  %v534 = vunpack.c.h.b16 %v132
  %v535 = vunpack.c.l.b16 %v133
  %v536 = vunpack.c.h.b16 %v133
  %v537 = vunpack.c.l.b16 %v134
  %v538 = vunpack.c.h.b16 %v134
  %v539 = vunpack.c.l.b16 %v135
  %v540 = vunpack.c.h.b16 %v135
  %v541 = vunpack.c.l.b16 %v136
  %v542 = vunpack.c.h.b16 %v136
  %v543 = vunpack.c.l.b16 %v137
  %v544 = vunpack.c.h.b16 %v137
  %v545 = vunpack.c.l.b16 %v138
  %v546 = vunpack.c.h.b16 %v138
  %v547 = vunpack.c.l.b16 %v139
  %v548 = vunpack.c.h.b16 %v139
  %v549 = vunpack.c.l.b16 %v140
  %v550 = vunpack.c.h.b16 %v140
  %v551 = vunpack.c.l.b16 %v141
  %v552 = vunpack.c.h.b16 %v141
  %v553 = vunpack.c.l.b16 %v142
  %v554 = vunpack.c.h.b16 %v142
  %v555 = vpack.c.b16 %v301, %v299
  %v556 = vpack.c.b16 %v302, %v300
  %v557 = vpack.c.b16 %v305, %v303
  %v558 = vpack.c.b16 %v306, %v304
  %v559 = vpack.c.b16 %v309, %v307
  %v560 = vpack.c.b16 %v310, %v308
  %v561 = vpack.c.b16 %v313, %v311
  %v562 = vpack.c.b16 %v314, %v312
  %v563 = vpack.c.b16 %v317, %v315
  %v564 = vpack.c.b16 %v318, %v316
  %v565 = vpack.c.b16 %v321, %v319
  %v566 = vpack.c.b16 %v322, %v320
  %v567 = vpack.c.b16 %v325, %v323
  %v568 = vpack.c.b16 %v326, %v324
  %v569 = vpack.c.b16 %v329, %v327
  %v570 = vpack.c.b16 %v330, %v328
  %v571 = vpack.c.b16 %v333, %v331
  %v572 = vpack.c.b16 %v334, %v332
  %v573 = vpack.c.b16 %v337, %v335
  %v574 = vpack.c.b16 %v338, %v336
  %v575 = vpack.c.b16 %v341, %v339
  %v576 = vpack.c.b16 %v342, %v340
  %v577 = vpack.c.b16 %v345, %v343
  %v578 = vpack.c.b16 %v346, %v344
  %v579 = vpack.c.b16 %v349, %v347
  %v580 = vpack.c.b16 %v350, %v348
  %v581 = vpack.c.b16 %v353, %v351
  %v582 = vpack.c.b16 %v354, %v352
  %v583 = vpack.c.b16 %v357, %v355
  %v584 = vpack.c.b16 %v358, %v356
  %v585 = vpack.c.b16 %v361, %v359
  %v586 = vpack.c.b16 %v362, %v360
  %v587 = vpack.c.b16 %v365, %v363
  %v588 = vpack.c.b16 %v366, %v364
  %v589 = vpack.c.b16 %v369, %v367
  %v590 = vpack.c.b16 %v370, %v368
  %v591 = vpack.c.b16 %v373, %v371
  %v592 = vpack.c.b16 %v374, %v372
  %v593 = vpack.c.b16 %v377, %v375
  %v594 = vpack.c.b16 %v378, %v376
  %v595 = vpack.c.b16 %v381, %v379
  %v596 = vpack.c.b16 %v382, %v380
  %v597 = vpack.c.b16 %v385, %v383
  %v598 = vpack.c.b16 %v386, %v384
  %v599 = vpack.c.b16 %v389, %v387
  %v600 = vpack.c.b16 %v390, %v388
  %v601 = vpack.c.b16 %v393, %v391
  %v602 = vpack.c.b16 %v394, %v392
  %v603 = vpack.c.b16 %v397, %v395
  %v604 = vpack.c.b16 %v398, %v396
  %v605 = vpack.c.b16 %v401, %v399
  %v606 = vpack.c.b16 %v402, %v400
  %v607 = vpack.c.b16 %v405, %v403
  %v608 = vpack.c.b16 %v406, %v404
  %v609 = vpack.c.b16 %v409, %v407
  %v610 = vpack.c.b16 %v410, %v408
  %v611 = vpack.c.b16 %v413, %v411
  %v612 = vpack.c.b16 %v414, %v412
  %v613 = vpack.c.b16 %v417, %v415
  %v614 = vpack.c.b16 %v418, %v416
  %v615 = vpack.c.b16 %v421, %v419
  %v616 = vpack.c.b16 %v422, %v420
  %v617 = vpack.c.b16 %v425, %v423
  %v618 = vpack.c.b16 %v426, %v424
  %v619 = vpack.c.b16 %v429, %v427
  %v620 = vpack.c.b16 %v430, %v428
  %v621 = vpack.c.b16 %v433, %v431
  %v622 = vpack.c.b16 %v434, %v432
  %v623 = vpack.c.b16 %v437, %v435
  %v624 = vpack.c.b16 %v438, %v436
  %v625 = vpack.c.b16 %v441, %v439
  %v626 = vpack.c.b16 %v442, %v440
  %v627 = vpack.c.b16 %v445, %v443
  %v628 = vpack.c.b16 %v446, %v444
  %v629 = vpack.c.b16 %v449, %v447
  %v630 = vpack.c.b16 %v450, %v448
  %v631 = vpack.c.b16 %v453, %v451
  %v632 = vpack.c.b16 %v454, %v452
  %v633 = vpack.c.b16 %v457, %v455
  %v634 = vpack.c.b16 %v458, %v456
  %v635 = vpack.c.b16 %v461, %v459
  %v636 = vpack.c.b16 %v462, %v460
  %v637 = vpack.c.b16 %v465, %v463
  %v638 = vpack.c.b16 %v466, %v464
  %v639 = vpack.c.b16 %v469, %v467
  %v640 = vpack.c.b16 %v470, %v468
  %v641 = vpack.c.b16 %v473, %v471
  %v642 = vpack.c.b16 %v474, %v472
  %v643 = vpack.c.b16 %v477, %v475
  %v644 = vpack.c.b16 %v478, %v476
  %v645 = vpack.c.b16 %v481, %v479
  %v646 = vpack.c.b16 %v482, %v480
  %v647 = vpack.c.b16 %v485, %v483
  %v648 = vpack.c.b16 %v486, %v484
  %v649 = vpack.c.b16 %v489, %v487
  %v650 = vpack.c.b16 %v490, %v488
  %v651 = vpack.c.b16 %v493, %v491
  %v652 = vpack.c.b16 %v494, %v492
  %v653 = vpack.c.b16 %v497, %v495
  %v654 = vpack.c.b16 %v498, %v496
  %v655 = vpack.c.b16 %v501, %v499
  %v656 = vpack.c.b16 %v502, %v500
  %v657 = vpack.c.b16 %v505, %v503
  %v658 = vpack.c.b16 %v506, %v504
  %v659 = vpack.c.b16 %v509, %v507
  %v660 = vpack.c.b16 %v510, %v508
  %v661 = vpack.c.b16 %v513, %v511
  %v662 = vpack.c.b16 %v514, %v512
  %v663 = vpack.c.b16 %v517, %v515
  %v664 = vpack.c.b16 %v518, %v516
  %v665 = vpack.c.b16 %v521, %v519
  %v666 = vpack.c.b16 %v522, %v520
  %v667 = vpack.c.b16 %v525, %v523
  %v668 = vpack.c.b16 %v526, %v524
  %v669 = vpack.c.b16 %v529, %v527
  %v670 = vpack.c.b16 %v530, %v528
  %v671 = vpack.c.b16 %v533, %v531
  %v672 = vpack.c.b16 %v534, %v532
  %v673 = vpack.c.b16 %v537, %v535
  %v674 = vpack.c.b16 %v538, %v536
  %v675 = vpack.c.b16 %v541, %v539
  %v676 = vpack.c.b16 %v542, %v540
  %v677 = vpack.c.b16 %v545, %v543
  %v678 = vpack.c.b16 %v546, %v544
  %v679 = vpack.c.b16 %v549, %v547
  %v680 = vpack.c.b16 %v550, %v548
  %v681 = vpack.c.b16 %v553, %v551
  %v682 = vpack.c.b16 %v554, %v552
  %811 = vmatprep.subr.bf16.mxu0 %v570
  %812 = vmatpush1.bf16.msra.mxu0 %v569
  %813 = vmatprep.subr.bf16.mxu0 %v568
  %814 = vmatpush1.bf16.msra.mxu0 %v567
  %815 = vmatprep.subr.bf16.mxu0 %v566
  %816 = vmatpush1.bf16.msra.mxu0 %v565
  %817 = vmatprep.subr.bf16.mxu0 %v564
  %818 = vmatpush1.bf16.msra.mxu0 %v563
  %819 = vmatprep.subr.bf16.mxu0 %v562
  %820 = vmatpush1.bf16.msra.mxu0 %v561
  %821 = vmatprep.subr.bf16.mxu0 %v560
  %822 = vmatpush1.bf16.msra.mxu0 %v559
  %823 = vmatprep.subr.bf16.mxu0 %v558
  %824 = vmatpush1.bf16.msra.mxu0 %v557
  %825 = vmatprep.subr.bf16.mxu0 %v556
  %826 = vmatpush1.bf16.msra.mxu0 %v555
  %827 = vmatprep.subr.bf16.mxu0 %v586
  %828 = vmatpush2.bf16.msra.mxu0 %v585
  %829 = vmatprep.subr.bf16.mxu0 %v584
  %830 = vmatpush2.bf16.msra.mxu0 %v583
  %831 = vmatprep.subr.bf16.mxu0 %v582
  %832 = vmatpush2.bf16.msra.mxu0 %v581
  %833 = vmatprep.subr.bf16.mxu0 %v580
  %834 = vmatpush2.bf16.msra.mxu0 %v579
  %835 = vmatprep.subr.bf16.mxu0 %v578
  %836 = vmatpush2.bf16.msra.mxu0 %v577
  %837 = vmatprep.subr.bf16.mxu0 %v576
  %838 = vmatpush2.bf16.msra.mxu0 %v575
  %839 = vmatprep.subr.bf16.mxu0 %v574
  %840 = vmatpush2.bf16.msra.mxu0 %v573
  %841 = vmatprep.subr.bf16.mxu0 %v572
  %842 = vmatpush2.bf16.msra.mxu0 %v571
  %843 = vmatprep.mubr.bf16.mxu0 %v156
  %844 = vmatmul.mubr.bf16.gmra.mxu0 %v155
  %v845 = vpop.f32.mrf.mxu0
  %v846 = vadd.f32 0.0, %v845
  %v847 = vpop.f32.mrf.mxu0
  %v848 = vadd.f32 0.0, %v847
  %v849 = vpop.f32.mrf.mxu0
  %v850 = vpop.f32.mrf.mxu0
  %851 = vdwg.mxu0
  %852 = vmatprep.subr.bf16.mxu0 %v602
  %853 = vmatpush1.bf16.msra.mxu0 %v601
  %854 = vmatprep.subr.bf16.mxu0 %v600
  %855 = vmatpush1.bf16.msra.mxu0 %v599
  %856 = vmatprep.subr.bf16.mxu0 %v598
  %857 = vmatpush1.bf16.msra.mxu0 %v597
  %858 = vmatprep.subr.bf16.mxu0 %v596
  %859 = vmatpush1.bf16.msra.mxu0 %v595
  %860 = vmatprep.subr.bf16.mxu0 %v594
  %861 = vmatpush1.bf16.msra.mxu0 %v593
  %862 = vmatprep.subr.bf16.mxu0 %v592
  %863 = vmatpush1.bf16.msra.mxu0 %v591
  %864 = vmatprep.subr.bf16.mxu0 %v590
  %865 = vmatpush1.bf16.msra.mxu0 %v589
  %866 = vmatprep.subr.bf16.mxu0 %v588
  %867 = vmatpush1.bf16.msra.mxu0 %v587
  %868 = vmatprep.subr.bf16.mxu0 %v618
  %869 = vmatpush2.bf16.msra.mxu0 %v617
  %870 = vmatprep.subr.bf16.mxu0 %v616
  %871 = vmatpush2.bf16.msra.mxu0 %v615
  %872 = vmatprep.subr.bf16.mxu0 %v614
  %873 = vmatpush2.bf16.msra.mxu0 %v613
  %874 = vmatprep.subr.bf16.mxu0 %v612
  %875 = vmatpush2.bf16.msra.mxu0 %v611
  %876 = vmatprep.subr.bf16.mxu0 %v610
  %877 = vmatpush2.bf16.msra.mxu0 %v609
  %878 = vmatprep.subr.bf16.mxu0 %v608
  %879 = vmatpush2.bf16.msra.mxu0 %v607
  %880 = vmatprep.subr.bf16.mxu0 %v606
  %881 = vmatpush2.bf16.msra.mxu0 %v605
  %882 = vmatprep.subr.bf16.mxu0 %v604
  %883 = vmatpush2.bf16.msra.mxu0 %v603
  %884 = vmatprep.mubr.bf16.mxu0 %v158
  %885 = vmatmul.mubr.bf16.gmra.mxu0 %v157
  %v886 = vpop.f32.mrf.mxu0
  %v887 = vadd.f32 %v846, %v886
  %v888 = vpop.f32.mrf.mxu0
  %v889 = vadd.f32 %v848, %v888
  %v890 = vpop.f32.mrf.mxu0
  %v891 = vpop.f32.mrf.mxu0
  %892 = vdwg.mxu0
  %893 = vmatprep.subr.bf16.mxu0 %v634
  %894 = vmatpush1.bf16.msra.mxu0 %v633
  %895 = vmatprep.subr.bf16.mxu0 %v632
  %896 = vmatpush1.bf16.msra.mxu0 %v631
  %897 = vmatprep.subr.bf16.mxu0 %v630
  %898 = vmatpush1.bf16.msra.mxu0 %v629
  %899 = vmatprep.subr.bf16.mxu0 %v628
  %900 = vmatpush1.bf16.msra.mxu0 %v627
  %901 = vmatprep.subr.bf16.mxu0 %v626
  %902 = vmatpush1.bf16.msra.mxu0 %v625
  %903 = vmatprep.subr.bf16.mxu0 %v624
  %904 = vmatpush1.bf16.msra.mxu0 %v623
  %905 = vmatprep.subr.bf16.mxu0 %v622
  %906 = vmatpush1.bf16.msra.mxu0 %v621
  %907 = vmatprep.subr.bf16.mxu0 %v620
  %908 = vmatpush1.bf16.msra.mxu0 %v619
  %909 = vmatprep.subr.bf16.mxu0 %v650
  %910 = vmatpush2.bf16.msra.mxu0 %v649
  %911 = vmatprep.subr.bf16.mxu0 %v648
  %912 = vmatpush2.bf16.msra.mxu0 %v647
  %913 = vmatprep.subr.bf16.mxu0 %v646
  %914 = vmatpush2.bf16.msra.mxu0 %v645
  %915 = vmatprep.subr.bf16.mxu0 %v644
  %916 = vmatpush2.bf16.msra.mxu0 %v643
  %917 = vmatprep.subr.bf16.mxu0 %v642
  %918 = vmatpush2.bf16.msra.mxu0 %v641
  %919 = vmatprep.subr.bf16.mxu0 %v640
  %920 = vmatpush2.bf16.msra.mxu0 %v639
  %921 = vmatprep.subr.bf16.mxu0 %v638
  %922 = vmatpush2.bf16.msra.mxu0 %v637
  %923 = vmatprep.subr.bf16.mxu0 %v636
  %924 = vmatpush2.bf16.msra.mxu0 %v635
  %925 = vmatprep.mubr.bf16.mxu0 %v160
  %926 = vmatmul.mubr.bf16.gmra.mxu0 %v159
  %v927 = vpop.f32.mrf.mxu0
  %v928 = vadd.f32 %v887, %v927
  %v929 = vpop.f32.mrf.mxu0
  %v930 = vadd.f32 %v889, %v929
  %v931 = vpop.f32.mrf.mxu0
  %v932 = vpop.f32.mrf.mxu0
  %933 = vdwg.mxu0
  %934 = vmatprep.subr.bf16.mxu0 %v666
  %935 = vmatpush1.bf16.msra.mxu0 %v665
  %936 = vmatprep.subr.bf16.mxu0 %v664
  %937 = vmatpush1.bf16.msra.mxu0 %v663
  %938 = vmatprep.subr.bf16.mxu0 %v662
  %939 = vmatpush1.bf16.msra.mxu0 %v661
  %940 = vmatprep.subr.bf16.mxu0 %v660
  %941 = vmatpush1.bf16.msra.mxu0 %v659
  %942 = vmatprep.subr.bf16.mxu0 %v658
  %943 = vmatpush1.bf16.msra.mxu0 %v657
  %944 = vmatprep.subr.bf16.mxu0 %v656
  %945 = vmatpush1.bf16.msra.mxu0 %v655
  %946 = vmatprep.subr.bf16.mxu0 %v654
  %947 = vmatpush1.bf16.msra.mxu0 %v653
  %948 = vmatprep.subr.bf16.mxu0 %v652
  %949 = vmatpush1.bf16.msra.mxu0 %v651
  %950 = vmatprep.subr.bf16.mxu0 %v682
  %951 = vmatpush2.bf16.msra.mxu0 %v681
  %952 = vmatprep.subr.bf16.mxu0 %v680
  %953 = vmatpush2.bf16.msra.mxu0 %v679
  %954 = vmatprep.subr.bf16.mxu0 %v678
  %955 = vmatpush2.bf16.msra.mxu0 %v677
  %956 = vmatprep.subr.bf16.mxu0 %v676
  %957 = vmatpush2.bf16.msra.mxu0 %v675
  %958 = vmatprep.subr.bf16.mxu0 %v674
  %959 = vmatpush2.bf16.msra.mxu0 %v673
  %960 = vmatprep.subr.bf16.mxu0 %v672
  %961 = vmatpush2.bf16.msra.mxu0 %v671
  %962 = vmatprep.subr.bf16.mxu0 %v670
  %963 = vmatpush2.bf16.msra.mxu0 %v669
  %964 = vmatprep.subr.bf16.mxu0 %v668
  %965 = vmatpush2.bf16.msra.mxu0 %v667
  %966 = vmatprep.mubr.bf16.mxu0 %v162
  %967 = vmatmul.mubr.bf16.gmra.mxu0 %v161
  %v968 = vpop.f32.mrf.mxu0
  %v969 = vadd.f32 %v928, %v968
  %v970 = vpop.f32.mrf.mxu0
  %v971 = vadd.f32 %v930, %v970
  %v972 = vpop.f32.mrf.mxu0
  %v973 = vpop.f32.mrf.mxu0
  %974 = vdwg.mxu0
  %v975 = vmul.f32 %v969, %v969
  %v976 = vmul.f32 %v971, %v971
  %v977 = vmul.f32 %v969, %v975
  %v978 = vmul.f32 %v971, %v976
  %v979 = vmul.f32 %v977, 0.044715
  %v980 = vmul.f32 %v978, 0.044715
  %v981 = vadd.f32 %v969, %v979
  %v982 = vadd.f32 %v971, %v980
  %v983 = vmul.f32 %v981, 0.7978846
  %v984 = vmul.f32 %v982, 0.7978846
  %v985 = vtanh.pop %v983
  %v986 = vtanh.pop %v984
  %v987 = vadd.f32 %v985, 1.0
  %v988 = vadd.f32 %v986, 1.0
  %v989 = vmul.f32 %v987, 0.5
  %v990 = vmul.f32 %v988, 0.5
  %v991 = vmul.f32 %v969, %v989
  %v992 = vmul.f32 %v971, %v990
  %v993 = vpack.c.bf16 %v991, %v991
  %v994 = vpack.c.bf16 %v992, %v992
  %v997 = vunpack.c.l.b16 %v993
  %v998 = vunpack.c.l.b16 %v994
  %v999 = vpack.c.b16 %v998, %v997
  %1001 = vst [vmem:[%s2] sm:$0xff] %v999
  // Predicated region
  $region10: #{mitcls_seg_forward.8} parent=0 // pred_check
    _
  $region11: #{mitcls_seg_forward.8} parent=0 // pred_check_branch
    %1003 = sbr.rel (0) target = $region13
  $region12: #{mitcls_seg_forward.8} parent=0 // pred_region
    _
  $region13: #{mitcls_seg_forward.8} parent=0 // pred_fallthru
    _
  // Predicated region
  $region14: #{mitcls_seg_forward.8} parent=0 // pred_check
    _
  $region15: #{mitcls_seg_forward.8} parent=0 // pred_check_branch
    %1005 = sbr.rel (0) target = $region17
  $region16: #{mitcls_seg_forward.8} parent=0 // pred_region
    _
  $region17: #{mitcls_seg_forward.8} parent=0 // pred_fallthru
    _

</llo_original>
